<compile_context>
chip_gen: v7x
topology: tpu7x:2x2x1
jax: 0.10.0
libtpu: 0.0.40
codegen_flags: <defaults>
</compile_context>

<pallas_src>
import functools

import jax
import jax.numpy as jnp
from jax.experimental import pallas as pl
from jax.experimental.pallas import tpu as pltpu


# ----------------------------------------------------------------------------
# Fused 2-layer SAGEConv kernel
# ----------------------------------------------------------------------------
def fused_sage2_kernel(a_ref, x_ref, inv_deg_ref, wl1_ref, wr1_ref, b1_ref,
                       wl2_ref, wr2_ref, b2_ref, o_ref, h_ref,
                       *, tile_m, a_resident):
    # a_ref   : int8 adjacency.  Resident: [N_pad, N_pad]; streamed: [TM, N_pad]
    # x_ref   : [N_pad, Fin_p]  bf16  node features (VMEM resident)
    # inv_deg : [TM, 1]         f32   1/deg for this row tile
    # wl*/wr* : bf16 weights (VMEM resident), b*: f32 bias [1, F*_p]
    # o_ref   : [TM, Fout_p]    bf16  output tile (only written in phase 1)
    # h_ref   : [N_pad, H_p]    bf16  VMEM scratch: layer-1 activations
    phase = pl.program_id(0)
    tile = pl.program_id(1)
    row0 = pl.multiple_of(tile * tile_m, tile_m)

    def a_slab_bf16():
        if a_resident:
            a = a_ref[pl.ds(row0, tile_m), :]
        else:
            a = a_ref[...]
        return a.astype(jnp.bfloat16)

    inv_deg = inv_deg_ref[...]          # (TM, 1) f32, used by both phases

    @pl.when(phase == 0)
    def _layer1():
        # unnormalized neighbor sum, then exact f32 mean normalization
        agg = jnp.dot(a_slab_bf16(), x_ref[...],
                      preferred_element_type=jnp.float32)
        agg = agg * inv_deg
        out = jnp.dot(agg.astype(jnp.bfloat16), wl1_ref[...],
                      preferred_element_type=jnp.float32)
        out = out + jnp.dot(x_ref[pl.ds(row0, tile_m), :], wr1_ref[...],
                            preferred_element_type=jnp.float32)
        out = out + b1_ref[...]
        out = jnp.maximum(out, 0.0)                       # fused ReLU
        h_ref[pl.ds(row0, tile_m), :] = out.astype(h_ref.dtype)
        # dropout: inference mode -> identity.
        # NOTE: o_ref is intentionally NOT written in phase 0; the output
        # index_map pins phase 0 to block (0, 0), which is only flushed to HBM
        # after phase 1 / tile 0 has overwritten it with real data.

    @pl.when(phase == 1)
    def _layer2():
        agg = jnp.dot(a_slab_bf16(), h_ref[...],
                      preferred_element_type=jnp.float32)
        agg = agg * inv_deg
        out = jnp.dot(agg.astype(jnp.bfloat16), wl2_ref[...],
                      preferred_element_type=jnp.float32)
        out = out + jnp.dot(h_ref[pl.ds(row0, tile_m), :], wr2_ref[...],
                            preferred_element_type=jnp.float32)
        out = out + b2_ref[...]
        o_ref[...] = out.astype(o_ref.dtype)


def fused_graphsage2(a, x, inv_deg, wl1, wr1, b1, wl2, wr2, b2, *,
                     tile_m, a_resident, single_buffer_resident,
                     vmem_limit_bytes):
    n_pad = x.shape[0]
    f_in_p = x.shape[1]
    h_p = wl1.shape[1]
    f_out_p = wl2.shape[1]
    num_tiles = n_pad // tile_m

    def resident_spec(shape):
        # constant index_map -> fetched once; single-buffer when supported
        if single_buffer_resident:
            return pl.BlockSpec(shape, lambda p, i: (0, 0),
                                pipeline_mode=pl.Buffered(1))
        return pl.BlockSpec(shape, lambda p, i: (0, 0))

    if a_resident:
        a_spec = resident_spec((n_pad, n_pad))
    else:
        a_spec = pl.BlockSpec((tile_m, n_pad), lambda p, i: (i, 0))

    kernel = functools.partial(fused_sage2_kernel, tile_m=tile_m,
                               a_resident=a_resident)
    return pl.pallas_call(
        kernel,
        out_shape=jax.ShapeDtypeStruct((n_pad, f_out_p), jnp.bfloat16),
        grid=(2, num_tiles),                              # (phase, row tile)
        in_specs=[
            a_spec,                                               # A (int8)
            resident_spec((n_pad, f_in_p)),                       # x
            pl.BlockSpec((tile_m, 1), lambda p, i: (i, 0)),       # inv_deg
            resident_spec((f_in_p, h_p)),                         # W_l1
            resident_spec((f_in_p, h_p)),                         # W_r1
            resident_spec((1, h_p)),                              # b1
            resident_spec((h_p, f_out_p)),                        # W_l2
            resident_spec((h_p, f_out_p)),                        # W_r2
            resident_spec((1, f_out_p)),                          # b2
        ],
        # phase 0 pins the output to block (0, 0) -> no zero writeback;
        # phase 1 walks the real row tiles.
        out_specs=pl.BlockSpec((tile_m, f_out_p), lambda p, i: (p * i, 0)),
        scratch_shapes=[pltpu.VMEM((n_pad, h_p), jnp.bfloat16)],  # hidden act
        compiler_params=pltpu.CompilerParams(
            # phase 1 depends on phase 0's VMEM-resident hidden state, so the
            # grid must run sequentially on one TensorCore.
            dimension_semantics=("arbitrary", "arbitrary"),
            vmem_limit_bytes=vmem_limit_bytes,
        ),
    )(a, x, inv_deg, wl1, wr1, b1, wl2, wr2, b2)


# ----------------------------------------------------------------------------
# Glue: int8 adjacency + inv-degree, padding helpers, VMEM budgeting
# ----------------------------------------------------------------------------
_A_RESIDENT_BUDGET = 40 * 1024 * 1024     # conservative across v5e/v6e/v7x


def build_adjacency_and_invdeg(edge_index, num_nodes, n_pad):
    src, dst = edge_index[0], edge_index[1]
    counts = jnp.zeros((num_nodes, num_nodes), jnp.int32).at[dst, src].add(1)
    deg = jnp.sum(counts, axis=1, keepdims=True).astype(jnp.float32)
    inv_deg = 1.0 / jnp.maximum(deg, 1.0)   # 0 neighbors -> agg stays 0
    a_i8 = counts.astype(jnp.int8)          # assumes edge multiplicity < 128
    a_p = jnp.pad(a_i8, ((0, n_pad - num_nodes), (0, n_pad - num_nodes)))
    inv_p = jnp.pad(inv_deg, ((0, n_pad - num_nodes), (0, 0)))
    return a_p, inv_p


def _round_up(v, m):
    return ((v + m - 1) // m) * m


def _pad2(x, rows, cols):
    return jnp.pad(x, ((0, rows - x.shape[0]), (0, cols - x.shape[1])))


def _estimate_vmem_bytes(n_pad, tile_m, f_in_p, h_p, f_out_p, a_resident):
    """Conservative (double-buffered) VMEM footprint estimate in bytes."""
    a_bytes = 2 * (n_pad * n_pad if a_resident else tile_m * n_pad)   # int8
    x_bytes = 2 * n_pad * f_in_p * 2                                  # bf16
    w_bytes = 2 * (2 * f_in_p * h_p + 2 * h_p * f_out_p) * 2          # bf16
    b_bytes = 2 * (h_p + f_out_p) * 4                                 # f32
    inv_bytes = 2 * tile_m * 4                                        # f32
    h_bytes = n_pad * h_p * 2                                         # scratch
    out_bytes = 2 * tile_m * f_out_p * 2                              # bf16
    return (a_bytes + x_bytes + w_bytes + b_bytes + inv_bytes + h_bytes
            + out_bytes)


# ----------------------------------------------------------------------------
# GraphSAGE model (parameter setup + forward through the fused Pallas kernel)
# ----------------------------------------------------------------------------
def init_graphsage_params(key, in_channels, hidden_channels, out_channels,
                          num_layers=2):
    dims = [in_channels] + [hidden_channels] * (num_layers - 1) + [out_channels]
    params = []
    for l in range(num_layers):
        f_in, f_out = dims[l], dims[l + 1]
        key, k1, k2, k3 = jax.random.split(key, 4)
        scale = 1.0 / jnp.sqrt(jnp.float32(f_in))
        w_l = jax.random.uniform(k1, (f_in, f_out), jnp.float32, -scale, scale)
        w_r = jax.random.uniform(k2, (f_in, f_out), jnp.float32, -scale, scale)
        b = jax.random.uniform(k3, (1, f_out), jnp.float32, -scale, scale)
        params.append((w_l, w_r, b))
    return params


def graphsage_forward(params, x, edge_index, *, tile_m=512):
    assert len(params) == 2, "fused kernel implements the default 2-layer model"
    (wl1, wr1, b1), (wl2, wr2, b2) = params
    n, f_in = x.shape
    hidden = wl1.shape[1]
    f_out = wl2.shape[1]

    # Row tile: large for HBM-roofline on big graphs, clamped for tiny ones.
    tile_m = max(128, min(tile_m, _round_up(n, 128)))     # multiple of 128
    n_pad = _round_up(n, tile_m)
    f_in_p = _round_up(f_in, 128)
    h_p = _round_up(hidden, 128)
    f_out_p = _round_up(f_out, 128)

    a_resident = (_estimate_vmem_bytes(n_pad, tile_m, f_in_p, h_p, f_out_p,
                                       True) <= _A_RESIDENT_BUDGET)
    need = _estimate_vmem_bytes(n_pad, tile_m, f_in_p, h_p, f_out_p, a_resident)
    vmem_limit = int(min(max(need * 3 // 2 + (4 << 20), 32 << 20), 96 << 20))

    a_p, inv_p = build_adjacency_and_invdeg(edge_index, n, n_pad)
    x_p = _pad2(x, n_pad, f_in_p).astype(jnp.bfloat16)
    wl1_p = _pad2(wl1, f_in_p, h_p).astype(jnp.bfloat16)
    wr1_p = _pad2(wr1, f_in_p, h_p).astype(jnp.bfloat16)
    b1_p = _pad2(b1, 1, h_p).astype(jnp.float32)
    wl2_p = _pad2(wl2, h_p, f_out_p).astype(jnp.bfloat16)
    wr2_p = _pad2(wr2, h_p, f_out_p).astype(jnp.bfloat16)
    b2_p = _pad2(b2, 1, f_out_p).astype(jnp.float32)

    args = (a_p, x_p, inv_p, wl1_p, wr1_p, b1_p, wl2_p, wr2_p, b2_p)
    kwargs = dict(tile_m=tile_m, a_resident=a_resident,
                  vmem_limit_bytes=vmem_limit)
    try:
        out_p = fused_graphsage2(*args, single_buffer_resident=True, **kwargs)
    except Exception:
        # pipeline_mode=pl.Buffered(1) unsupported -> default double-buffering
        out_p = fused_graphsage2(*args, single_buffer_resident=False, **kwargs)

    # kernel emits bf16 (f32 accumulation); cast back to f32 for the caller
    return out_p[:n, :f_out].astype(jnp.float32)


# ----------------------------------------------------------------------------
if __name__ == "__main__":
    key = jax.random.PRNGKey(0)

    num_nodes = 16
    in_channels = 16
    hidden_channels = 32
    out_channels = 8
    num_edges = 40

    key, kx, ke_src, ke_dst, kp = jax.random.split(key, 5)
    x = jax.random.normal(kx, (num_nodes, in_channels), dtype=jnp.float32)
    src = jax.random.randint(ke_src, (num_edges,), 0, num_nodes)
    dst = jax.random.randint(ke_dst, (num_edges,), 0, num_nodes)
    edge_index = jnp.stack([src, dst], axis=0)       # [2, E]

    params = init_graphsage_params(kp, in_channels, hidden_channels,
                                   out_channels, num_layers=2)

    out = graphsage_forward(params, x, edge_index)
    out = jax.block_until_ready(out)

    # sanity: correct shape, finite values
    assert out.shape == (num_nodes, out_channels)
    assert bool(jnp.all(jnp.isfinite(out)))

    # pure-JAX f32 reference (generous tolerance: kernel uses bf16 operands
    # with f32 accumulation and a bf16 output store)
    a_cnt = jnp.zeros((num_nodes, num_nodes), jnp.float32).at[dst, src].add(1.0)
    deg = jnp.maximum(jnp.sum(a_cnt, axis=1, keepdims=True), 1.0)
    a_norm = a_cnt / deg
    (wl1, wr1, b1), (wl2, wr2, b2) = params
    h_ref = jax.nn.relu(a_norm @ x @ wl1 + x @ wr1 + b1)
    ref = a_norm @ h_ref @ wl2 + h_ref @ wr2 + b2
    assert bool(jnp.allclose(out, ref, rtol=0.25, atol=0.25))

    print("KERNEL_OK")
</pallas_src>

<mosaic_0001>
module attributes {stable_mosaic.version = 11 : i64} {
  func.func @fused_sage2_kernel(%arg0: i32, %arg1: i32, %arg2: memref<128x128xi8, #tpu.memory_space<vmem>>, %arg3: memref<128x128xbf16, #tpu.memory_space<vmem>>, %arg4: memref<128x1xf32, #tpu.memory_space<vmem>>, %arg5: memref<128x128xbf16, #tpu.memory_space<vmem>>, %arg6: memref<128x128xbf16, #tpu.memory_space<vmem>>, %arg7: memref<1x128xf32, #tpu.memory_space<vmem>>, %arg8: memref<128x128xbf16, #tpu.memory_space<vmem>>, %arg9: memref<128x128xbf16, #tpu.memory_space<vmem>>, %arg10: memref<1x128xf32, #tpu.memory_space<vmem>>, %arg11: memref<128x128xbf16, #tpu.memory_space<vmem>>, %arg12: memref<128x128xbf16, #tpu.memory_space<vmem>>) attributes {dimension_semantics = [#tpu.dimension_semantics<arbitrary>, #tpu.dimension_semantics<arbitrary>], iteration_bounds = array<i64: 2, 1>, scalar_prefetch = 0 : i64, scratch_operands = 1 : i64, tpu.core_type = #tpu.core_type<tc>, window_params = [{pipeline_mode = #tpu.pipeline_mode<synchronous>, transform_indices = @transform_0, window_bounds = array<i64: 128, 128>}, {pipeline_mode = #tpu.pipeline_mode<synchronous>, transform_indices = @transform_1, window_bounds = array<i64: 128, 128>}, {transform_indices = @transform_2, window_bounds = array<i64: 128, 1>}, {pipeline_mode = #tpu.pipeline_mode<synchronous>, transform_indices = @transform_3, window_bounds = array<i64: 128, 128>}, {pipeline_mode = #tpu.pipeline_mode<synchronous>, transform_indices = @transform_4, window_bounds = array<i64: 128, 128>}, {pipeline_mode = #tpu.pipeline_mode<synchronous>, transform_indices = @transform_5, window_bounds = array<i64: 1, 128>}, {pipeline_mode = #tpu.pipeline_mode<synchronous>, transform_indices = @transform_6, window_bounds = array<i64: 128, 128>}, {pipeline_mode = #tpu.pipeline_mode<synchronous>, transform_indices = @transform_7, window_bounds = array<i64: 128, 128>}, {pipeline_mode = #tpu.pipeline_mode<synchronous>, transform_indices = @transform_8, window_bounds = array<i64: 1, 128>}, {transform_indices = @transform_9, window_bounds = array<i64: 128, 128>}]} {
    %c128_i32 = arith.constant 128 : i32
    %0 = arith.muli %arg1, %c128_i32 : i32
    %1 = tpu.assume_multiple %0, 128 : i32
    %c0 = arith.constant 0 : index
    %c0_0 = arith.constant 0 : index
    %2 = vector.load %arg4[%c0, %c0_0] : memref<128x1xf32, #tpu.memory_space<vmem>>, vector<128x1xf32>
    %c0_i32 = arith.constant 0 : i32
    %3 = arith.cmpi eq, %arg0, %c0_i32 : i32
    %4 = arith.extui %3 : i1 to i32
    %c0_i32_1 = arith.constant 0 : i32
    %5 = arith.cmpi ne, %4, %c0_i32_1 : i32
    scf.if %5 {
      %9 = arith.index_cast %1 : i32 to index
      %c0_3 = arith.constant 0 : index
      %10 = vector.load %arg2[%9, %c0_3] : memref<128x128xi8, #tpu.memory_space<vmem>>, vector<128x128xi8>
      %11 = arith.sitofp %10 : vector<128x128xi8> to vector<128x128xbf16>
      %c0_4 = arith.constant 0 : index
      %c0_5 = arith.constant 0 : index
      %12 = vector.load %arg3[%c0_4, %c0_5] : memref<128x128xbf16, #tpu.memory_space<vmem>>, vector<128x128xbf16>
      %cst = arith.constant dense<0.000000e+00> : vector<128x128xf32>
      %13 = tpu.matmul %11, %12, %cst {dimension_numbers = #tpu.dot_dimension_numbers<[1], [0], [0], [1], [0, 0, 1, 1], [], []>} : vector<128x128xbf16>, vector<128x128xbf16>, vector<128x128xf32> -> vector<128x128xf32>
      %14 = vector.broadcast %2 : vector<128x1xf32> to vector<128x128xf32>
      %15 = arith.mulf %13, %14 : vector<128x128xf32>
      %16 = arith.truncf %15 : vector<128x128xf32> to vector<128x128xbf16>
      %c0_6 = arith.constant 0 : index
      %c0_7 = arith.constant 0 : index
      %17 = vector.load %arg5[%c0_6, %c0_7] : memref<128x128xbf16, #tpu.memory_space<vmem>>, vector<128x128xbf16>
      %cst_8 = arith.constant dense<0.000000e+00> : vector<128x128xf32>
      %18 = tpu.matmul %16, %17, %cst_8 {dimension_numbers = #tpu.dot_dimension_numbers<[1], [0], [0], [1], [0, 0, 1, 1], [], []>} : vector<128x128xbf16>, vector<128x128xbf16>, vector<128x128xf32> -> vector<128x128xf32>
      %19 = arith.index_cast %1 : i32 to index
      %c0_9 = arith.constant 0 : index
      %20 = vector.load %arg3[%19, %c0_9] : memref<128x128xbf16, #tpu.memory_space<vmem>>, vector<128x128xbf16>
      %c0_10 = arith.constant 0 : index
      %c0_11 = arith.constant 0 : index
      %21 = vector.load %arg6[%c0_10, %c0_11] : memref<128x128xbf16, #tpu.memory_space<vmem>>, vector<128x128xbf16>
      %cst_12 = arith.constant dense<0.000000e+00> : vector<128x128xf32>
      %22 = tpu.matmul %20, %21, %cst_12 {dimension_numbers = #tpu.dot_dimension_numbers<[1], [0], [0], [1], [0, 0, 1, 1], [], []>} : vector<128x128xbf16>, vector<128x128xbf16>, vector<128x128xf32> -> vector<128x128xf32>
      %23 = arith.addf %18, %22 : vector<128x128xf32>
      %c0_13 = arith.constant 0 : index
      %c0_14 = arith.constant 0 : index
      %24 = vector.load %arg7[%c0_13, %c0_14] : memref<1x128xf32, #tpu.memory_space<vmem>>, vector<1x128xf32>
      %25 = vector.broadcast %24 : vector<1x128xf32> to vector<128x128xf32>
      %26 = arith.addf %23, %25 : vector<128x128xf32>
      %cst_15 = arith.constant 0.000000e+00 : f32
      %27 = vector.broadcast %cst_15 : f32 to vector<128x128xf32>
      %28 = arith.maximumf %26, %27 : vector<128x128xf32>
      %29 = arith.truncf %28 : vector<128x128xf32> to vector<128x128xbf16>
      %30 = arith.index_cast %1 : i32 to index
      %c0_16 = arith.constant 0 : index
      %31 = vector.load %arg12[%30, %c0_16] : memref<128x128xbf16, #tpu.memory_space<vmem>>, vector<128x128xbf16>
      tpu.vector_store %arg12[%30, %c0_16], %29 {strides = array<i32>} : memref<128x128xbf16, #tpu.memory_space<vmem>>, vector<128x128xbf16>,
    } else {
    }
    %c1_i32 = arith.constant 1 : i32
    %6 = arith.cmpi eq, %arg0, %c1_i32 : i32
    %7 = arith.extui %6 : i1 to i32
    %c0_i32_2 = arith.constant 0 : i32
    %8 = arith.cmpi ne, %7, %c0_i32_2 : i32
    scf.if %8 {
      %9 = arith.index_cast %1 : i32 to index
      %c0_3 = arith.constant 0 : index
      %10 = vector.load %arg2[%9, %c0_3] : memref<128x128xi8, #tpu.memory_space<vmem>>, vector<128x128xi8>
      %11 = arith.sitofp %10 : vector<128x128xi8> to vector<128x128xbf16>
      %c0_4 = arith.constant 0 : index
      %c0_5 = arith.constant 0 : index
      %12 = vector.load %arg12[%c0_4, %c0_5] : memref<128x128xbf16, #tpu.memory_space<vmem>>, vector<128x128xbf16>
      %cst = arith.constant dense<0.000000e+00> : vector<128x128xf32>
      %13 = tpu.matmul %11, %12, %cst {dimension_numbers = #tpu.dot_dimension_numbers<[1], [0], [0], [1], [0, 0, 1, 1], [], []>} : vector<128x128xbf16>, vector<128x128xbf16>, vector<128x128xf32> -> vector<128x128xf32>
      %14 = vector.broadcast %2 : vector<128x1xf32> to vector<128x128xf32>
      %15 = arith.mulf %13, %14 : vector<128x128xf32>
      %16 = arith.truncf %15 : vector<128x128xf32> to vector<128x128xbf16>
      %c0_6 = arith.constant 0 : index
      %c0_7 = arith.constant 0 : index
      %17 = vector.load %arg8[%c0_6, %c0_7] : memref<128x128xbf16, #tpu.memory_space<vmem>>, vector<128x128xbf16>
      %cst_8 = arith.constant dense<0.000000e+00> : vector<128x128xf32>
      %18 = tpu.matmul %16, %17, %cst_8 {dimension_numbers = #tpu.dot_dimension_numbers<[1], [0], [0], [1], [0, 0, 1, 1], [], []>} : vector<128x128xbf16>, vector<128x128xbf16>, vector<128x128xf32> -> vector<128x128xf32>
      %19 = arith.index_cast %1 : i32 to index
      %c0_9 = arith.constant 0 : index
      %20 = vector.load %arg12[%19, %c0_9] : memref<128x128xbf16, #tpu.memory_space<vmem>>, vector<128x128xbf16>
      %c0_10 = arith.constant 0 : index
      %c0_11 = arith.constant 0 : index
      %21 = vector.load %arg9[%c0_10, %c0_11] : memref<128x128xbf16, #tpu.memory_space<vmem>>, vector<128x128xbf16>
      %cst_12 = arith.constant dense<0.000000e+00> : vector<128x128xf32>
      %22 = tpu.matmul %20, %21, %cst_12 {dimension_numbers = #tpu.dot_dimension_numbers<[1], [0], [0], [1], [0, 0, 1, 1], [], []>} : vector<128x128xbf16>, vector<128x128xbf16>, vector<128x128xf32> -> vector<128x128xf32>
      %23 = arith.addf %18, %22 : vector<128x128xf32>
      %c0_13 = arith.constant 0 : index
      %c0_14 = arith.constant 0 : index
      %24 = vector.load %arg10[%c0_13, %c0_14] : memref<1x128xf32, #tpu.memory_space<vmem>>, vector<1x128xf32>
      %25 = vector.broadcast %24 : vector<1x128xf32> to vector<128x128xf32>
      %26 = arith.addf %23, %25 : vector<128x128xf32>
      %27 = arith.truncf %26 : vector<128x128xf32> to vector<128x128xbf16>
      %c0_15 = arith.constant 0 : index
      %c0_16 = arith.constant 0 : index
      %28 = vector.load %arg11[%c0_15, %c0_16] : memref<128x128xbf16, #tpu.memory_space<vmem>>, vector<128x128xbf16>
      tpu.vector_store %arg11[%c0_15, %c0_16], %27 {strides = array<i32>} : memref<128x128xbf16, #tpu.memory_space<vmem>>, vector<128x128xbf16>,
    } else {
    }
    return
  }
  func.func @transform_0(%arg0: i32, %arg1: i32) -> (i32, i32) {
    %c0_i32 = arith.constant 0 : i32
    %c0_i32_0 = arith.constant 0 : i32
    %c0_i32_1 = arith.constant 0 : i32
    return %c0_i32, %c0_i32_0 : i32, i32
  }
  func.func @transform_1(%arg0: i32, %arg1: i32) -> (i32, i32) {
    %c0_i32 = arith.constant 0 : i32
    %c0_i32_0 = arith.constant 0 : i32
    %c0_i32_1 = arith.constant 0 : i32
    return %c0_i32, %c0_i32_0 : i32, i32
  }
  func.func @transform_2(%arg0: i32, %arg1: i32) -> (i32, i32) {
    %c0_i32 = arith.constant 0 : i32
    %c0_i32_0 = arith.constant 0 : i32
    return %arg1, %c0_i32 : i32, i32
  }
  func.func @transform_3(%arg0: i32, %arg1: i32) -> (i32, i32) {
    %c0_i32 = arith.constant 0 : i32
    %c0_i32_0 = arith.constant 0 : i32
    %c0_i32_1 = arith.constant 0 : i32
    return %c0_i32, %c0_i32_0 : i32, i32
  }
  func.func @transform_4(%arg0: i32, %arg1: i32) -> (i32, i32) {
    %c0_i32 = arith.constant 0 : i32
    %c0_i32_0 = arith.constant 0 : i32
    %c0_i32_1 = arith.constant 0 : i32
    return %c0_i32, %c0_i32_0 : i32, i32
  }
  func.func @transform_5(%arg0: i32, %arg1: i32) -> (i32, i32) {
    %c0_i32 = arith.constant 0 : i32
    %c0_i32_0 = arith.constant 0 : i32
    %c0_i32_1 = arith.constant 0 : i32
    return %c0_i32, %c0_i32_0 : i32, i32
  }
  func.func @transform_6(%arg0: i32, %arg1: i32) -> (i32, i32) {
    %c0_i32 = arith.constant 0 : i32
    %c0_i32_0 = arith.constant 0 : i32
    %c0_i32_1 = arith.constant 0 : i32
    return %c0_i32, %c0_i32_0 : i32, i32
  }
  func.func @transform_7(%arg0: i32, %arg1: i32) -> (i32, i32) {
    %c0_i32 = arith.constant 0 : i32
    %c0_i32_0 = arith.constant 0 : i32
    %c0_i32_1 = arith.constant 0 : i32
    return %c0_i32, %c0_i32_0 : i32, i32
  }
  func.func @transform_8(%arg0: i32, %arg1: i32) -> (i32, i32) {
    %c0_i32 = arith.constant 0 : i32
    %c0_i32_0 = arith.constant 0 : i32
    %c0_i32_1 = arith.constant 0 : i32
    return %c0_i32, %c0_i32_0 : i32, i32
  }
  func.func @transform_9(%arg0: i32, %arg1: i32) -> (i32, i32) {
    %0 = arith.muli %arg0, %arg1 : i32
    %c0_i32 = arith.constant 0 : i32
    %c0_i32_0 = arith.constant 0 : i32
    return %0, %c0_i32 : i32, i32
  }
}

module attributes {stable_mosaic.version = 11 : i64} {
  func.func @fused_sage2_kernel(%arg0: i32, %arg1: i32, %arg2: memref<128x128xi8, #tpu.memory_space<vmem>>, %arg3: memref<128x128xbf16, #tpu.memory_space<vmem>>, %arg4: memref<128x1xf32, #tpu.memory_space<vmem>>, %arg5: memref<128x128xbf16, #tpu.memory_space<vmem>>, %arg6: memref<128x128xbf16, #tpu.memory_space<vmem>>, %arg7: memref<1x128xf32, #tpu.memory_space<vmem>>, %arg8: memref<128x128xbf16, #tpu.memory_space<vmem>>, %arg9: memref<128x128xbf16, #tpu.memory_space<vmem>>, %arg10: memref<1x128xf32, #tpu.memory_space<vmem>>, %arg11: memref<128x128xbf16, #tpu.memory_space<vmem>>, %arg12: memref<128x128xbf16, #tpu.memory_space<vmem>>) attributes {dimension_semantics = [#tpu.dimension_semantics<arbitrary>, #tpu.dimension_semantics<arbitrary>], iteration_bounds = array<i64: 2, 1>, scalar_prefetch = 0 : i64, scratch_operands = 1 : i64, tpu.core_type = #tpu.core_type<tc>, window_params = [{pipeline_mode = #tpu.pipeline_mode<synchronous>, transform_indices = @transform_0, window_bounds = array<i64: 128, 128>}, {pipeline_mode = #tpu.pipeline_mode<synchronous>, transform_indices = @transform_1, window_bounds = array<i64: 128, 128>}, {transform_indices = @transform_2, window_bounds = array<i64: 128, 1>}, {pipeline_mode = #tpu.pipeline_mode<synchronous>, transform_indices = @transform_3, window_bounds = array<i64: 128, 128>}, {pipeline_mode = #tpu.pipeline_mode<synchronous>, transform_indices = @transform_4, window_bounds = array<i64: 128, 128>}, {pipeline_mode = #tpu.pipeline_mode<synchronous>, transform_indices = @transform_5, window_bounds = array<i64: 1, 128>}, {pipeline_mode = #tpu.pipeline_mode<synchronous>, transform_indices = @transform_6, window_bounds = array<i64: 128, 128>}, {pipeline_mode = #tpu.pipeline_mode<synchronous>, transform_indices = @transform_7, window_bounds = array<i64: 128, 128>}, {pipeline_mode = #tpu.pipeline_mode<synchronous>, transform_indices = @transform_8, window_bounds = array<i64: 1, 128>}, {transform_indices = @transform_9, window_bounds = array<i64: 128, 128>}]} {
    %c128_i32 = arith.constant 128 : i32
    %0 = arith.muli %arg1, %c128_i32 : i32
    %1 = tpu.assume_multiple %0, 128 : i32
    %c0 = arith.constant 0 : index
    %c0_0 = arith.constant 0 : index
    %2 = vector.load %arg4[%c0, %c0_0] : memref<128x1xf32, #tpu.memory_space<vmem>>, vector<128x1xf32>
    %c0_i32 = arith.constant 0 : i32
    %3 = arith.cmpi eq, %arg0, %c0_i32 : i32
    %4 = arith.extui %3 : i1 to i32
    %c0_i32_1 = arith.constant 0 : i32
    %5 = arith.cmpi ne, %4, %c0_i32_1 : i32
    scf.if %5 {
      %9 = arith.index_cast %1 : i32 to index
      %c0_3 = arith.constant 0 : index
      %10 = vector.load %arg2[%9, %c0_3] : memref<128x128xi8, #tpu.memory_space<vmem>>, vector<128x128xi8>
      %11 = arith.sitofp %10 : vector<128x128xi8> to vector<128x128xbf16>
      %c0_4 = arith.constant 0 : index
      %c0_5 = arith.constant 0 : index
      %12 = vector.load %arg3[%c0_4, %c0_5] : memref<128x128xbf16, #tpu.memory_space<vmem>>, vector<128x128xbf16>
      %cst = arith.constant dense<0.000000e+00> : vector<128x128xf32>
      %13 = tpu.matmul %11, %12, %cst {dimension_numbers = #tpu.dot_dimension_numbers<[1], [0], [0], [1], [0, 0, 1, 1], [], []>} : vector<128x128xbf16>, vector<128x128xbf16>, vector<128x128xf32> -> vector<128x128xf32>
      %14 = vector.broadcast %2 : vector<128x1xf32> to vector<128x128xf32>
      %15 = arith.mulf %13, %14 : vector<128x128xf32>
      %16 = arith.truncf %15 : vector<128x128xf32> to vector<128x128xbf16>
      %c0_6 = arith.constant 0 : index
      %c0_7 = arith.constant 0 : index
      %17 = vector.load %arg5[%c0_6, %c0_7] : memref<128x128xbf16, #tpu.memory_space<vmem>>, vector<128x128xbf16>
      %cst_8 = arith.constant dense<0.000000e+00> : vector<128x128xf32>
      %18 = tpu.matmul %16, %17, %cst_8 {dimension_numbers = #tpu.dot_dimension_numbers<[1], [0], [0], [1], [0, 0, 1, 1], [], []>} : vector<128x128xbf16>, vector<128x128xbf16>, vector<128x128xf32> -> vector<128x128xf32>
      %19 = arith.index_cast %1 : i32 to index
      %c0_9 = arith.constant 0 : index
      %20 = vector.load %arg3[%19, %c0_9] : memref<128x128xbf16, #tpu.memory_space<vmem>>, vector<128x128xbf16>
      %c0_10 = arith.constant 0 : index
      %c0_11 = arith.constant 0 : index
      %21 = vector.load %arg6[%c0_10, %c0_11] : memref<128x128xbf16, #tpu.memory_space<vmem>>, vector<128x128xbf16>
      %cst_12 = arith.constant dense<0.000000e+00> : vector<128x128xf32>
      %22 = tpu.matmul %20, %21, %cst_12 {dimension_numbers = #tpu.dot_dimension_numbers<[1], [0], [0], [1], [0, 0, 1, 1], [], []>} : vector<128x128xbf16>, vector<128x128xbf16>, vector<128x128xf32> -> vector<128x128xf32>
      %23 = arith.addf %18, %22 : vector<128x128xf32>
      %c0_13 = arith.constant 0 : index
      %c0_14 = arith.constant 0 : index
      %24 = vector.load %arg7[%c0_13, %c0_14] : memref<1x128xf32, #tpu.memory_space<vmem>>, vector<1x128xf32>
      %25 = vector.broadcast %24 : vector<1x128xf32> to vector<128x128xf32>
      %26 = arith.addf %23, %25 : vector<128x128xf32>
      %cst_15 = arith.constant 0.000000e+00 : f32
      %27 = vector.broadcast %cst_15 : f32 to vector<128x128xf32>
      %28 = arith.maximumf %26, %27 : vector<128x128xf32>
      %29 = arith.truncf %28 : vector<128x128xf32> to vector<128x128xbf16>
      %30 = arith.index_cast %1 : i32 to index
      %c0_16 = arith.constant 0 : index
      %31 = vector.load %arg12[%30, %c0_16] : memref<128x128xbf16, #tpu.memory_space<vmem>>, vector<128x128xbf16>
      tpu.vector_store %arg12[%30, %c0_16], %29 {strides = array<i32>} : memref<128x128xbf16, #tpu.memory_space<vmem>>, vector<128x128xbf16>,
    } else {
    }
    %c1_i32 = arith.constant 1 : i32
    %6 = arith.cmpi eq, %arg0, %c1_i32 : i32
    %7 = arith.extui %6 : i1 to i32
    %c0_i32_2 = arith.constant 0 : i32
    %8 = arith.cmpi ne, %7, %c0_i32_2 : i32
    scf.if %8 {
      %9 = arith.index_cast %1 : i32 to index
      %c0_3 = arith.constant 0 : index
      %10 = vector.load %arg2[%9, %c0_3] : memref<128x128xi8, #tpu.memory_space<vmem>>, vector<128x128xi8>
      %11 = arith.sitofp %10 : vector<128x128xi8> to vector<128x128xbf16>
      %c0_4 = arith.constant 0 : index
      %c0_5 = arith.constant 0 : index
      %12 = vector.load %arg12[%c0_4, %c0_5] : memref<128x128xbf16, #tpu.memory_space<vmem>>, vector<128x128xbf16>
      %cst = arith.constant dense<0.000000e+00> : vector<128x128xf32>
      %13 = tpu.matmul %11, %12, %cst {dimension_numbers = #tpu.dot_dimension_numbers<[1], [0], [0], [1], [0, 0, 1, 1], [], []>} : vector<128x128xbf16>, vector<128x128xbf16>, vector<128x128xf32> -> vector<128x128xf32>
      %14 = vector.broadcast %2 : vector<128x1xf32> to vector<128x128xf32>
      %15 = arith.mulf %13, %14 : vector<128x128xf32>
      %16 = arith.truncf %15 : vector<128x128xf32> to vector<128x128xbf16>
      %c0_6 = arith.constant 0 : index
      %c0_7 = arith.constant 0 : index
      %17 = vector.load %arg8[%c0_6, %c0_7] : memref<128x128xbf16, #tpu.memory_space<vmem>>, vector<128x128xbf16>
      %cst_8 = arith.constant dense<0.000000e+00> : vector<128x128xf32>
      %18 = tpu.matmul %16, %17, %cst_8 {dimension_numbers = #tpu.dot_dimension_numbers<[1], [0], [0], [1], [0, 0, 1, 1], [], []>} : vector<128x128xbf16>, vector<128x128xbf16>, vector<128x128xf32> -> vector<128x128xf32>
      %19 = arith.index_cast %1 : i32 to index
      %c0_9 = arith.constant 0 : index
      %20 = vector.load %arg12[%19, %c0_9] : memref<128x128xbf16, #tpu.memory_space<vmem>>, vector<128x128xbf16>
      %c0_10 = arith.constant 0 : index
      %c0_11 = arith.constant 0 : index
      %21 = vector.load %arg9[%c0_10, %c0_11] : memref<128x128xbf16, #tpu.memory_space<vmem>>, vector<128x128xbf16>
      %cst_12 = arith.constant dense<0.000000e+00> : vector<128x128xf32>
      %22 = tpu.matmul %20, %21, %cst_12 {dimension_numbers = #tpu.dot_dimension_numbers<[1], [0], [0], [1], [0, 0, 1, 1], [], []>} : vector<128x128xbf16>, vector<128x128xbf16>, vector<128x128xf32> -> vector<128x128xf32>
      %23 = arith.addf %18, %22 : vector<128x128xf32>
      %c0_13 = arith.constant 0 : index
      %c0_14 = arith.constant 0 : index
      %24 = vector.load %arg10[%c0_13, %c0_14] : memref<1x128xf32, #tpu.memory_space<vmem>>, vector<1x128xf32>
      %25 = vector.broadcast %24 : vector<1x128xf32> to vector<128x128xf32>
      %26 = arith.addf %23, %25 : vector<128x128xf32>
      %27 = arith.truncf %26 : vector<128x128xf32> to vector<128x128xbf16>
      %c0_15 = arith.constant 0 : index
      %c0_16 = arith.constant 0 : index
      %28 = vector.load %arg11[%c0_15, %c0_16] : memref<128x128xbf16, #tpu.memory_space<vmem>>, vector<128x128xbf16>
      tpu.vector_store %arg11[%c0_15, %c0_16], %27 {strides = array<i32>} : memref<128x128xbf16, #tpu.memory_space<vmem>>, vector<128x128xbf16>,
    } else {
    }
    return
  }
  func.func @transform_0(%arg0: i32, %arg1: i32) -> (i32, i32) {
    %c0_i32 = arith.constant 0 : i32
    %c0_i32_0 = arith.constant 0 : i32
    %c0_i32_1 = arith.constant 0 : i32
    return %c0_i32, %c0_i32_0 : i32, i32
  }
  func.func @transform_1(%arg0: i32, %arg1: i32) -> (i32, i32) {
    %c0_i32 = arith.constant 0 : i32
    %c0_i32_0 = arith.constant 0 : i32
    %c0_i32_1 = arith.constant 0 : i32
    return %c0_i32, %c0_i32_0 : i32, i32
  }
  func.func @transform_2(%arg0: i32, %arg1: i32) -> (i32, i32) {
    %c0_i32 = arith.constant 0 : i32
    %c0_i32_0 = arith.constant 0 : i32
    return %arg1, %c0_i32 : i32, i32
  }
  func.func @transform_3(%arg0: i32, %arg1: i32) -> (i32, i32) {
    %c0_i32 = arith.constant 0 : i32
    %c0_i32_0 = arith.constant 0 : i32
    %c0_i32_1 = arith.constant 0 : i32
    return %c0_i32, %c0_i32_0 : i32, i32
  }
  func.func @transform_4(%arg0: i32, %arg1: i32) -> (i32, i32) {
    %c0_i32 = arith.constant 0 : i32
    %c0_i32_0 = arith.constant 0 : i32
    %c0_i32_1 = arith.constant 0 : i32
    return %c0_i32, %c0_i32_0 : i32, i32
  }
  func.func @transform_5(%arg0: i32, %arg1: i32) -> (i32, i32) {
    %c0_i32 = arith.constant 0 : i32
    %c0_i32_0 = arith.constant 0 : i32
    %c0_i32_1 = arith.constant 0 : i32
    return %c0_i32, %c0_i32_0 : i32, i32
  }
  func.func @transform_6(%arg0: i32, %arg1: i32) -> (i32, i32) {
    %c0_i32 = arith.constant 0 : i32
    %c0_i32_0 = arith.constant 0 : i32
    %c0_i32_1 = arith.constant 0 : i32
    return %c0_i32, %c0_i32_0 : i32, i32
  }
  func.func @transform_7(%arg0: i32, %arg1: i32) -> (i32, i32) {
    %c0_i32 = arith.constant 0 : i32
    %c0_i32_0 = arith.constant 0 : i32
    %c0_i32_1 = arith.constant 0 : i32
    return %c0_i32, %c0_i32_0 : i32, i32
  }
  func.func @transform_8(%arg0: i32, %arg1: i32) -> (i32, i32) {
    %c0_i32 = arith.constant 0 : i32
    %c0_i32_0 = arith.constant 0 : i32
    %c0_i32_1 = arith.constant 0 : i32
    return %c0_i32, %c0_i32_0 : i32, i32
  }
  func.func @transform_9(%arg0: i32, %arg1: i32) -> (i32, i32) {
    %0 = arith.muli %arg0, %arg1 : i32
    %c0_i32 = arith.constant 0 : i32
    %c0_i32_0 = arith.constant 0 : i32
    return %0, %c0_i32 : i32, i32
  }
}

</mosaic_0001>

<llo_original>
// kernel: tpu_custom_call.1
$region0: #{tpu_custom_call.1}
  #allocation0 [shape = 'u32[]', space=smem, size = 0x4, offset = 0x4, fixed_abs, tag = 'smem constant byte address 0x4 - core index']
  #allocation1 [shape = 'u32[144,128]{1,0:T(1,128)}', space=vmem, size = 0x12000, scoped, tag = 'internal scratch']
  #allocation2 [shape = 'bf16[128,128]{1,0:T(16,128)(2,1)}', space=vmem, size = 0x8000, scoped, tag = 'scratch operand']
  %s0 = inlined_call_operand.hbm [shape: s8[128,128], index: 0, kind: input, shape index: {}]
  %s1 = inlined_call_operand.vmem [shape: bf16[128,128], index: 1, kind: input, shape index: {}]
  %s2 = inlined_call_operand.vmem [shape: f32[128,1], index: 2, kind: input, shape index: {}]
  %s3 = inlined_call_operand.vmem [shape: bf16[128,128], index: 3, kind: input, shape index: {}]
  %s4 = inlined_call_operand.hbm [shape: bf16[128,128], index: 4, kind: input, shape index: {}]
  %s5 = inlined_call_operand.vmem [shape: f32[1,128], index: 5, kind: input, shape index: {}]
  %s6 = inlined_call_operand.hbm [shape: bf16[128,128], index: 6, kind: input, shape index: {}]
  %s7 = inlined_call_operand.hbm [shape: bf16[128,128], index: 7, kind: input, shape index: {}]
  %s8 = inlined_call_operand.vmem [shape: f32[1,128], index: 8, kind: input, shape index: {}]
  %s9 = inlined_call_operand.hbm [shape: bf16[128,128], index: 9, kind: output, shape index: {}]
  %s10 = sld [smem:[#allocation0]]
  $region93: #{tpu_custom_call.1} parent=0
    _
  %s12 = ssub.s32 1, %s10
  %s13 = scalar_select 0, %s12, %s10
  $region1: #{tpu_custom_call.1} parent=0
    #allocation3 [shape = 'u8[16384]{0}', space=vmem, size = 0x4000, scoped, tag = 'input window, operand 0, single buffered']
    #allocation4 [shape = 's32[2]{0}', space=sflag, size = 0x8, scoped, tag = 'scoped memory for tpu_custom_call.1']
    #allocation5 [shape = 's32[2]{0}', space=sflag, size = 0x8, scoped, tag = 'scoped memory for tpu_custom_call.1']
    #allocation6 [shape = 'u8[32768]{0}', space=vmem, size = 0x8000, scoped, tag = 'input window, operand 4, single buffered']
    #allocation7 [shape = 's32[1]{0}', space=sflag, size = 0x4, scoped, tag = 'scoped memory for tpu_custom_call.1']
    #allocation8 [shape = 'u8[32768]{0}', space=vmem, size = 0x8000, scoped, tag = 'input window, operand 6, single buffered']
    #allocation9 [shape = 'u8[32768]{0}', space=vmem, size = 0x8000, scoped, tag = 'input window, operand 7, single buffered']
    #allocation10 [shape = 's32[1]{0}', space=sflag, size = 0x4, scoped, tag = 'scoped memory for tpu_custom_call.1']
    #allocation11 [shape = 'u8[65536]{0}', space=vmem, size = 0x10000, scoped, tag = 'output window, operand 0']
    %14 = vsyncpa [#allocation4], 0
    %15 = vsyncpa [#allocation7], 0
    %16 = vsyncpa [#allocation10], 0
    %17 = vsyncpa [#allocation5], 0
    %s18 = scalar_lea.sflag [#allocation5], 1
    %19 = vsyncpa %s18, 0
    loop: start=0, step=1, limit=4
    $region2: #{tpu_custom_call.1} parent=1 // loop_pre_header
      _
    $region3: #{tpu_custom_call.1} parent=1 // loop_header
      %s21 = sphi 0, %s25
      %p22 = scmp.ge.s32.totalorder %s21, 4
      %s28 = sphi 0, %s40
      %s29 = sphi 0, %s36
      %s30 = sphi 0, %s28
      %s31 = sphi 0, %s29
      %s32 = sphi 0, %s30
      %s33 = sphi 0, %s31
      %s41 = sphi 0, %s41
      %s43 = sphi 0, %s41
      %s44 = sphi 0, %s43
      %s58 = sphi 0, %s44
      %s62 = sphi 0, %s62
      %s64 = sphi 0, %s62
      %s65 = sphi 0, %s64
      %s79 = sphi 0, %s65
      %s85 = sphi 0, %s87
      %s88 = sphi 0, %s85
      %s89 = sphi 0, %s88
      %s105 = sphi 0, %s89
      %s109 = sphi 0, %s109
      %s111 = sphi 0, %s109
      %s112 = sphi 0, %s111
      %s126 = sphi 0, %s112
      %s130 = sphi 0, %s130
      %s132 = sphi 0, %s130
      %s133 = sphi 0, %s132
      %s147 = sphi 0, %s133
      %s151 = sphi 0, %s151
      %s153 = sphi 0, %s151
      %s154 = sphi 0, %s153
      %s168 = sphi 0, %s154
      %s172 = sphi 0, %s172
      %s174 = sphi 0, %s172
      %s175 = sphi 0, %s174
      %s189 = sphi 0, %s175
      %s193 = sphi 0, %s193
      %s195 = sphi 0, %s193
      %s196 = sphi 0, %s195
      %s210 = sphi 0, %s196
      %s214 = sphi 0, %s214
      %s216 = sphi 0, %s214
      %s217 = sphi 0, %s216
      %s231 = sphi 0, %s217
      %s239 = sphi 0, %s241
      %s242 = sphi 0, %s239
      %s243 = sphi 0, %s242
      %s259 = sphi 0, %s243
    $region4: #{tpu_custom_call.1} parent=1 // loop_header_branch
      %24 = sbr.rel (%p22) target = $region8
    $region5: #{tpu_custom_call.1} parent=1 // loop_body
      %s26 = ssub.s32 %s21, 1
      %s27 = ssub.s32 %s21, 2
      %s34 = sadd.s32 1, %s29
      %p35 = scmp.ge.s32.totalorder %s34, 1
      %s36 = scalar_select %p35, 0, %s34
      %s37 = sadd.s32 1, %s28
      %s38 = scalar_select %p35, %s37, %s28
      %p39 = scmp.ge.s32.totalorder %s38, 2
      %s40 = scalar_select %p39, 0, %s38
      %s42 = sadd.s32 %s41, 1
      %p45 = scmp.eq.s32.totalorder %s21, 1
      %p46 = scmp.ne.s32.totalorder %s41, %s43
      %p47 = scmp.eq.s32.totalorder %s21, 0
      %p48 = por %p46, %p47
      %p49 = scmp.ne.s32.totalorder %s41, %s43
      %p50 = scmp.eq.s32.totalorder %s26, 1
      %p51 = por %p49, %p50
      %p52 = scmp.ne.s32.totalorder %s43, %s44
      %p53 = scmp.eq.s32.totalorder %s26, 0
      %p54 = por %p52, %p53
      %p55 = scmp.ne.s32.totalorder %s43, %s44
      %p56 = scmp.eq.s32.totalorder %s27, 1
      %p57 = por %p55, %p56
      %p59 = scmp.ne.s32.totalorder %s44, %s58
      %p60 = scmp.eq.s32.totalorder %s27, 0
      %p61 = por %p59, %p60
      %s63 = sadd.s32 %s62, 1
      %p66 = scmp.eq.s32.totalorder %s21, 1
      %p67 = scmp.ne.s32.totalorder %s62, %s64
      %p68 = scmp.eq.s32.totalorder %s21, 0
      %p69 = por %p67, %p68
      %p70 = scmp.ne.s32.totalorder %s62, %s64
      %p71 = scmp.eq.s32.totalorder %s26, 1
      %p72 = por %p70, %p71
      %p73 = scmp.ne.s32.totalorder %s64, %s65
      %p74 = scmp.eq.s32.totalorder %s26, 0
      %p75 = por %p73, %p74
      %p76 = scmp.ne.s32.totalorder %s64, %s65
      %p77 = scmp.eq.s32.totalorder %s27, 1
      %p78 = por %p76, %p77
      %p80 = scmp.ne.s32.totalorder %s65, %s79
      %p81 = scmp.eq.s32.totalorder %s27, 0
      %p82 = por %p80, %p81
      %s83 = ssub.s32 %s29, %s36
      %p84 = scmp.eq.s32.totalorder %s83, 0
      %s86 = sadd.s32 %s85, 1
      %s87 = scalar_select %p84, %s85, %s86
      %p90 = pneg %p84
      %p91 = scmp.eq.s32.totalorder %s21, 1
      %p92 = por %p90, %p91
      %p93 = scmp.ne.s32.totalorder %s85, %s88
      %p94 = scmp.eq.s32.totalorder %s21, 0
      %p95 = por %p93, %p94
      %p96 = scmp.ne.s32.totalorder %s85, %s88
      %p97 = scmp.eq.s32.totalorder %s26, 1
      %p98 = por %p96, %p97
      %p99 = scmp.ne.s32.totalorder %s88, %s89
      %p100 = scmp.eq.s32.totalorder %s26, 0
      %p101 = por %p99, %p100
      %p102 = scmp.ne.s32.totalorder %s88, %s89
      %p103 = scmp.eq.s32.totalorder %s27, 1
      %p104 = por %p102, %p103
      %p106 = scmp.ne.s32.totalorder %s89, %s105
      %p107 = scmp.eq.s32.totalorder %s27, 0
      %p108 = por %p106, %p107
      %s110 = sadd.s32 %s109, 1
      %p113 = scmp.eq.s32.totalorder %s21, 1
      %p114 = scmp.ne.s32.totalorder %s109, %s111
      %p115 = scmp.eq.s32.totalorder %s21, 0
      %p116 = por %p114, %p115
      %p117 = scmp.ne.s32.totalorder %s109, %s111
      %p118 = scmp.eq.s32.totalorder %s26, 1
      %p119 = por %p117, %p118
      %p120 = scmp.ne.s32.totalorder %s111, %s112
      %p121 = scmp.eq.s32.totalorder %s26, 0
      %p122 = por %p120, %p121
      %p123 = scmp.ne.s32.totalorder %s111, %s112
      %p124 = scmp.eq.s32.totalorder %s27, 1
      %p125 = por %p123, %p124
      %p127 = scmp.ne.s32.totalorder %s112, %s126
      %p128 = scmp.eq.s32.totalorder %s27, 0
      %p129 = por %p127, %p128
      %s131 = sadd.s32 %s130, 1
      %p134 = scmp.eq.s32.totalorder %s21, 1
      %p135 = scmp.ne.s32.totalorder %s130, %s132
      %p136 = scmp.eq.s32.totalorder %s21, 0
      %p137 = por %p135, %p136
      %p138 = scmp.ne.s32.totalorder %s130, %s132
      %p139 = scmp.eq.s32.totalorder %s26, 1
      %p140 = por %p138, %p139
      %p141 = scmp.ne.s32.totalorder %s132, %s133
      %p142 = scmp.eq.s32.totalorder %s26, 0
      %p143 = por %p141, %p142
      %p144 = scmp.ne.s32.totalorder %s132, %s133
      %p145 = scmp.eq.s32.totalorder %s27, 1
      %p146 = por %p144, %p145
      %p148 = scmp.ne.s32.totalorder %s133, %s147
      %p149 = scmp.eq.s32.totalorder %s27, 0
      %p150 = por %p148, %p149
      %s152 = sadd.s32 %s151, 1
      %p155 = scmp.eq.s32.totalorder %s21, 1
      %p156 = scmp.ne.s32.totalorder %s151, %s153
      %p157 = scmp.eq.s32.totalorder %s21, 0
      %p158 = por %p156, %p157
      %p159 = scmp.ne.s32.totalorder %s151, %s153
      %p160 = scmp.eq.s32.totalorder %s26, 1
      %p161 = por %p159, %p160
      %p162 = scmp.ne.s32.totalorder %s153, %s154
      %p163 = scmp.eq.s32.totalorder %s26, 0
      %p164 = por %p162, %p163
      %p165 = scmp.ne.s32.totalorder %s153, %s154
      %p166 = scmp.eq.s32.totalorder %s27, 1
      %p167 = por %p165, %p166
      %p169 = scmp.ne.s32.totalorder %s154, %s168
      %p170 = scmp.eq.s32.totalorder %s27, 0
      %p171 = por %p169, %p170
      %s173 = sadd.s32 %s172, 1
      %p176 = scmp.eq.s32.totalorder %s21, 1
      %p177 = scmp.ne.s32.totalorder %s172, %s174
      %p178 = scmp.eq.s32.totalorder %s21, 0
      %p179 = por %p177, %p178
      %p180 = scmp.ne.s32.totalorder %s172, %s174
      %p181 = scmp.eq.s32.totalorder %s26, 1
      %p182 = por %p180, %p181
      %p183 = scmp.ne.s32.totalorder %s174, %s175
      %p184 = scmp.eq.s32.totalorder %s26, 0
      %p185 = por %p183, %p184
      %p186 = scmp.ne.s32.totalorder %s174, %s175
      %p187 = scmp.eq.s32.totalorder %s27, 1
      %p188 = por %p186, %p187
      %p190 = scmp.ne.s32.totalorder %s175, %s189
      %p191 = scmp.eq.s32.totalorder %s27, 0
      %p192 = por %p190, %p191
      %s194 = sadd.s32 %s193, 1
      %p197 = scmp.eq.s32.totalorder %s21, 1
      %p198 = scmp.ne.s32.totalorder %s193, %s195
      %p199 = scmp.eq.s32.totalorder %s21, 0
      %p200 = por %p198, %p199
      %p201 = scmp.ne.s32.totalorder %s193, %s195
      %p202 = scmp.eq.s32.totalorder %s26, 1
      %p203 = por %p201, %p202
      %p204 = scmp.ne.s32.totalorder %s195, %s196
      %p205 = scmp.eq.s32.totalorder %s26, 0
      %p206 = por %p204, %p205
      %p207 = scmp.ne.s32.totalorder %s195, %s196
      %p208 = scmp.eq.s32.totalorder %s27, 1
      %p209 = por %p207, %p208
      %p211 = scmp.ne.s32.totalorder %s196, %s210
      %p212 = scmp.eq.s32.totalorder %s27, 0
      %p213 = por %p211, %p212
      %s215 = sadd.s32 %s214, 1
      %p218 = scmp.eq.s32.totalorder %s21, 1
      %p219 = scmp.ne.s32.totalorder %s214, %s216
      %p220 = scmp.eq.s32.totalorder %s21, 0
      %p221 = por %p219, %p220
      %p222 = scmp.ne.s32.totalorder %s214, %s216
      %p223 = scmp.eq.s32.totalorder %s26, 1
      %p224 = por %p222, %p223
      %p225 = scmp.ne.s32.totalorder %s216, %s217
      %p226 = scmp.eq.s32.totalorder %s26, 0
      %p227 = por %p225, %p226
      %p228 = scmp.ne.s32.totalorder %s216, %s217
      %p229 = scmp.eq.s32.totalorder %s27, 1
      %p230 = por %p228, %p229
      %p232 = scmp.ne.s32.totalorder %s217, %s231
      %p233 = scmp.eq.s32.totalorder %s27, 0
      %p234 = por %p232, %p233
      %s235 = smul.u32 %s28, %s29
      %s236 = smul.u32 %s40, %s36
      %s237 = ssub.s32 %s235, %s236
      %p238 = scmp.eq.s32.totalorder %s237, 0
      %s240 = sadd.s32 %s239, 1
      %s241 = scalar_select %p238, %s239, %s240
      %p244 = pneg %p238
      %p245 = scmp.eq.s32.totalorder %s21, 1
      %p246 = por %p244, %p245
      %p247 = scmp.ne.s32.totalorder %s239, %s242
      %p248 = scmp.eq.s32.totalorder %s21, 0
      %p249 = por %p247, %p248
      %p250 = scmp.ne.s32.totalorder %s239, %s242
      %p251 = scmp.eq.s32.totalorder %s26, 1
      %p252 = por %p250, %p251
      %p253 = scmp.ne.s32.totalorder %s242, %s243
      %p254 = scmp.eq.s32.totalorder %s26, 0
      %p255 = por %p253, %p254
      %p256 = scmp.ne.s32.totalorder %s242, %s243
      %p257 = scmp.eq.s32.totalorder %s27, 1
      %p258 = por %p256, %p257
      %p260 = scmp.ne.s32.totalorder %s243, %s259
      %p261 = scmp.eq.s32.totalorder %s27, 0
      %p262 = por %p260, %p261
      %p263 = scmp.le.s32.totalorder 1, %s21
      %p264 = scmp.lt.s32.totalorder %s21, 3
      %p265 = pnand %p263, %p264
      %p266 = pneg %p265
      // Predicated region
      $region9: #{tpu_custom_call.1} parent=5 // pred_check
        _
      $region10: #{tpu_custom_call.1} parent=5 // pred_check_branch
        %268 = sbr.rel (%p265) target = $region12
      $region11: #{tpu_custom_call.1} parent=5 // pred_region
        %s269 = ssub.s32 %s21, 1
        // Predicated region
        $region13: #{tpu_custom_call.1} parent=11 // pred_check
          %p270 = pneg %p54
        $region14: #{tpu_custom_call.1} parent=11 // pred_check_branch
          %272 = sbr.rel (%p270) target = $region16
        $region15: #{tpu_custom_call.1} parent=11 // pred_region
          %s274 = ssub.s32 512, 512
          %275 = vsyncadd [#allocation4], %s274
          %s276 = sshll.u32 [#allocation3], 4
          %s277 = int_to_ptr.vmem [resolvable:$true] %s276
          %282 = dma.hbm_to_vmem [thread:$0]  %s0, 512, %s277, [#allocation4], 128, 128, 8
        $region16: #{tpu_custom_call.1} parent=11 // pred_fallthru
          _
        // Predicated region
        $region17: #{tpu_custom_call.1} parent=11 // pred_check
          %p283 = pneg %p75
        $region18: #{tpu_custom_call.1} parent=11 // pred_check_branch
          %285 = sbr.rel (%p283) target = $region20
        $region19: #{tpu_custom_call.1} parent=11 // pred_region
          _
        $region20: #{tpu_custom_call.1} parent=11 // pred_fallthru
          _
        // Predicated region
        $region21: #{tpu_custom_call.1} parent=11 // pred_check
          %p286 = pneg %p101
        $region22: #{tpu_custom_call.1} parent=11 // pred_check_branch
          %288 = sbr.rel (%p286) target = $region24
        $region23: #{tpu_custom_call.1} parent=11 // pred_region
          %s289 = smul.u32 16, %s31
          %p290 = scmp.lt.s32.totalorder %s289, 15
          %s291 = scalar_select %p290, %s289, 15
          %s292 = smul.addr %s291, 8
          %s293 = scalar_lea.vmem %s2, %s292
          %s294 = smul.u32 16, %s31
        $region24: #{tpu_custom_call.1} parent=11 // pred_fallthru
          _
        // Predicated region
        $region25: #{tpu_custom_call.1} parent=11 // pred_check
          %p295 = pneg %p122
        $region26: #{tpu_custom_call.1} parent=11 // pred_check_branch
          %297 = sbr.rel (%p295) target = $region28
        $region27: #{tpu_custom_call.1} parent=11 // pred_region
          _
        $region28: #{tpu_custom_call.1} parent=11 // pred_fallthru
          _
        // Predicated region
        $region29: #{tpu_custom_call.1} parent=11 // pred_check
          %p298 = pneg %p143
        $region30: #{tpu_custom_call.1} parent=11 // pred_check_branch
          %300 = sbr.rel (%p298) target = $region32
        $region31: #{tpu_custom_call.1} parent=11 // pred_region
          %s302 = ssub.s32 1024, 1024
          %303 = vsyncadd [#allocation7], %s302
          %s304 = sshll.u32 [#allocation6], 4
          %s305 = int_to_ptr.vmem [resolvable:$true] %s304
          %310 = dma.hbm_to_vmem [thread:$0]  %s4, 1024, %s305, [#allocation7], 64, 64, 4
        $region32: #{tpu_custom_call.1} parent=11 // pred_fallthru
          _
        // Predicated region
        $region33: #{tpu_custom_call.1} parent=11 // pred_check
          %p311 = pneg %p164
        $region34: #{tpu_custom_call.1} parent=11 // pred_check_branch
          %313 = sbr.rel (%p311) target = $region36
        $region35: #{tpu_custom_call.1} parent=11 // pred_region
          _
        $region36: #{tpu_custom_call.1} parent=11 // pred_fallthru
          _
        // Predicated region
        $region37: #{tpu_custom_call.1} parent=11 // pred_check
          %p314 = pneg %p185
        $region38: #{tpu_custom_call.1} parent=11 // pred_check_branch
          %316 = sbr.rel (%p314) target = $region40
        $region39: #{tpu_custom_call.1} parent=11 // pred_region
          %s318 = ssub.s32 1024, 1024
          %319 = vsyncadd [#allocation7], %s318
          %s320 = sshll.u32 [#allocation8], 4
          %s321 = int_to_ptr.vmem [resolvable:$true] %s320
          %326 = dma.hbm_to_vmem [thread:$0]  %s6, 1024, %s321, [#allocation7], 64, 64, 4
        $region40: #{tpu_custom_call.1} parent=11 // pred_fallthru
          _
        // Predicated region
        $region41: #{tpu_custom_call.1} parent=11 // pred_check
          %p327 = pneg %p206
        $region42: #{tpu_custom_call.1} parent=11 // pred_check_branch
          %329 = sbr.rel (%p327) target = $region44
        $region43: #{tpu_custom_call.1} parent=11 // pred_region
          %s331 = ssub.s32 1024, 1024
          %332 = vsyncadd [#allocation10], %s331
          %s333 = sshll.u32 [#allocation9], 4
          %s334 = int_to_ptr.vmem [resolvable:$true] %s333
          %339 = dma.hbm_to_vmem [thread:$0]  %s7, 1024, %s334, [#allocation10], 64, 64, 4
        $region44: #{tpu_custom_call.1} parent=11 // pred_fallthru
          _
        // Predicated region
        $region45: #{tpu_custom_call.1} parent=11 // pred_check
          %p340 = pneg %p227
        $region46: #{tpu_custom_call.1} parent=11 // pred_check_branch
          %342 = sbr.rel (%p340) target = $region48
        $region47: #{tpu_custom_call.1} parent=11 // pred_region
          _
        $region48: #{tpu_custom_call.1} parent=11 // pred_fallthru
          _
      $region12: #{tpu_custom_call.1} parent=5 // pred_fallthru
        _
      %p343 = scmp.lt.s32.totalorder %s21, 2
      // Predicated region
      $region49: #{tpu_custom_call.1} parent=5 // pred_check
        %p344 = pneg %p343
      $region50: #{tpu_custom_call.1} parent=5 // pred_check_branch
        %346 = sbr.rel (%p344) target = $region52
      $region51: #{tpu_custom_call.1} parent=5 // pred_region
        _
      $region52: #{tpu_custom_call.1} parent=5 // pred_fallthru
        _
      %p347 = scmp.le.s32.totalorder 1, %s21
      %p348 = scmp.lt.s32.totalorder %s21, 3
      %p349 = pnand %p347, %p348
      %p350 = pneg %p349
      // Predicated region
      $region53: #{tpu_custom_call.1} parent=5 // pred_check
        _
      $region54: #{tpu_custom_call.1} parent=5 // pred_check_branch
        %352 = sbr.rel (%p349) target = $region56
      $region55: #{tpu_custom_call.1} parent=5 // pred_region
        %s353 = ssub.s32 %s21, 1
        // Predicated region
        $region57: #{tpu_custom_call.1} parent=55 // pred_check
          %p354 = pneg %p54
        $region58: #{tpu_custom_call.1} parent=55 // pred_check_branch
          %356 = sbr.rel (%p354) target = $region60
        $region59: #{tpu_custom_call.1} parent=55 // pred_region
          %357 = dma.done [#allocation4], 512
        $region60: #{tpu_custom_call.1} parent=55 // pred_fallthru
          _
        // Predicated region
        $region61: #{tpu_custom_call.1} parent=55 // pred_check
          %p358 = pneg %p143
        $region62: #{tpu_custom_call.1} parent=55 // pred_check_branch
          %360 = sbr.rel (%p358) target = $region64
        $region63: #{tpu_custom_call.1} parent=55 // pred_region
          %361 = dma.done [#allocation7], 1024
        $region64: #{tpu_custom_call.1} parent=55 // pred_fallthru
          _
        // Predicated region
        $region65: #{tpu_custom_call.1} parent=55 // pred_check
          %p362 = pneg %p185
        $region66: #{tpu_custom_call.1} parent=55 // pred_check_branch
          %364 = sbr.rel (%p362) target = $region68
        $region67: #{tpu_custom_call.1} parent=55 // pred_region
          %365 = dma.done [#allocation7], 1024
        $region68: #{tpu_custom_call.1} parent=55 // pred_fallthru
          _
        // Predicated region
        $region69: #{tpu_custom_call.1} parent=55 // pred_check
          %p366 = pneg %p206
        $region70: #{tpu_custom_call.1} parent=55 // pred_check_branch
          %368 = sbr.rel (%p366) target = $region72
        $region71: #{tpu_custom_call.1} parent=55 // pred_region
          %369 = dma.done [#allocation10], 1024
        $region72: #{tpu_custom_call.1} parent=55 // pred_fallthru
          _
        %p370 = pneg %p54
        %p371 = pneg %p51
        %p372 = pneg %p75
        %p373 = pneg %p72
        %s374 = smul.u32 16, %s31
        %p375 = scmp.lt.s32.totalorder %s374, 15
        %s376 = scalar_select %p375, %s374, 15
        %s377 = smul.addr %s376, 8
        %s378 = scalar_lea.vmem %s2, %s377
        %p379 = pneg %p101
        %p380 = pneg %p98
        %p381 = pneg %p122
        %p382 = pneg %p119
        %p383 = pneg %p143
        %p384 = pneg %p140
        %p385 = pneg %p164
        %p386 = pneg %p161
        %p387 = pneg %p185
        %p388 = pneg %p182
        %p389 = pneg %p206
        %p390 = pneg %p203
        %p391 = pneg %p227
        %p392 = pneg %p224
        %p393 = pneg %p255
        %p394 = pneg %p252
        %s395 = sand.u32 %s242, 1
        %s396 = scalar_lea.sflag [#allocation5], %s395
        %s397 = sand.u32 %s242, 1
        %s398 = smul.addr %s397, 64
        %s399 = scalar_lea.vmem [#allocation11], %s398
        %s400 = smul.u32 16, %s31
        %p401 = scmp.lt.s32.totalorder %s400, 15
        %s402 = scalar_select %p401, %s400, 15
        %s403 = smul.addr %s402, 8
        %s404 = scalar_lea.vmem %s2, %s403
        %s405 = smul.u32 16, %s31
        %s406 = smul.u32 %s30, %s31
        %s407 = smul.u32 16, %s406
        %s409 = smul.u32 %s31, 128
        %v410 = vld [vmem:[%s404] sm:$0xff]
        %v411 = vld [vmem:[%s404 + $0x8] sm:$0xff]
        %v412 = vld [vmem:[%s404 + $0x10] sm:$0xff]
        %v413 = vld [vmem:[%s404 + $0x18] sm:$0xff]
        %v414 = vld [vmem:[%s404 + $0x20] sm:$0xff]
        %v415 = vld [vmem:[%s404 + $0x28] sm:$0xff]
        %v416 = vld [vmem:[%s404 + $0x30] sm:$0xff]
        %v417 = vld [vmem:[%s404 + $0x38] sm:$0xff]
        %v418 = vld [vmem:[%s404 + $0x40] sm:$0xff]
        %v419 = vld [vmem:[%s404 + $0x48] sm:$0xff]
        %v420 = vld [vmem:[%s404 + $0x50] sm:$0xff]
        %v421 = vld [vmem:[%s404 + $0x58] sm:$0xff]
        %v422 = vld [vmem:[%s404 + $0x60] sm:$0xff]
        %v423 = vld [vmem:[%s404 + $0x68] sm:$0xff]
        %v424 = vld [vmem:[%s404 + $0x70] sm:$0xff]
        %v425 = vld [vmem:[%s404 + $0x78] sm:$0xff]
        %p426 = scmp.eq.s32.totalorder %s30, 0
        // Predicated region
        $region73: #{tpu_custom_call.1} parent=55 // pred_check
          %p427 = pneg %p426
        $region74: #{tpu_custom_call.1} parent=55 // pred_check_branch
          %429 = sbr.rel (%p427) target = $region76
        $region75: #{tpu_custom_call.1} parent=55 // pred_region
          %s430 = sshra.s32 %s409, 5
          %s431 = sand.u32 %s409, 31
          %s432 = smul.addr %s430, 8
          %s433 = scalar_lea.vmem [#allocation3], %s432
          %v434 = vld [vmem:[%s433] sm:$0xff]
          %v435 = vld [vmem:[%s433 + $0x8] sm:$0xff]
          %v436 = vld [vmem:[%s433 + $0x10] sm:$0xff]
          %v437 = vld [vmem:[%s433 + $0x18] sm:$0xff]
          %v438 = vunpack.c.l.s8.bf16 %v434
          %v439 = vunpack.c.h.s8.bf16 %v434
          %v440 = vunpack.c.l.s8.bf16 %v435
          %v441 = vunpack.c.h.s8.bf16 %v435
          %v442 = vunpack.c.l.s8.bf16 %v436
          %v443 = vunpack.c.h.s8.bf16 %v436
          %v444 = vunpack.c.l.s8.bf16 %v437
          %v445 = vunpack.c.h.s8.bf16 %v437
          %v446 = vld [vmem:[%s1] sm:$0xf]
          %v447 = vld [vmem:[%s1 + $0x4] sm:$0xf]
          %v448 = vld [vmem:[%s1 + $0x8] sm:$0xf]
          %v449 = vld [vmem:[%s1 + $0xc] sm:$0xf]
          %v450 = vld [vmem:[%s1 + $0x10] sm:$0xf]
          %v451 = vld [vmem:[%s1 + $0x14] sm:$0xf]
          %v452 = vld [vmem:[%s1 + $0x18] sm:$0xf]
          %v453 = vld [vmem:[%s1 + $0x1c] sm:$0xf]
          %v454 = vld [vmem:[%s1 + $0x20] sm:$0xf]
          %v455 = vld [vmem:[%s1 + $0x24] sm:$0xf]
          %v456 = vld [vmem:[%s1 + $0x28] sm:$0xf]
          %v457 = vld [vmem:[%s1 + $0x2c] sm:$0xf]
          %v458 = vld [vmem:[%s1 + $0x30] sm:$0xf]
          %v459 = vld [vmem:[%s1 + $0x34] sm:$0xf]
          %v460 = vld [vmem:[%s1 + $0x38] sm:$0xf]
          %v461 = vld [vmem:[%s1 + $0x3c] sm:$0xf]
          %v478 = vunpack.c.l.b16 %v446
          %v479 = vunpack.c.l.b16 %v447
          %v480 = vunpack.c.l.b16 %v448
          %v481 = vunpack.c.l.b16 %v449
          %v482 = vunpack.c.l.b16 %v450
          %v483 = vunpack.c.l.b16 %v451
          %v484 = vunpack.c.l.b16 %v452
          %v485 = vunpack.c.l.b16 %v453
          %v486 = vunpack.c.l.b16 %v454
          %v487 = vunpack.c.l.b16 %v455
          %v488 = vunpack.c.l.b16 %v456
          %v489 = vunpack.c.l.b16 %v457
          %v490 = vunpack.c.l.b16 %v458
          %v491 = vunpack.c.l.b16 %v459
          %v492 = vunpack.c.l.b16 %v460
          %v493 = vunpack.c.l.b16 %v461
          %v494 = vpack.c.b16 %v479, %v478
          %v495 = vpack.c.b16 %v481, %v480
          %v496 = vpack.c.b16 %v483, %v482
          %v497 = vpack.c.b16 %v485, %v484
          %v498 = vpack.c.b16 %v487, %v486
          %v499 = vpack.c.b16 %v489, %v488
          %v500 = vpack.c.b16 %v491, %v490
          %v501 = vpack.c.b16 %v493, %v492
          %510 = vmatprep.subr.bf16.mxu0 0
          %511 = vmatpush1.bf16.msra.mxu0 %v494
          %512 = vmatprep.subr.bf16.mxu0 0
          %513 = vmatpush1.bf16.msra.mxu0 %v495
          %514 = vmatprep.subr.bf16.mxu0 0
          %515 = vmatpush1.bf16.msra.mxu0 %v496
          %516 = vmatprep.subr.bf16.mxu0 0
          %517 = vmatpush1.bf16.msra.mxu0 %v497
          %518 = vmatprep.subr.bf16.mxu0 0
          %519 = vmatpush1.bf16.msra.mxu0 %v498
          %520 = vmatprep.subr.bf16.mxu0 0
          %521 = vmatpush1.bf16.msra.mxu0 %v499
          %522 = vmatprep.subr.bf16.mxu0 0
          %523 = vmatpush1.bf16.msra.mxu0 %v500
          %524 = vmatprep.subr.bf16.mxu0 0
          %525 = vmatpush1.bf16.msra.mxu0 %v501
          %526 = vmatprep.subr.bf16.mxu0 0
          %527 = vmatpush1.bf16.msra.mxu0 0
          %528 = vmatprep.subr.bf16.mxu0 0
          %529 = vmatpush1.bf16.msra.mxu0 0
          %530 = vmatprep.subr.bf16.mxu0 0
          %531 = vmatpush1.bf16.msra.mxu0 0
          %532 = vmatprep.subr.bf16.mxu0 0
          %533 = vmatpush1.bf16.msra.mxu0 0
          %534 = vmatprep.subr.bf16.mxu0 0
          %535 = vmatpush1.bf16.msra.mxu0 0
          %536 = vmatprep.subr.bf16.mxu0 0
          %537 = vmatpush1.bf16.msra.mxu0 0
          %538 = vmatprep.subr.bf16.mxu0 0
          %539 = vmatpush1.bf16.msra.mxu0 0
          %540 = vmatprep.subr.bf16.mxu0 0
          %541 = vmatpush1.bf16.msra.mxu0 0
          %542 = vmatprep.mubr.bf16.mxu0 0
          %543 = vmatmul.mubr.bf16.gmra.mrb[0].mxu0 %v438
          %v544 = vpop.f32.mrb[0].mxu0
          %v545 = vadd.f32 0.0, %v544
          %v546 = vpop.f32.mrb[0].mxu0
          %v547 = vpop.f32.mrb[0].mxu0
          %v548 = vadd.f32 0.0, %v547
          %v549 = vpop.f32.mrb[0].mxu0
          %550 = vmatprep.mubr.bf16.mxu0 0
          %551 = vmatmul.mubr.bf16.gmra.mrb[0].mxu0 %v439
          %v552 = vpop.f32.mrb[0].mxu0
          %v553 = vadd.f32 0.0, %v552
          %v554 = vpop.f32.mrb[0].mxu0
          %v555 = vpop.f32.mrb[0].mxu0
          %v556 = vadd.f32 0.0, %v555
          %v557 = vpop.f32.mrb[0].mxu0
          %558 = vmatprep.mubr.bf16.mxu0 0
          %559 = vmatmul.mubr.bf16.gmra.mrb[0].mxu0 %v440
          %v560 = vpop.f32.mrb[0].mxu0
          %v561 = vadd.f32 0.0, %v560
          %v562 = vpop.f32.mrb[0].mxu0
          %v563 = vpop.f32.mrb[0].mxu0
          %v564 = vadd.f32 0.0, %v563
          %v565 = vpop.f32.mrb[0].mxu0
          %566 = vmatprep.mubr.bf16.mxu0 0
          %567 = vmatmul.mubr.bf16.gmra.mrb[0].mxu0 %v441
          %v568 = vpop.f32.mrb[0].mxu0
          %v569 = vadd.f32 0.0, %v568
          %v570 = vpop.f32.mrb[0].mxu0
          %v571 = vpop.f32.mrb[0].mxu0
          %v572 = vadd.f32 0.0, %v571
          %v573 = vpop.f32.mrb[0].mxu0
          %574 = vmatprep.mubr.bf16.mxu0 0
          %575 = vmatmul.mubr.bf16.gmra.mrb[0].mxu0 %v442
          %v576 = vpop.f32.mrb[0].mxu0
          %v577 = vadd.f32 0.0, %v576
          %v578 = vpop.f32.mrb[0].mxu0
          %v579 = vpop.f32.mrb[0].mxu0
          %v580 = vadd.f32 0.0, %v579
          %v581 = vpop.f32.mrb[0].mxu0
          %582 = vmatprep.mubr.bf16.mxu0 0
          %583 = vmatmul.mubr.bf16.gmra.mrb[0].mxu0 %v443
          %v584 = vpop.f32.mrb[0].mxu0
          %v585 = vadd.f32 0.0, %v584
          %v586 = vpop.f32.mrb[0].mxu0
          %v587 = vpop.f32.mrb[0].mxu0
          %v588 = vadd.f32 0.0, %v587
          %v589 = vpop.f32.mrb[0].mxu0
          %590 = vmatprep.mubr.bf16.mxu0 0
          %591 = vmatmul.mubr.bf16.gmra.mrb[0].mxu0 %v444
          %v592 = vpop.f32.mrb[0].mxu0
          %v593 = vadd.f32 0.0, %v592
          %v594 = vpop.f32.mrb[0].mxu0
          %v595 = vpop.f32.mrb[0].mxu0
          %v596 = vadd.f32 0.0, %v595
          %v597 = vpop.f32.mrb[0].mxu0
          %598 = vmatprep.mubr.bf16.mxu0 0
          %599 = vmatmul.mubr.bf16.gmra.mrb[0].mxu0 %v445
          %v600 = vpop.f32.mrb[0].mxu0
          %v601 = vadd.f32 0.0, %v600
          %v602 = vpop.f32.mrb[0].mxu0
          %v603 = vpop.f32.mrb[0].mxu0
          %v604 = vadd.f32 0.0, %v603
          %v605 = vpop.f32.mrb[0].mxu0
          %606 = vdwg.mxu0
          %608 = vset.pattern.permute.xlu0 0
          %609 = vperm.xlu0 %608, %v410
          %v610 = vpop.permute.xlu0 %609
          %613 = vset.pattern.permute.xlu0 0
          %614 = vperm.xlu0 %613, %v411
          %v615 = vpop.permute.xlu0 %614
          %618 = vset.pattern.permute.xlu0 0
          %619 = vperm.xlu0 %618, %v412
          %v620 = vpop.permute.xlu0 %619
          %623 = vset.pattern.permute.xlu0 0
          %624 = vperm.xlu0 %623, %v413
          %v625 = vpop.permute.xlu0 %624
          %628 = vset.pattern.permute.xlu0 0
          %629 = vperm.xlu0 %628, %v414
          %v630 = vpop.permute.xlu0 %629
          %633 = vset.pattern.permute.xlu0 0
          %634 = vperm.xlu0 %633, %v415
          %v635 = vpop.permute.xlu0 %634
          %638 = vset.pattern.permute.xlu0 0
          %639 = vperm.xlu0 %638, %v416
          %v640 = vpop.permute.xlu0 %639
          %643 = vset.pattern.permute.xlu0 0
          %644 = vperm.xlu0 %643, %v417
          %v645 = vpop.permute.xlu0 %644
          %648 = vset.pattern.permute.xlu0 0
          %649 = vperm.xlu0 %648, %v418
          %v650 = vpop.permute.xlu0 %649
          %653 = vset.pattern.permute.xlu0 0
          %654 = vperm.xlu0 %653, %v419
          %v655 = vpop.permute.xlu0 %654
          %658 = vset.pattern.permute.xlu0 0
          %659 = vperm.xlu0 %658, %v420
          %v660 = vpop.permute.xlu0 %659
          %663 = vset.pattern.permute.xlu0 0
          %664 = vperm.xlu0 %663, %v421
          %v665 = vpop.permute.xlu0 %664
          %668 = vset.pattern.permute.xlu0 0
          %669 = vperm.xlu0 %668, %v422
          %v670 = vpop.permute.xlu0 %669
          %673 = vset.pattern.permute.xlu0 0
          %674 = vperm.xlu0 %673, %v423
          %v675 = vpop.permute.xlu0 %674
          %678 = vset.pattern.permute.xlu0 0
          %679 = vperm.xlu0 %678, %v424
          %v680 = vpop.permute.xlu0 %679
          %683 = vset.pattern.permute.xlu0 0
          %684 = vperm.xlu0 %683, %v425
          %v685 = vpop.permute.xlu0 %684
          %v687 = vmul.f32 %v545, %v610
          %v688 = vmul.f32 %v548, %v615
          %v689 = vmul.f32 %v553, %v620
          %v690 = vmul.f32 %v556, %v625
          %v691 = vmul.f32 %v561, %v630
          %v692 = vmul.f32 %v564, %v635
          %v693 = vmul.f32 %v569, %v640
          %v694 = vmul.f32 %v572, %v645
          %v695 = vmul.f32 %v577, %v650
          %v696 = vmul.f32 %v580, %v655
          %v697 = vmul.f32 %v585, %v660
          %v698 = vmul.f32 %v588, %v665
          %v699 = vmul.f32 %v593, %v670
          %v700 = vmul.f32 %v596, %v675
          %v701 = vmul.f32 %v601, %v680
          %v702 = vmul.f32 %v604, %v685
          %v703 = vpack.c.bf16 %v688, %v687
          %v704 = vpack.c.bf16 %v690, %v689
          %v705 = vpack.c.bf16 %v692, %v691
          %v706 = vpack.c.bf16 %v694, %v693
          %v707 = vpack.c.bf16 %v696, %v695
          %v708 = vpack.c.bf16 %v698, %v697
          %v709 = vpack.c.bf16 %v700, %v699
          %v710 = vpack.c.bf16 %v702, %v701
          %v711 = vld [vmem:[%s3] sm:$0xf]
          %v712 = vld [vmem:[%s3 + $0x4] sm:$0xf]
          %v713 = vld [vmem:[%s3 + $0x8] sm:$0xf]
          %v714 = vld [vmem:[%s3 + $0xc] sm:$0xf]
          %v715 = vld [vmem:[%s3 + $0x10] sm:$0xf]
          %v716 = vld [vmem:[%s3 + $0x14] sm:$0xf]
          %v717 = vld [vmem:[%s3 + $0x18] sm:$0xf]
          %v718 = vld [vmem:[%s3 + $0x1c] sm:$0xf]
          %v719 = vld [vmem:[%s3 + $0x20] sm:$0xf]
          %v720 = vld [vmem:[%s3 + $0x24] sm:$0xf]
          %v721 = vld [vmem:[%s3 + $0x28] sm:$0xf]
          %v722 = vld [vmem:[%s3 + $0x2c] sm:$0xf]
          %v723 = vld [vmem:[%s3 + $0x30] sm:$0xf]
          %v724 = vld [vmem:[%s3 + $0x34] sm:$0xf]
          %v725 = vld [vmem:[%s3 + $0x38] sm:$0xf]
          %v726 = vld [vmem:[%s3 + $0x3c] sm:$0xf]
          %s727 = sshra.s32 %s409, 3
          %s728 = sand.u32 %s409, 7
          %s729 = smul.addr %s727, 4
          %s730 = scalar_lea.vmem %s1, %s729
          %v731 = vld [vmem:[%s730] sm:$0xf]
          %v732 = vld [vmem:[%s730 + $0x4] sm:$0xf]
          %v733 = vld [vmem:[%s730 + $0x8] sm:$0xf]
          %v734 = vld [vmem:[%s730 + $0xc] sm:$0xf]
          %v735 = vld [vmem:[%s730 + $0x10] sm:$0xf]
          %v736 = vld [vmem:[%s730 + $0x14] sm:$0xf]
          %v737 = vld [vmem:[%s730 + $0x18] sm:$0xf]
          %v738 = vld [vmem:[%s730 + $0x1c] sm:$0xf]
          %v739 = vld [vmem:[%s730 + $0x20] sm:$0xf]
          %v740 = vld [vmem:[%s730 + $0x24] sm:$0xf]
          %v741 = vld [vmem:[%s730 + $0x28] sm:$0xf]
          %v742 = vld [vmem:[%s730 + $0x2c] sm:$0xf]
          %v743 = vld [vmem:[%s730 + $0x30] sm:$0xf]
          %v744 = vld [vmem:[%s730 + $0x34] sm:$0xf]
          %v745 = vld [vmem:[%s730 + $0x38] sm:$0xf]
          %v746 = vld [vmem:[%s730 + $0x3c] sm:$0xf]
          %v747 = vld [vmem:[#allocation6] sm:$0xf]
          %v748 = vld [vmem:[#allocation6 + $0x4] sm:$0xf]
          %v749 = vld [vmem:[#allocation6 + $0x8] sm:$0xf]
          %v750 = vld [vmem:[#allocation6 + $0xc] sm:$0xf]
          %v751 = vld [vmem:[#allocation6 + $0x10] sm:$0xf]
          %v752 = vld [vmem:[#allocation6 + $0x14] sm:$0xf]
          %v753 = vld [vmem:[#allocation6 + $0x18] sm:$0xf]
          %v754 = vld [vmem:[#allocation6 + $0x1c] sm:$0xf]
          %v755 = vld [vmem:[#allocation6 + $0x20] sm:$0xf]
          %v756 = vld [vmem:[#allocation6 + $0x24] sm:$0xf]
          %v757 = vld [vmem:[#allocation6 + $0x28] sm:$0xf]
          %v758 = vld [vmem:[#allocation6 + $0x2c] sm:$0xf]
          %v759 = vld [vmem:[#allocation6 + $0x30] sm:$0xf]
          %v760 = vld [vmem:[#allocation6 + $0x34] sm:$0xf]
          %v761 = vld [vmem:[#allocation6 + $0x38] sm:$0xf]
          %v762 = vld [vmem:[#allocation6 + $0x3c] sm:$0xf]
          %v779 = vunpack.c.l.b16 %v731
          %v780 = vunpack.c.l.b16 %v732
          %v781 = vunpack.c.l.b16 %v733
          %v782 = vunpack.c.l.b16 %v734
          %v783 = vunpack.c.l.b16 %v735
          %v784 = vunpack.c.l.b16 %v736
          %v785 = vunpack.c.l.b16 %v737
          %v786 = vunpack.c.l.b16 %v738
          %v787 = vunpack.c.l.b16 %v739
          %v788 = vunpack.c.l.b16 %v740
          %v789 = vunpack.c.l.b16 %v741
          %v790 = vunpack.c.l.b16 %v742
          %v791 = vunpack.c.l.b16 %v743
          %v792 = vunpack.c.l.b16 %v744
          %v793 = vunpack.c.l.b16 %v745
          %v794 = vunpack.c.l.b16 %v746
          %v795 = vpack.c.b16 %v780, %v779
          %v796 = vpack.c.b16 %v782, %v781
          %v797 = vpack.c.b16 %v784, %v783
          %v798 = vpack.c.b16 %v786, %v785
          %v799 = vpack.c.b16 %v788, %v787
          %v800 = vpack.c.b16 %v790, %v789
          %v801 = vpack.c.b16 %v792, %v791
          %v802 = vpack.c.b16 %v794, %v793
          %v827 = vunpack.c.l.b16 %v747
          %v828 = vunpack.c.l.b16 %v748
          %v829 = vunpack.c.l.b16 %v749
          %v830 = vunpack.c.l.b16 %v750
          %v831 = vunpack.c.l.b16 %v751
          %v832 = vunpack.c.l.b16 %v752
          %v833 = vunpack.c.l.b16 %v753
          %v834 = vunpack.c.l.b16 %v754
          %v835 = vunpack.c.l.b16 %v755
          %v836 = vunpack.c.l.b16 %v756
          %v837 = vunpack.c.l.b16 %v757
          %v838 = vunpack.c.l.b16 %v758
          %v839 = vunpack.c.l.b16 %v759
          %v840 = vunpack.c.l.b16 %v760
          %v841 = vunpack.c.l.b16 %v761
          %v842 = vunpack.c.l.b16 %v762
          %v843 = vpack.c.b16 %v828, %v827
          %v844 = vpack.c.b16 %v830, %v829
          %v845 = vpack.c.b16 %v832, %v831
          %v846 = vpack.c.b16 %v834, %v833
          %v847 = vpack.c.b16 %v836, %v835
          %v848 = vpack.c.b16 %v838, %v837
          %v849 = vpack.c.b16 %v840, %v839
          %v850 = vpack.c.b16 %v842, %v841
          %859 = vmatprep.subr.bf16.mxu0 0
          %860 = vmatpush1.bf16.msra.mxu0 %v843
          %861 = vmatprep.subr.bf16.mxu0 0
          %862 = vmatpush1.bf16.msra.mxu0 %v844
          %863 = vmatprep.subr.bf16.mxu0 0
          %864 = vmatpush1.bf16.msra.mxu0 %v845
          %865 = vmatprep.subr.bf16.mxu0 0
          %866 = vmatpush1.bf16.msra.mxu0 %v846
          %867 = vmatprep.subr.bf16.mxu0 0
          %868 = vmatpush1.bf16.msra.mxu0 %v847
          %869 = vmatprep.subr.bf16.mxu0 0
          %870 = vmatpush1.bf16.msra.mxu0 %v848
          %871 = vmatprep.subr.bf16.mxu0 0
          %872 = vmatpush1.bf16.msra.mxu0 %v849
          %873 = vmatprep.subr.bf16.mxu0 0
          %874 = vmatpush1.bf16.msra.mxu0 %v850
          %875 = vmatprep.subr.bf16.mxu0 0
          %876 = vmatpush1.bf16.msra.mxu0 0
          %877 = vmatprep.subr.bf16.mxu0 0
          %878 = vmatpush1.bf16.msra.mxu0 0
          %879 = vmatprep.subr.bf16.mxu0 0
          %880 = vmatpush1.bf16.msra.mxu0 0
          %881 = vmatprep.subr.bf16.mxu0 0
          %882 = vmatpush1.bf16.msra.mxu0 0
          %883 = vmatprep.subr.bf16.mxu0 0
          %884 = vmatpush1.bf16.msra.mxu0 0
          %885 = vmatprep.subr.bf16.mxu0 0
          %886 = vmatpush1.bf16.msra.mxu0 0
          %887 = vmatprep.subr.bf16.mxu0 0
          %888 = vmatpush1.bf16.msra.mxu0 0
          %889 = vmatprep.subr.bf16.mxu0 0
          %890 = vmatpush1.bf16.msra.mxu0 0
          %891 = vmatprep.mubr.bf16.mxu0 0
          %892 = vmatmul.mubr.bf16.gmra.mrb[0].mxu0 %v795
          %v893 = vpop.f32.mrb[0].mxu0
          %v894 = vadd.f32 0.0, %v893
          %v895 = vpop.f32.mrb[0].mxu0
          %v896 = vpop.f32.mrb[0].mxu0
          %v897 = vadd.f32 0.0, %v896
          %v898 = vpop.f32.mrb[0].mxu0
          %899 = vmatprep.mubr.bf16.mxu0 0
          %900 = vmatmul.mubr.bf16.gmra.mrb[0].mxu0 %v796
          %v901 = vpop.f32.mrb[0].mxu0
          %v902 = vadd.f32 0.0, %v901
          %v903 = vpop.f32.mrb[0].mxu0
          %v904 = vpop.f32.mrb[0].mxu0
          %v905 = vadd.f32 0.0, %v904
          %v906 = vpop.f32.mrb[0].mxu0
          %907 = vmatprep.mubr.bf16.mxu0 0
          %908 = vmatmul.mubr.bf16.gmra.mrb[0].mxu0 %v797
          %v909 = vpop.f32.mrb[0].mxu0
          %v910 = vadd.f32 0.0, %v909
          %v911 = vpop.f32.mrb[0].mxu0
          %v912 = vpop.f32.mrb[0].mxu0
          %v913 = vadd.f32 0.0, %v912
          %v914 = vpop.f32.mrb[0].mxu0
          %915 = vmatprep.mubr.bf16.mxu0 0
          %916 = vmatmul.mubr.bf16.gmra.mrb[0].mxu0 %v798
          %v917 = vpop.f32.mrb[0].mxu0
          %v918 = vadd.f32 0.0, %v917
          %v919 = vpop.f32.mrb[0].mxu0
          %v920 = vpop.f32.mrb[0].mxu0
          %v921 = vadd.f32 0.0, %v920
          %v922 = vpop.f32.mrb[0].mxu0
          %923 = vmatprep.mubr.bf16.mxu0 0
          %924 = vmatmul.mubr.bf16.gmra.mrb[0].mxu0 %v799
          %v925 = vpop.f32.mrb[0].mxu0
          %v926 = vadd.f32 0.0, %v925
          %v927 = vpop.f32.mrb[0].mxu0
          %v928 = vpop.f32.mrb[0].mxu0
          %v929 = vadd.f32 0.0, %v928
          %v930 = vpop.f32.mrb[0].mxu0
          %931 = vmatprep.mubr.bf16.mxu0 0
          %932 = vmatmul.mubr.bf16.gmra.mrb[0].mxu0 %v800
          %v933 = vpop.f32.mrb[0].mxu0
          %v934 = vadd.f32 0.0, %v933
          %v935 = vpop.f32.mrb[0].mxu0
          %v936 = vpop.f32.mrb[0].mxu0
          %v937 = vadd.f32 0.0, %v936
          %v938 = vpop.f32.mrb[0].mxu0
          %939 = vmatprep.mubr.bf16.mxu0 0
          %940 = vmatmul.mubr.bf16.gmra.mrb[0].mxu0 %v801
          %v941 = vpop.f32.mrb[0].mxu0
          %v942 = vadd.f32 0.0, %v941
          %v943 = vpop.f32.mrb[0].mxu0
          %v944 = vpop.f32.mrb[0].mxu0
          %v945 = vadd.f32 0.0, %v944
          %v946 = vpop.f32.mrb[0].mxu0
          %947 = vmatprep.mubr.bf16.mxu0 0
          %948 = vmatmul.mubr.bf16.gmra.mrb[0].mxu0 %v802
          %v949 = vpop.f32.mrb[0].mxu0
          %v950 = vadd.f32 0.0, %v949
          %v951 = vpop.f32.mrb[0].mxu0
          %v952 = vpop.f32.mrb[0].mxu0
          %v953 = vadd.f32 0.0, %v952
          %v954 = vpop.f32.mrb[0].mxu0
          %955 = vdwg.mxu0
          %v972 = vunpack.c.l.b16 %v711
          %v973 = vunpack.c.l.b16 %v712
          %v974 = vunpack.c.l.b16 %v713
          %v975 = vunpack.c.l.b16 %v714
          %v976 = vunpack.c.l.b16 %v715
          %v977 = vunpack.c.l.b16 %v716
          %v978 = vunpack.c.l.b16 %v717
          %v979 = vunpack.c.l.b16 %v718
          %v980 = vunpack.c.l.b16 %v719
          %v981 = vunpack.c.l.b16 %v720
          %v982 = vunpack.c.l.b16 %v721
          %v983 = vunpack.c.l.b16 %v722
          %v984 = vunpack.c.l.b16 %v723
          %v985 = vunpack.c.l.b16 %v724
          %v986 = vunpack.c.l.b16 %v725
          %v987 = vunpack.c.l.b16 %v726
          %v988 = vpack.c.b16 %v973, %v972
          %v989 = vpack.c.b16 %v975, %v974
          %v990 = vpack.c.b16 %v977, %v976
          %v991 = vpack.c.b16 %v979, %v978
          %v992 = vpack.c.b16 %v981, %v980
          %v993 = vpack.c.b16 %v983, %v982
          %v994 = vpack.c.b16 %v985, %v984
          %v995 = vpack.c.b16 %v987, %v986
          %1004 = vmatprep.subr.bf16.mxu0 0
          %1005 = vmatpush1.bf16.msra.mxu0 %v988
          %1006 = vmatprep.subr.bf16.mxu0 0
          %1007 = vmatpush1.bf16.msra.mxu0 %v989
          %1008 = vmatprep.subr.bf16.mxu0 0
          %1009 = vmatpush1.bf16.msra.mxu0 %v990
          %1010 = vmatprep.subr.bf16.mxu0 0
          %1011 = vmatpush1.bf16.msra.mxu0 %v991
          %1012 = vmatprep.subr.bf16.mxu0 0
          %1013 = vmatpush1.bf16.msra.mxu0 %v992
          %1014 = vmatprep.subr.bf16.mxu0 0
          %1015 = vmatpush1.bf16.msra.mxu0 %v993
          %1016 = vmatprep.subr.bf16.mxu0 0
          %1017 = vmatpush1.bf16.msra.mxu0 %v994
          %1018 = vmatprep.subr.bf16.mxu0 0
          %1019 = vmatpush1.bf16.msra.mxu0 %v995
          %1020 = vmatprep.subr.bf16.mxu0 0
          %1021 = vmatpush1.bf16.msra.mxu0 0
          %1022 = vmatprep.subr.bf16.mxu0 0
          %1023 = vmatpush1.bf16.msra.mxu0 0
          %1024 = vmatprep.subr.bf16.mxu0 0
          %1025 = vmatpush1.bf16.msra.mxu0 0
          %1026 = vmatprep.subr.bf16.mxu0 0
          %1027 = vmatpush1.bf16.msra.mxu0 0
          %1028 = vmatprep.subr.bf16.mxu0 0
          %1029 = vmatpush1.bf16.msra.mxu0 0
          %1030 = vmatprep.subr.bf16.mxu0 0
          %1031 = vmatpush1.bf16.msra.mxu0 0
          %1032 = vmatprep.subr.bf16.mxu0 0
          %1033 = vmatpush1.bf16.msra.mxu0 0
          %1034 = vmatprep.subr.bf16.mxu0 0
          %1035 = vmatpush1.bf16.msra.mxu0 0
          %1036 = vmatprep.mubr.bf16.mxu0 0
          %1037 = vmatmul.mubr.bf16.gmra.mrb[0].mxu0 %v703
          %v1038 = vpop.f32.mrb[0].mxu0
          %v1039 = vadd.f32 %v894, %v1038
          %v1040 = vpop.f32.mrb[0].mxu0
          %v1041 = vpop.f32.mrb[0].mxu0
          %v1042 = vadd.f32 %v897, %v1041
          %v1043 = vpop.f32.mrb[0].mxu0
          %1044 = vmatprep.mubr.bf16.mxu0 0
          %1045 = vmatmul.mubr.bf16.gmra.mrb[0].mxu0 %v704
          %v1046 = vpop.f32.mrb[0].mxu0
          %v1047 = vadd.f32 %v902, %v1046
          %v1048 = vpop.f32.mrb[0].mxu0
          %v1049 = vpop.f32.mrb[0].mxu0
          %v1050 = vadd.f32 %v905, %v1049
          %v1051 = vpop.f32.mrb[0].mxu0
          %1052 = vmatprep.mubr.bf16.mxu0 0
          %1053 = vmatmul.mubr.bf16.gmra.mrb[0].mxu0 %v705
          %v1054 = vpop.f32.mrb[0].mxu0
          %v1055 = vadd.f32 %v910, %v1054
          %v1056 = vpop.f32.mrb[0].mxu0
          %v1057 = vpop.f32.mrb[0].mxu0
          %v1058 = vadd.f32 %v913, %v1057
          %v1059 = vpop.f32.mrb[0].mxu0
          %1060 = vmatprep.mubr.bf16.mxu0 0
          %1061 = vmatmul.mubr.bf16.gmra.mrb[0].mxu0 %v706
          %v1062 = vpop.f32.mrb[0].mxu0
          %v1063 = vadd.f32 %v918, %v1062
          %v1064 = vpop.f32.mrb[0].mxu0
          %v1065 = vpop.f32.mrb[0].mxu0
          %v1066 = vadd.f32 %v921, %v1065
          %v1067 = vpop.f32.mrb[0].mxu0
          %1068 = vmatprep.mubr.bf16.mxu0 0
          %1069 = vmatmul.mubr.bf16.gmra.mrb[0].mxu0 %v707
          %v1070 = vpop.f32.mrb[0].mxu0
          %v1071 = vadd.f32 %v926, %v1070
          %v1072 = vpop.f32.mrb[0].mxu0
          %v1073 = vpop.f32.mrb[0].mxu0
          %v1074 = vadd.f32 %v929, %v1073
          %v1075 = vpop.f32.mrb[0].mxu0
          %1076 = vmatprep.mubr.bf16.mxu0 0
          %1077 = vmatmul.mubr.bf16.gmra.mrb[0].mxu0 %v708
          %v1078 = vpop.f32.mrb[0].mxu0
          %v1079 = vadd.f32 %v934, %v1078
          %v1080 = vpop.f32.mrb[0].mxu0
          %v1081 = vpop.f32.mrb[0].mxu0
          %v1082 = vadd.f32 %v937, %v1081
          %v1083 = vpop.f32.mrb[0].mxu0
          %1084 = vmatprep.mubr.bf16.mxu0 0
          %1085 = vmatmul.mubr.bf16.gmra.mrb[0].mxu0 %v709
          %v1086 = vpop.f32.mrb[0].mxu0
          %v1087 = vadd.f32 %v942, %v1086
          %v1088 = vpop.f32.mrb[0].mxu0
          %v1089 = vpop.f32.mrb[0].mxu0
          %v1090 = vadd.f32 %v945, %v1089
          %v1091 = vpop.f32.mrb[0].mxu0
          %1092 = vmatprep.mubr.bf16.mxu0 0
          %1093 = vmatmul.mubr.bf16.gmra.mrb[0].mxu0 %v710
          %v1094 = vpop.f32.mrb[0].mxu0
          %v1095 = vadd.f32 %v950, %v1094
          %v1096 = vpop.f32.mrb[0].mxu0
          %v1097 = vpop.f32.mrb[0].mxu0
          %v1098 = vadd.f32 %v953, %v1097
          %v1099 = vpop.f32.mrb[0].mxu0
          %1100 = vdwg.mxu0
          %v1101 = vld [vmem:[%s5] sm:$0x1]
          %v1103 = vlaneseq
          %v1104 = vshrl.u32 %v1103, 7
          %v1105 = vsub.s32 0, %v1104
          %v1106 = vrot.slane %v1101, %v1105
          %v1108 = vadd.f32 %v1039, %v1106
          %v1109 = vadd.f32 %v1042, %v1106
          %v1110 = vadd.f32 %v1047, %v1106
          %v1111 = vadd.f32 %v1050, %v1106
          %v1112 = vadd.f32 %v1055, %v1106
          %v1113 = vadd.f32 %v1058, %v1106
          %v1114 = vadd.f32 %v1063, %v1106
          %v1115 = vadd.f32 %v1066, %v1106
          %v1116 = vadd.f32 %v1071, %v1106
          %v1117 = vadd.f32 %v1074, %v1106
          %v1118 = vadd.f32 %v1079, %v1106
          %v1119 = vadd.f32 %v1082, %v1106
          %v1120 = vadd.f32 %v1087, %v1106
          %v1121 = vadd.f32 %v1090, %v1106
          %v1122 = vadd.f32 %v1095, %v1106
          %v1123 = vadd.f32 %v1098, %v1106
          %v1124 = vmax.f32 %v1108, 0.0
          %v1125 = vmax.f32 %v1109, 0.0
          %v1126 = vmax.f32 %v1110, 0.0
          %v1127 = vmax.f32 %v1111, 0.0
          %v1128 = vmax.f32 %v1112, 0.0
          %v1129 = vmax.f32 %v1113, 0.0
          %v1130 = vmax.f32 %v1114, 0.0
          %v1131 = vmax.f32 %v1115, 0.0
          %v1132 = vmax.f32 %v1116, 0.0
          %v1133 = vmax.f32 %v1117, 0.0
          %v1134 = vmax.f32 %v1118, 0.0
          %v1135 = vmax.f32 %v1119, 0.0
          %v1136 = vmax.f32 %v1120, 0.0
          %v1137 = vmax.f32 %v1121, 0.0
          %v1138 = vmax.f32 %v1122, 0.0
          %v1139 = vmax.f32 %v1123, 0.0
          %v1140 = vpack.c.bf16 %v1125, %v1124
          %v1141 = vpack.c.bf16 %v1127, %v1126
          %v1142 = vpack.c.bf16 %v1129, %v1128
          %v1143 = vpack.c.bf16 %v1131, %v1130
          %v1144 = vpack.c.bf16 %v1133, %v1132
          %v1145 = vpack.c.bf16 %v1135, %v1134
          %v1146 = vpack.c.bf16 %v1137, %v1136
          %v1147 = vpack.c.bf16 %v1139, %v1138
          %s1148 = sshra.s32 %s409, 4
          %s1149 = sand.u32 %s409, 15
          %s1150 = smul.addr %s1148, 8
          %s1151 = scalar_lea.vmem [#allocation2], %s1150
          %1152 = vst [vmem:[%s1151] sm:$0xff] %v1140
          %1153 = vst [vmem:[%s1151 + $0x8] sm:$0xff] %v1141
          %1154 = vst [vmem:[%s1151 + $0x10] sm:$0xff] %v1142
          %1155 = vst [vmem:[%s1151 + $0x18] sm:$0xff] %v1143
          %1156 = vst [vmem:[%s1151 + $0x20] sm:$0xff] %v1144
          %1157 = vst [vmem:[%s1151 + $0x28] sm:$0xff] %v1145
          %1158 = vst [vmem:[%s1151 + $0x30] sm:$0xff] %v1146
          %1159 = vst [vmem:[%s1151 + $0x38] sm:$0xff] %v1147
        $region76: #{tpu_custom_call.1} parent=55 // pred_fallthru
          _
        %p1160 = scmp.eq.s32.totalorder %s30, 1
        // Predicated region
        $region77: #{tpu_custom_call.1} parent=55 // pred_check
          %p1161 = pneg %p1160
        $region78: #{tpu_custom_call.1} parent=55 // pred_check_branch
          %1163 = sbr.rel (%p1161) target = $region80
        $region79: #{tpu_custom_call.1} parent=55 // pred_region
          %s1164 = sshra.s32 %s409, 5
          %s1165 = sand.u32 %s409, 31
          %s1166 = smul.addr %s1164, 8
          %s1167 = scalar_lea.vmem [#allocation3], %s1166
          %v1168 = vld [vmem:[%s1167] sm:$0xff]
          %v1169 = vld [vmem:[%s1167 + $0x8] sm:$0xff]
          %v1170 = vld [vmem:[%s1167 + $0x10] sm:$0xff]
          %v1171 = vld [vmem:[%s1167 + $0x18] sm:$0xff]
          %v1172 = vunpack.c.l.s8.bf16 %v1168
          %v1173 = vunpack.c.h.s8.bf16 %v1168
          %v1174 = vunpack.c.l.s8.bf16 %v1169
          %v1175 = vunpack.c.h.s8.bf16 %v1169
          %v1176 = vunpack.c.l.s8.bf16 %v1170
          %v1177 = vunpack.c.h.s8.bf16 %v1170
          %v1178 = vunpack.c.l.s8.bf16 %v1171
          %v1179 = vunpack.c.h.s8.bf16 %v1171
          %v1180 = vld [vmem:[#allocation2] sm:$0xff]
          %v1181 = vld [vmem:[#allocation2 + $0x8] sm:$0xff]
          %v1182 = vld [vmem:[#allocation2 + $0x10] sm:$0xff]
          %v1183 = vld [vmem:[#allocation2 + $0x18] sm:$0xff]
          %v1184 = vld [vmem:[#allocation2 + $0x20] sm:$0xff]
          %v1185 = vld [vmem:[#allocation2 + $0x28] sm:$0xff]
          %v1186 = vld [vmem:[#allocation2 + $0x30] sm:$0xff]
          %v1187 = vld [vmem:[#allocation2 + $0x38] sm:$0xff]
          %1188 = vmatprep.subr.bf16.mxu0 0
          %1189 = vmatpush1.bf16.msra.mxu0 %v1180
          %1190 = vmatprep.subr.bf16.mxu0 0
          %1191 = vmatpush1.bf16.msra.mxu0 %v1181
          %1192 = vmatprep.subr.bf16.mxu0 0
          %1193 = vmatpush1.bf16.msra.mxu0 %v1182
          %1194 = vmatprep.subr.bf16.mxu0 0
          %1195 = vmatpush1.bf16.msra.mxu0 %v1183
          %1196 = vmatprep.subr.bf16.mxu0 0
          %1197 = vmatpush1.bf16.msra.mxu0 %v1184
          %1198 = vmatprep.subr.bf16.mxu0 0
          %1199 = vmatpush1.bf16.msra.mxu0 %v1185
          %1200 = vmatprep.subr.bf16.mxu0 0
          %1201 = vmatpush1.bf16.msra.mxu0 %v1186
          %1202 = vmatprep.subr.bf16.mxu0 0
          %1203 = vmatpush1.bf16.msra.mxu0 %v1187
          %1204 = vmatprep.subr.bf16.mxu0 0
          %1205 = vmatpush1.bf16.msra.mxu0 0
          %1206 = vmatprep.subr.bf16.mxu0 0
          %1207 = vmatpush1.bf16.msra.mxu0 0
          %1208 = vmatprep.subr.bf16.mxu0 0
          %1209 = vmatpush1.bf16.msra.mxu0 0
          %1210 = vmatprep.subr.bf16.mxu0 0
          %1211 = vmatpush1.bf16.msra.mxu0 0
          %1212 = vmatprep.subr.bf16.mxu0 0
          %1213 = vmatpush1.bf16.msra.mxu0 0
          %1214 = vmatprep.subr.bf16.mxu0 0
          %1215 = vmatpush1.bf16.msra.mxu0 0
          %1216 = vmatprep.subr.bf16.mxu0 0
          %1217 = vmatpush1.bf16.msra.mxu0 0
          %1218 = vmatprep.subr.bf16.mxu0 0
          %1219 = vmatpush1.bf16.msra.mxu0 0
          %1220 = vmatprep.mubr.bf16.mxu0 0
          %1221 = vmatmul.mubr.bf16.gmra.mrb[0].mxu0 %v1172
          %v1222 = vpop.f32.mrb[0].mxu0
          %v1223 = vadd.f32 0.0, %v1222
          %v1224 = vpop.f32.mrb[0].mxu0
          %v1225 = vpop.f32.mrb[0].mxu0
          %v1226 = vadd.f32 0.0, %v1225
          %v1227 = vpop.f32.mrb[0].mxu0
          %1228 = vmatprep.mubr.bf16.mxu0 0
          %1229 = vmatmul.mubr.bf16.gmra.mrb[0].mxu0 %v1173
          %v1230 = vpop.f32.mrb[0].mxu0
          %v1231 = vadd.f32 0.0, %v1230
          %v1232 = vpop.f32.mrb[0].mxu0
          %v1233 = vpop.f32.mrb[0].mxu0
          %v1234 = vadd.f32 0.0, %v1233
          %v1235 = vpop.f32.mrb[0].mxu0
          %1236 = vmatprep.mubr.bf16.mxu0 0
          %1237 = vmatmul.mubr.bf16.gmra.mrb[0].mxu0 %v1174
          %v1238 = vpop.f32.mrb[0].mxu0
          %v1239 = vadd.f32 0.0, %v1238
          %v1240 = vpop.f32.mrb[0].mxu0
          %v1241 = vpop.f32.mrb[0].mxu0
          %v1242 = vadd.f32 0.0, %v1241
          %v1243 = vpop.f32.mrb[0].mxu0
          %1244 = vmatprep.mubr.bf16.mxu0 0
          %1245 = vmatmul.mubr.bf16.gmra.mrb[0].mxu0 %v1175
          %v1246 = vpop.f32.mrb[0].mxu0
          %v1247 = vadd.f32 0.0, %v1246
          %v1248 = vpop.f32.mrb[0].mxu0
          %v1249 = vpop.f32.mrb[0].mxu0
          %v1250 = vadd.f32 0.0, %v1249
          %v1251 = vpop.f32.mrb[0].mxu0
          %1252 = vmatprep.mubr.bf16.mxu0 0
          %1253 = vmatmul.mubr.bf16.gmra.mrb[0].mxu0 %v1176
          %v1254 = vpop.f32.mrb[0].mxu0
          %v1255 = vadd.f32 0.0, %v1254
          %v1256 = vpop.f32.mrb[0].mxu0
          %v1257 = vpop.f32.mrb[0].mxu0
          %v1258 = vadd.f32 0.0, %v1257
          %v1259 = vpop.f32.mrb[0].mxu0
          %1260 = vmatprep.mubr.bf16.mxu0 0
          %1261 = vmatmul.mubr.bf16.gmra.mrb[0].mxu0 %v1177
          %v1262 = vpop.f32.mrb[0].mxu0
          %v1263 = vadd.f32 0.0, %v1262
          %v1264 = vpop.f32.mrb[0].mxu0
          %v1265 = vpop.f32.mrb[0].mxu0
          %v1266 = vadd.f32 0.0, %v1265
          %v1267 = vpop.f32.mrb[0].mxu0
          %1268 = vmatprep.mubr.bf16.mxu0 0
          %1269 = vmatmul.mubr.bf16.gmra.mrb[0].mxu0 %v1178
          %v1270 = vpop.f32.mrb[0].mxu0
          %v1271 = vadd.f32 0.0, %v1270
          %v1272 = vpop.f32.mrb[0].mxu0
          %v1273 = vpop.f32.mrb[0].mxu0
          %v1274 = vadd.f32 0.0, %v1273
          %v1275 = vpop.f32.mrb[0].mxu0
          %1276 = vmatprep.mubr.bf16.mxu0 0
          %1277 = vmatmul.mubr.bf16.gmra.mrb[0].mxu0 %v1179
          %v1278 = vpop.f32.mrb[0].mxu0
          %v1279 = vadd.f32 0.0, %v1278
          %v1280 = vpop.f32.mrb[0].mxu0
          %v1281 = vpop.f32.mrb[0].mxu0
          %v1282 = vadd.f32 0.0, %v1281
          %v1283 = vpop.f32.mrb[0].mxu0
          %1284 = vdwg.mxu0
          %1286 = vset.pattern.permute.xlu0 0
          %1287 = vperm.xlu0 %1286, %v410
          %v1288 = vpop.permute.xlu0 %1287
          %1291 = vset.pattern.permute.xlu0 0
          %1292 = vperm.xlu0 %1291, %v411
          %v1293 = vpop.permute.xlu0 %1292
          %1296 = vset.pattern.permute.xlu0 0
          %1297 = vperm.xlu0 %1296, %v412
          %v1298 = vpop.permute.xlu0 %1297
          %1301 = vset.pattern.permute.xlu0 0
          %1302 = vperm.xlu0 %1301, %v413
          %v1303 = vpop.permute.xlu0 %1302
          %1306 = vset.pattern.permute.xlu0 0
          %1307 = vperm.xlu0 %1306, %v414
          %v1308 = vpop.permute.xlu0 %1307
          %1311 = vset.pattern.permute.xlu0 0
          %1312 = vperm.xlu0 %1311, %v415
          %v1313 = vpop.permute.xlu0 %1312
          %1316 = vset.pattern.permute.xlu0 0
          %1317 = vperm.xlu0 %1316, %v416
          %v1318 = vpop.permute.xlu0 %1317
          %1321 = vset.pattern.permute.xlu0 0
          %1322 = vperm.xlu0 %1321, %v417
          %v1323 = vpop.permute.xlu0 %1322
          %1326 = vset.pattern.permute.xlu0 0
          %1327 = vperm.xlu0 %1326, %v418
          %v1328 = vpop.permute.xlu0 %1327
          %1331 = vset.pattern.permute.xlu0 0
          %1332 = vperm.xlu0 %1331, %v419
          %v1333 = vpop.permute.xlu0 %1332
          %1336 = vset.pattern.permute.xlu0 0
          %1337 = vperm.xlu0 %1336, %v420
          %v1338 = vpop.permute.xlu0 %1337
          %1341 = vset.pattern.permute.xlu0 0
          %1342 = vperm.xlu0 %1341, %v421
          %v1343 = vpop.permute.xlu0 %1342
          %1346 = vset.pattern.permute.xlu0 0
          %1347 = vperm.xlu0 %1346, %v422
          %v1348 = vpop.permute.xlu0 %1347
          %1351 = vset.pattern.permute.xlu0 0
          %1352 = vperm.xlu0 %1351, %v423
          %v1353 = vpop.permute.xlu0 %1352
          %1356 = vset.pattern.permute.xlu0 0
          %1357 = vperm.xlu0 %1356, %v424
          %v1358 = vpop.permute.xlu0 %1357
          %1361 = vset.pattern.permute.xlu0 0
          %1362 = vperm.xlu0 %1361, %v425
          %v1363 = vpop.permute.xlu0 %1362
          %v1365 = vmul.f32 %v1223, %v1288
          %v1366 = vmul.f32 %v1226, %v1293
          %v1367 = vmul.f32 %v1231, %v1298
          %v1368 = vmul.f32 %v1234, %v1303
          %v1369 = vmul.f32 %v1239, %v1308
          %v1370 = vmul.f32 %v1242, %v1313
          %v1371 = vmul.f32 %v1247, %v1318
          %v1372 = vmul.f32 %v1250, %v1323
          %v1373 = vmul.f32 %v1255, %v1328
          %v1374 = vmul.f32 %v1258, %v1333
          %v1375 = vmul.f32 %v1263, %v1338
          %v1376 = vmul.f32 %v1266, %v1343
          %v1377 = vmul.f32 %v1271, %v1348
          %v1378 = vmul.f32 %v1274, %v1353
          %v1379 = vmul.f32 %v1279, %v1358
          %v1380 = vmul.f32 %v1282, %v1363
          %v1381 = vpack.c.bf16 %v1366, %v1365
          %v1382 = vpack.c.bf16 %v1368, %v1367
          %v1383 = vpack.c.bf16 %v1370, %v1369
          %v1384 = vpack.c.bf16 %v1372, %v1371
          %v1385 = vpack.c.bf16 %v1374, %v1373
          %v1386 = vpack.c.bf16 %v1376, %v1375
          %v1387 = vpack.c.bf16 %v1378, %v1377
          %v1388 = vpack.c.bf16 %v1380, %v1379
          %v1389 = vld [vmem:[#allocation8] sm:$0xf]
          %v1390 = vld [vmem:[#allocation8 + $0x4] sm:$0xf]
          %v1391 = vld [vmem:[#allocation8 + $0x8] sm:$0xf]
          %v1392 = vld [vmem:[#allocation8 + $0xc] sm:$0xf]
          %v1393 = vld [vmem:[#allocation8 + $0x10] sm:$0xf]
          %v1394 = vld [vmem:[#allocation8 + $0x14] sm:$0xf]
          %v1395 = vld [vmem:[#allocation8 + $0x18] sm:$0xf]
          %v1396 = vld [vmem:[#allocation8 + $0x1c] sm:$0xf]
          %v1397 = vld [vmem:[#allocation8 + $0x20] sm:$0xf]
          %v1398 = vld [vmem:[#allocation8 + $0x24] sm:$0xf]
          %v1399 = vld [vmem:[#allocation8 + $0x28] sm:$0xf]
          %v1400 = vld [vmem:[#allocation8 + $0x2c] sm:$0xf]
          %v1401 = vld [vmem:[#allocation8 + $0x30] sm:$0xf]
          %v1402 = vld [vmem:[#allocation8 + $0x34] sm:$0xf]
          %v1403 = vld [vmem:[#allocation8 + $0x38] sm:$0xf]
          %v1404 = vld [vmem:[#allocation8 + $0x3c] sm:$0xf]
          %s1405 = sshra.s32 %s409, 4
          %s1406 = sand.u32 %s409, 15
          %s1407 = smul.addr %s1405, 8
          %s1408 = scalar_lea.vmem [#allocation2], %s1407
          %v1409 = vld [vmem:[%s1408] sm:$0xff]
          %v1410 = vld [vmem:[%s1408 + $0x8] sm:$0xff]
          %v1411 = vld [vmem:[%s1408 + $0x10] sm:$0xff]
          %v1412 = vld [vmem:[%s1408 + $0x18] sm:$0xff]
          %v1413 = vld [vmem:[%s1408 + $0x20] sm:$0xff]
          %v1414 = vld [vmem:[%s1408 + $0x28] sm:$0xff]
          %v1415 = vld [vmem:[%s1408 + $0x30] sm:$0xff]
          %v1416 = vld [vmem:[%s1408 + $0x38] sm:$0xff]
          %v1417 = vld [vmem:[#allocation9] sm:$0xf]
          %v1418 = vld [vmem:[#allocation9 + $0x4] sm:$0xf]
          %v1419 = vld [vmem:[#allocation9 + $0x8] sm:$0xf]
          %v1420 = vld [vmem:[#allocation9 + $0xc] sm:$0xf]
          %v1421 = vld [vmem:[#allocation9 + $0x10] sm:$0xf]
          %v1422 = vld [vmem:[#allocation9 + $0x14] sm:$0xf]
          %v1423 = vld [vmem:[#allocation9 + $0x18] sm:$0xf]
          %v1424 = vld [vmem:[#allocation9 + $0x1c] sm:$0xf]
          %v1425 = vld [vmem:[#allocation9 + $0x20] sm:$0xf]
          %v1426 = vld [vmem:[#allocation9 + $0x24] sm:$0xf]
          %v1427 = vld [vmem:[#allocation9 + $0x28] sm:$0xf]
          %v1428 = vld [vmem:[#allocation9 + $0x2c] sm:$0xf]
          %v1429 = vld [vmem:[#allocation9 + $0x30] sm:$0xf]
          %v1430 = vld [vmem:[#allocation9 + $0x34] sm:$0xf]
          %v1431 = vld [vmem:[#allocation9 + $0x38] sm:$0xf]
          %v1432 = vld [vmem:[#allocation9 + $0x3c] sm:$0xf]
          %v1449 = vunpack.c.l.b16 %v1417
          %v1450 = vunpack.c.l.b16 %v1418
          %v1451 = vunpack.c.l.b16 %v1419
          %v1452 = vunpack.c.l.b16 %v1420
          %v1453 = vunpack.c.l.b16 %v1421
          %v1454 = vunpack.c.l.b16 %v1422
          %v1455 = vunpack.c.l.b16 %v1423
          %v1456 = vunpack.c.l.b16 %v1424
          %v1457 = vunpack.c.l.b16 %v1425
          %v1458 = vunpack.c.l.b16 %v1426
          %v1459 = vunpack.c.l.b16 %v1427
          %v1460 = vunpack.c.l.b16 %v1428
          %v1461 = vunpack.c.l.b16 %v1429
          %v1462 = vunpack.c.l.b16 %v1430
          %v1463 = vunpack.c.l.b16 %v1431
          %v1464 = vunpack.c.l.b16 %v1432
          %v1465 = vpack.c.b16 %v1450, %v1449
          %v1466 = vpack.c.b16 %v1452, %v1451
          %v1467 = vpack.c.b16 %v1454, %v1453
          %v1468 = vpack.c.b16 %v1456, %v1455
          %v1469 = vpack.c.b16 %v1458, %v1457
          %v1470 = vpack.c.b16 %v1460, %v1459
          %v1471 = vpack.c.b16 %v1462, %v1461
          %v1472 = vpack.c.b16 %v1464, %v1463
          %1481 = vmatprep.subr.bf16.mxu0 0
          %1482 = vmatpush1.bf16.msra.mxu0 %v1465
          %1483 = vmatprep.subr.bf16.mxu0 0
          %1484 = vmatpush1.bf16.msra.mxu0 %v1466
          %1485 = vmatprep.subr.bf16.mxu0 0
          %1486 = vmatpush1.bf16.msra.mxu0 %v1467
          %1487 = vmatprep.subr.bf16.mxu0 0
          %1488 = vmatpush1.bf16.msra.mxu0 %v1468
          %1489 = vmatprep.subr.bf16.mxu0 0
          %1490 = vmatpush1.bf16.msra.mxu0 %v1469
          %1491 = vmatprep.subr.bf16.mxu0 0
          %1492 = vmatpush1.bf16.msra.mxu0 %v1470
          %1493 = vmatprep.subr.bf16.mxu0 0
          %1494 = vmatpush1.bf16.msra.mxu0 %v1471
          %1495 = vmatprep.subr.bf16.mxu0 0
          %1496 = vmatpush1.bf16.msra.mxu0 %v1472
          %1497 = vmatprep.subr.bf16.mxu0 0
          %1498 = vmatpush1.bf16.msra.mxu0 0
          %1499 = vmatprep.subr.bf16.mxu0 0
          %1500 = vmatpush1.bf16.msra.mxu0 0
          %1501 = vmatprep.subr.bf16.mxu0 0
          %1502 = vmatpush1.bf16.msra.mxu0 0
          %1503 = vmatprep.subr.bf16.mxu0 0
          %1504 = vmatpush1.bf16.msra.mxu0 0
          %1505 = vmatprep.subr.bf16.mxu0 0
          %1506 = vmatpush1.bf16.msra.mxu0 0
          %1507 = vmatprep.subr.bf16.mxu0 0
          %1508 = vmatpush1.bf16.msra.mxu0 0
          %1509 = vmatprep.subr.bf16.mxu0 0
          %1510 = vmatpush1.bf16.msra.mxu0 0
          %1511 = vmatprep.subr.bf16.mxu0 0
          %1512 = vmatpush1.bf16.msra.mxu0 0
          %1513 = vmatprep.mubr.bf16.mxu0 0
          %1514 = vmatmul.mubr.bf16.gmra.mrb[0].mxu0 %v1409
          %v1515 = vpop.f32.mrb[0].mxu0
          %v1516 = vadd.f32 0.0, %v1515
          %v1517 = vpop.f32.mrb[0].mxu0
          %v1518 = vpop.f32.mrb[0].mxu0
          %v1519 = vadd.f32 0.0, %v1518
          %v1520 = vpop.f32.mrb[0].mxu0
          %1521 = vmatprep.mubr.bf16.mxu0 0
          %1522 = vmatmul.mubr.bf16.gmra.mrb[0].mxu0 %v1410
          %v1523 = vpop.f32.mrb[0].mxu0
          %v1524 = vadd.f32 0.0, %v1523
          %v1525 = vpop.f32.mrb[0].mxu0
          %v1526 = vpop.f32.mrb[0].mxu0
          %v1527 = vadd.f32 0.0, %v1526
          %v1528 = vpop.f32.mrb[0].mxu0
          %1529 = vmatprep.mubr.bf16.mxu0 0
          %1530 = vmatmul.mubr.bf16.gmra.mrb[0].mxu0 %v1411
          %v1531 = vpop.f32.mrb[0].mxu0
          %v1532 = vadd.f32 0.0, %v1531
          %v1533 = vpop.f32.mrb[0].mxu0
          %v1534 = vpop.f32.mrb[0].mxu0
          %v1535 = vadd.f32 0.0, %v1534
          %v1536 = vpop.f32.mrb[0].mxu0
          %1537 = vmatprep.mubr.bf16.mxu0 0
          %1538 = vmatmul.mubr.bf16.gmra.mrb[0].mxu0 %v1412
          %v1539 = vpop.f32.mrb[0].mxu0
          %v1540 = vadd.f32 0.0, %v1539
          %v1541 = vpop.f32.mrb[0].mxu0
          %v1542 = vpop.f32.mrb[0].mxu0
          %v1543 = vadd.f32 0.0, %v1542
          %v1544 = vpop.f32.mrb[0].mxu0
          %1545 = vmatprep.mubr.bf16.mxu0 0
          %1546 = vmatmul.mubr.bf16.gmra.mrb[0].mxu0 %v1413
          %v1547 = vpop.f32.mrb[0].mxu0
          %v1548 = vadd.f32 0.0, %v1547
          %v1549 = vpop.f32.mrb[0].mxu0
          %v1550 = vpop.f32.mrb[0].mxu0
          %v1551 = vadd.f32 0.0, %v1550
          %v1552 = vpop.f32.mrb[0].mxu0
          %1553 = vmatprep.mubr.bf16.mxu0 0
          %1554 = vmatmul.mubr.bf16.gmra.mrb[0].mxu0 %v1414
          %v1555 = vpop.f32.mrb[0].mxu0
          %v1556 = vadd.f32 0.0, %v1555
          %v1557 = vpop.f32.mrb[0].mxu0
          %v1558 = vpop.f32.mrb[0].mxu0
          %v1559 = vadd.f32 0.0, %v1558
          %v1560 = vpop.f32.mrb[0].mxu0
          %1561 = vmatprep.mubr.bf16.mxu0 0
          %1562 = vmatmul.mubr.bf16.gmra.mrb[0].mxu0 %v1415
          %v1563 = vpop.f32.mrb[0].mxu0
          %v1564 = vadd.f32 0.0, %v1563
          %v1565 = vpop.f32.mrb[0].mxu0
          %v1566 = vpop.f32.mrb[0].mxu0
          %v1567 = vadd.f32 0.0, %v1566
          %v1568 = vpop.f32.mrb[0].mxu0
          %1569 = vmatprep.mubr.bf16.mxu0 0
          %1570 = vmatmul.mubr.bf16.gmra.mrb[0].mxu0 %v1416
          %v1571 = vpop.f32.mrb[0].mxu0
          %v1572 = vadd.f32 0.0, %v1571
          %v1573 = vpop.f32.mrb[0].mxu0
          %v1574 = vpop.f32.mrb[0].mxu0
          %v1575 = vadd.f32 0.0, %v1574
          %v1576 = vpop.f32.mrb[0].mxu0
          %1577 = vdwg.mxu0
          %v1594 = vunpack.c.l.b16 %v1389
          %v1595 = vunpack.c.l.b16 %v1390
          %v1596 = vunpack.c.l.b16 %v1391
          %v1597 = vunpack.c.l.b16 %v1392
          %v1598 = vunpack.c.l.b16 %v1393
          %v1599 = vunpack.c.l.b16 %v1394
          %v1600 = vunpack.c.l.b16 %v1395
          %v1601 = vunpack.c.l.b16 %v1396
          %v1602 = vunpack.c.l.b16 %v1397
          %v1603 = vunpack.c.l.b16 %v1398
          %v1604 = vunpack.c.l.b16 %v1399
          %v1605 = vunpack.c.l.b16 %v1400
          %v1606 = vunpack.c.l.b16 %v1401
          %v1607 = vunpack.c.l.b16 %v1402
          %v1608 = vunpack.c.l.b16 %v1403
          %v1609 = vunpack.c.l.b16 %v1404
          %v1610 = vpack.c.b16 %v1595, %v1594
          %v1611 = vpack.c.b16 %v1597, %v1596
          %v1612 = vpack.c.b16 %v1599, %v1598
          %v1613 = vpack.c.b16 %v1601, %v1600
          %v1614 = vpack.c.b16 %v1603, %v1602
          %v1615 = vpack.c.b16 %v1605, %v1604
          %v1616 = vpack.c.b16 %v1607, %v1606
          %v1617 = vpack.c.b16 %v1609, %v1608
          %1626 = vmatprep.subr.bf16.mxu0 0
          %1627 = vmatpush1.bf16.msra.mxu0 %v1610
          %1628 = vmatprep.subr.bf16.mxu0 0
          %1629 = vmatpush1.bf16.msra.mxu0 %v1611
          %1630 = vmatprep.subr.bf16.mxu0 0
          %1631 = vmatpush1.bf16.msra.mxu0 %v1612
          %1632 = vmatprep.subr.bf16.mxu0 0
          %1633 = vmatpush1.bf16.msra.mxu0 %v1613
          %1634 = vmatprep.subr.bf16.mxu0 0
          %1635 = vmatpush1.bf16.msra.mxu0 %v1614
          %1636 = vmatprep.subr.bf16.mxu0 0
          %1637 = vmatpush1.bf16.msra.mxu0 %v1615
          %1638 = vmatprep.subr.bf16.mxu0 0
          %1639 = vmatpush1.bf16.msra.mxu0 %v1616
          %1640 = vmatprep.subr.bf16.mxu0 0
          %1641 = vmatpush1.bf16.msra.mxu0 %v1617
          %1642 = vmatprep.subr.bf16.mxu0 0
          %1643 = vmatpush1.bf16.msra.mxu0 0
          %1644 = vmatprep.subr.bf16.mxu0 0
          %1645 = vmatpush1.bf16.msra.mxu0 0
          %1646 = vmatprep.subr.bf16.mxu0 0
          %1647 = vmatpush1.bf16.msra.mxu0 0
          %1648 = vmatprep.subr.bf16.mxu0 0
          %1649 = vmatpush1.bf16.msra.mxu0 0
          %1650 = vmatprep.subr.bf16.mxu0 0
          %1651 = vmatpush1.bf16.msra.mxu0 0
          %1652 = vmatprep.subr.bf16.mxu0 0
          %1653 = vmatpush1.bf16.msra.mxu0 0
          %1654 = vmatprep.subr.bf16.mxu0 0
          %1655 = vmatpush1.bf16.msra.mxu0 0
          %1656 = vmatprep.subr.bf16.mxu0 0
          %1657 = vmatpush1.bf16.msra.mxu0 0
          %1658 = vmatprep.mubr.bf16.mxu0 0
          %1659 = vmatmul.mubr.bf16.gmra.mrb[0].mxu0 %v1381
          %v1660 = vpop.f32.mrb[0].mxu0
          %v1661 = vadd.f32 %v1516, %v1660
          %v1662 = vpop.f32.mrb[0].mxu0
          %v1663 = vpop.f32.mrb[0].mxu0
          %v1664 = vadd.f32 %v1519, %v1663
          %v1665 = vpop.f32.mrb[0].mxu0
          %1666 = vmatprep.mubr.bf16.mxu0 0
          %1667 = vmatmul.mubr.bf16.gmra.mrb[0].mxu0 %v1382
          %v1668 = vpop.f32.mrb[0].mxu0
          %v1669 = vadd.f32 %v1524, %v1668
          %v1670 = vpop.f32.mrb[0].mxu0
          %v1671 = vpop.f32.mrb[0].mxu0
          %v1672 = vadd.f32 %v1527, %v1671
          %v1673 = vpop.f32.mrb[0].mxu0
          %1674 = vmatprep.mubr.bf16.mxu0 0
          %1675 = vmatmul.mubr.bf16.gmra.mrb[0].mxu0 %v1383
          %v1676 = vpop.f32.mrb[0].mxu0
          %v1677 = vadd.f32 %v1532, %v1676
          %v1678 = vpop.f32.mrb[0].mxu0
          %v1679 = vpop.f32.mrb[0].mxu0
          %v1680 = vadd.f32 %v1535, %v1679
          %v1681 = vpop.f32.mrb[0].mxu0
          %1682 = vmatprep.mubr.bf16.mxu0 0
          %1683 = vmatmul.mubr.bf16.gmra.mrb[0].mxu0 %v1384
          %v1684 = vpop.f32.mrb[0].mxu0
          %v1685 = vadd.f32 %v1540, %v1684
          %v1686 = vpop.f32.mrb[0].mxu0
          %v1687 = vpop.f32.mrb[0].mxu0
          %v1688 = vadd.f32 %v1543, %v1687
          %v1689 = vpop.f32.mrb[0].mxu0
          %1690 = vmatprep.mubr.bf16.mxu0 0
          %1691 = vmatmul.mubr.bf16.gmra.mrb[0].mxu0 %v1385
          %v1692 = vpop.f32.mrb[0].mxu0
          %v1693 = vadd.f32 %v1548, %v1692
          %v1694 = vpop.f32.mrb[0].mxu0
          %v1695 = vpop.f32.mrb[0].mxu0
          %v1696 = vadd.f32 %v1551, %v1695
          %v1697 = vpop.f32.mrb[0].mxu0
          %1698 = vmatprep.mubr.bf16.mxu0 0
          %1699 = vmatmul.mubr.bf16.gmra.mrb[0].mxu0 %v1386
          %v1700 = vpop.f32.mrb[0].mxu0
          %v1701 = vadd.f32 %v1556, %v1700
          %v1702 = vpop.f32.mrb[0].mxu0
          %v1703 = vpop.f32.mrb[0].mxu0
          %v1704 = vadd.f32 %v1559, %v1703
          %v1705 = vpop.f32.mrb[0].mxu0
          %1706 = vmatprep.mubr.bf16.mxu0 0
          %1707 = vmatmul.mubr.bf16.gmra.mrb[0].mxu0 %v1387
          %v1708 = vpop.f32.mrb[0].mxu0
          %v1709 = vadd.f32 %v1564, %v1708
          %v1710 = vpop.f32.mrb[0].mxu0
          %v1711 = vpop.f32.mrb[0].mxu0
          %v1712 = vadd.f32 %v1567, %v1711
          %v1713 = vpop.f32.mrb[0].mxu0
          %1714 = vmatprep.mubr.bf16.mxu0 0
          %1715 = vmatmul.mubr.bf16.gmra.mrb[0].mxu0 %v1388
          %v1716 = vpop.f32.mrb[0].mxu0
          %v1717 = vadd.f32 %v1572, %v1716
          %v1718 = vpop.f32.mrb[0].mxu0
          %v1719 = vpop.f32.mrb[0].mxu0
          %v1720 = vadd.f32 %v1575, %v1719
          %v1721 = vpop.f32.mrb[0].mxu0
          %1722 = vdwg.mxu0
          %v1723 = vld [vmem:[%s8] sm:$0x1]
          %v1725 = vlaneseq
          %v1726 = vshrl.u32 %v1725, 7
          %v1727 = vsub.s32 0, %v1726
          %v1728 = vrot.slane %v1723, %v1727
          %v1730 = vadd.f32 %v1661, %v1728
          %v1731 = vadd.f32 %v1664, %v1728
          %v1732 = vadd.f32 %v1669, %v1728
          %v1733 = vadd.f32 %v1672, %v1728
          %v1734 = vadd.f32 %v1677, %v1728
          %v1735 = vadd.f32 %v1680, %v1728
          %v1736 = vadd.f32 %v1685, %v1728
          %v1737 = vadd.f32 %v1688, %v1728
          %v1738 = vadd.f32 %v1693, %v1728
          %v1739 = vadd.f32 %v1696, %v1728
          %v1740 = vadd.f32 %v1701, %v1728
          %v1741 = vadd.f32 %v1704, %v1728
          %v1742 = vadd.f32 %v1709, %v1728
          %v1743 = vadd.f32 %v1712, %v1728
          %v1744 = vadd.f32 %v1717, %v1728
          %v1745 = vadd.f32 %v1720, %v1728
          %v1746 = vpack.c.bf16 %v1731, %v1730
          %v1747 = vpack.c.bf16 %v1733, %v1732
          %v1748 = vpack.c.bf16 %v1735, %v1734
          %v1749 = vpack.c.bf16 %v1737, %v1736
          %v1750 = vpack.c.bf16 %v1739, %v1738
          %v1751 = vpack.c.bf16 %v1741, %v1740
          %v1752 = vpack.c.bf16 %v1743, %v1742
          %v1753 = vpack.c.bf16 %v1745, %v1744
          %v1762 = vunpack.c.l.b16 %v1746
          %v1763 = vunpack.c.h.b16 %v1746
          %v1764 = vunpack.c.l.b16 %v1747
          %v1765 = vunpack.c.h.b16 %v1747
          %v1766 = vunpack.c.l.b16 %v1748
          %v1767 = vunpack.c.h.b16 %v1748
          %v1768 = vunpack.c.l.b16 %v1749
          %v1769 = vunpack.c.h.b16 %v1749
          %v1770 = vunpack.c.l.b16 %v1750
          %v1771 = vunpack.c.h.b16 %v1750
          %v1772 = vunpack.c.l.b16 %v1751
          %v1773 = vunpack.c.h.b16 %v1751
          %v1774 = vunpack.c.l.b16 %v1752
          %v1775 = vunpack.c.h.b16 %v1752
          %v1776 = vunpack.c.l.b16 %v1753
          %v1777 = vunpack.c.h.b16 %v1753
          %v1778 = vpack.c.b16 %v1762, %v1762
          %v1779 = vpack.c.b16 %v1763, %v1763
          %v1780 = vpack.c.b16 %v1764, %v1764
          %v1781 = vpack.c.b16 %v1765, %v1765
          %v1782 = vpack.c.b16 %v1766, %v1766
          %v1783 = vpack.c.b16 %v1767, %v1767
          %v1784 = vpack.c.b16 %v1768, %v1768
          %v1785 = vpack.c.b16 %v1769, %v1769
          %v1786 = vpack.c.b16 %v1770, %v1770
          %v1787 = vpack.c.b16 %v1771, %v1771
          %v1788 = vpack.c.b16 %v1772, %v1772
          %v1789 = vpack.c.b16 %v1773, %v1773
          %v1790 = vpack.c.b16 %v1774, %v1774
          %v1791 = vpack.c.b16 %v1775, %v1775
          %v1792 = vpack.c.b16 %v1776, %v1776
          %v1793 = vpack.c.b16 %v1777, %v1777
          %1810 = vst [vmem:[%s399] sm:$0xf] %v1778
          %1811 = vst [vmem:[%s399 + $0x4] sm:$0xf] %v1779
          %1812 = vst [vmem:[%s399 + $0x8] sm:$0xf] %v1780
          %1813 = vst [vmem:[%s399 + $0xc] sm:$0xf] %v1781
          %1814 = vst [vmem:[%s399 + $0x10] sm:$0xf] %v1782
          %1815 = vst [vmem:[%s399 + $0x14] sm:$0xf] %v1783
          %1816 = vst [vmem:[%s399 + $0x18] sm:$0xf] %v1784
          %1817 = vst [vmem:[%s399 + $0x1c] sm:$0xf] %v1785
          %1818 = vst [vmem:[%s399 + $0x20] sm:$0xf] %v1786
          %1819 = vst [vmem:[%s399 + $0x24] sm:$0xf] %v1787
          %1820 = vst [vmem:[%s399 + $0x28] sm:$0xf] %v1788
          %1821 = vst [vmem:[%s399 + $0x2c] sm:$0xf] %v1789
          %1822 = vst [vmem:[%s399 + $0x30] sm:$0xf] %v1790
          %1823 = vst [vmem:[%s399 + $0x34] sm:$0xf] %v1791
          %1824 = vst [vmem:[%s399 + $0x38] sm:$0xf] %v1792
          %1825 = vst [vmem:[%s399 + $0x3c] sm:$0xf] %v1793
        $region80: #{tpu_custom_call.1} parent=55 // pred_fallthru
          _
        %s1826 = sand.u32 %s242, 1
        %s1827 = scalar_lea.sflag [#allocation5], %s1826
        %s1828 = sand.u32 %s242, 1
        %s1829 = smul.addr %s1828, 64
        %s1830 = scalar_lea.vmem [#allocation11], %s1829
        // Predicated region
        $region81: #{tpu_custom_call.1} parent=55 // pred_check
          %p1831 = pneg %p252
        $region82: #{tpu_custom_call.1} parent=55 // pred_check_branch
          %1833 = sbr.rel (%p1831) target = $region84
        $region83: #{tpu_custom_call.1} parent=55 // pred_region
          %s1834 = smul.u32 %s30, %s31
          %s1835 = smul.u32 16, %s1834
          %s1837 = ssub.s32 1024, 1024
          %1838 = vsyncadd %s1827, %s1837
          %s1839 = smul.addr %s1835, 64
          %s1840 = scalar_lea.hbm %s9, %s1839
          %s1841 = sshll.u32 %s1830, 4
          %s1842 = int_to_ptr.vmem [resolvable:$true] %s1841
          %1847 = dma.vmem_to_hbm [thread:$0]  %s1842, 1024, %s1840, %s1827, 64, 64, 4
        $region84: #{tpu_custom_call.1} parent=55 // pred_fallthru
          _
      $region56: #{tpu_custom_call.1} parent=5 // pred_fallthru
        _
      %p1848 = scmp.le.s32.totalorder 2, %s21
      // Predicated region
      $region85: #{tpu_custom_call.1} parent=5 // pred_check
        %p1849 = pneg %p1848
      $region86: #{tpu_custom_call.1} parent=5 // pred_check_branch
        %1851 = sbr.rel (%p1849) target = $region88
      $region87: #{tpu_custom_call.1} parent=5 // pred_region
        %s1852 = ssub.s32 %s21, 2
        // Predicated region
        $region89: #{tpu_custom_call.1} parent=87 // pred_check
          %p1853 = pneg %p258
        $region90: #{tpu_custom_call.1} parent=87 // pred_check_branch
          %1855 = sbr.rel (%p1853) target = $region92
        $region91: #{tpu_custom_call.1} parent=87 // pred_region
          %s1856 = sand.u32 %s243, 1
          %s1857 = scalar_lea.sflag [#allocation5], %s1856
          %s1858 = sand.u32 %s243, 1
          %s1859 = smul.addr %s1858, 64
          %s1860 = scalar_lea.vmem [#allocation11], %s1859
          %1861 = dma.done %s1857, 1024
        $region92: #{tpu_custom_call.1} parent=87 // pred_fallthru
          _
      $region88: #{tpu_custom_call.1} parent=5 // pred_fallthru
        _
    $region6: #{tpu_custom_call.1} parent=1 // loop_footer
      %s25 = sadd.s32 1, %s21
    $region7: #{tpu_custom_call.1} parent=1 // loop_footer_branch
      %20 = sbr.rel target = $region3
    $region8: #{tpu_custom_call.1} parent=1 // loop_exit
      _
    %1862 = vsyncpa [#allocation4], 1
    %s1863 = scalar_lea.sflag [#allocation4], 1
    %1864 = vsyncpa %s1863, 1
    %1865 = vsyncpa [#allocation7], 1
    %1866 = vsyncpa [#allocation10], 1
    %1867 = vsyncpa [#allocation5], 1
    %s1868 = scalar_lea.sflag [#allocation5], 1
    %1869 = vsyncpa %s1868, 1

// kernel: tpu_custom_call.1
$region0: #{tpu_custom_call.1}
  #allocation0 [shape = 'u32[]', space=smem, size = 0x4, offset = 0x4, fixed_abs, tag = 'smem constant byte address 0x4 - core index']
  #allocation1 [shape = 'u32[144,128]{1,0:T(1,128)}', space=vmem, size = 0x12000, scoped, tag = 'internal scratch']
  #allocation2 [shape = 'bf16[128,128]{1,0:T(16,128)(2,1)}', space=vmem, size = 0x8000, scoped, tag = 'scratch operand']
  %s0 = inlined_call_operand.hbm [shape: s8[128,128], index: 0, kind: input, shape index: {}]
  %s1 = inlined_call_operand.vmem [shape: bf16[128,128], index: 1, kind: input, shape index: {}]
  %s2 = inlined_call_operand.vmem [shape: f32[128,1], index: 2, kind: input, shape index: {}]
  %s3 = inlined_call_operand.vmem [shape: bf16[128,128], index: 3, kind: input, shape index: {}]
  %s4 = inlined_call_operand.hbm [shape: bf16[128,128], index: 4, kind: input, shape index: {}]
  %s5 = inlined_call_operand.vmem [shape: f32[1,128], index: 5, kind: input, shape index: {}]
  %s6 = inlined_call_operand.hbm [shape: bf16[128,128], index: 6, kind: input, shape index: {}]
  %s7 = inlined_call_operand.hbm [shape: bf16[128,128], index: 7, kind: input, shape index: {}]
  %s8 = inlined_call_operand.vmem [shape: f32[1,128], index: 8, kind: input, shape index: {}]
  %s9 = inlined_call_operand.hbm [shape: bf16[128,128], index: 9, kind: output, shape index: {}]
  %s10 = sld [smem:[#allocation0]]
  $region93: #{tpu_custom_call.1} parent=0
    _
  %s12 = ssub.s32 1, %s10
  %s13 = scalar_select 0, %s12, %s10
  $region1: #{tpu_custom_call.1} parent=0
    #allocation3 [shape = 'u8[16384]{0}', space=vmem, size = 0x4000, scoped, tag = 'input window, operand 0, single buffered']
    #allocation4 [shape = 's32[2]{0}', space=sflag, size = 0x8, scoped, tag = 'scoped memory for tpu_custom_call.1']
    #allocation5 [shape = 's32[2]{0}', space=sflag, size = 0x8, scoped, tag = 'scoped memory for tpu_custom_call.1']
    #allocation6 [shape = 'u8[32768]{0}', space=vmem, size = 0x8000, scoped, tag = 'input window, operand 4, single buffered']
    #allocation7 [shape = 's32[1]{0}', space=sflag, size = 0x4, scoped, tag = 'scoped memory for tpu_custom_call.1']
    #allocation8 [shape = 'u8[32768]{0}', space=vmem, size = 0x8000, scoped, tag = 'input window, operand 6, single buffered']
    #allocation9 [shape = 'u8[32768]{0}', space=vmem, size = 0x8000, scoped, tag = 'input window, operand 7, single buffered']
    #allocation10 [shape = 's32[1]{0}', space=sflag, size = 0x4, scoped, tag = 'scoped memory for tpu_custom_call.1']
    #allocation11 [shape = 'u8[65536]{0}', space=vmem, size = 0x10000, scoped, tag = 'output window, operand 0']
    %14 = vsyncpa [#allocation4], 0
    %15 = vsyncpa [#allocation7], 0
    %16 = vsyncpa [#allocation10], 0
    %17 = vsyncpa [#allocation5], 0
    %s18 = scalar_lea.sflag [#allocation5], 1
    %19 = vsyncpa %s18, 0
    loop: start=0, step=1, limit=4
    $region2: #{tpu_custom_call.1} parent=1 // loop_pre_header
      _
    $region3: #{tpu_custom_call.1} parent=1 // loop_header
      %s21 = sphi 0, %s25
      %p22 = scmp.ge.s32.totalorder %s21, 4
      %s28 = sphi 0, %s40
      %s29 = sphi 0, %s36
      %s30 = sphi 0, %s28
      %s31 = sphi 0, %s29
      %s32 = sphi 0, %s30
      %s33 = sphi 0, %s31
      %s41 = sphi 0, %s41
      %s43 = sphi 0, %s41
      %s44 = sphi 0, %s43
      %s58 = sphi 0, %s44
      %s62 = sphi 0, %s62
      %s64 = sphi 0, %s62
      %s65 = sphi 0, %s64
      %s79 = sphi 0, %s65
      %s85 = sphi 0, %s87
      %s88 = sphi 0, %s85
      %s89 = sphi 0, %s88
      %s105 = sphi 0, %s89
      %s109 = sphi 0, %s109
      %s111 = sphi 0, %s109
      %s112 = sphi 0, %s111
      %s126 = sphi 0, %s112
      %s130 = sphi 0, %s130
      %s132 = sphi 0, %s130
      %s133 = sphi 0, %s132
      %s147 = sphi 0, %s133
      %s151 = sphi 0, %s151
      %s153 = sphi 0, %s151
      %s154 = sphi 0, %s153
      %s168 = sphi 0, %s154
      %s172 = sphi 0, %s172
      %s174 = sphi 0, %s172
      %s175 = sphi 0, %s174
      %s189 = sphi 0, %s175
      %s193 = sphi 0, %s193
      %s195 = sphi 0, %s193
      %s196 = sphi 0, %s195
      %s210 = sphi 0, %s196
      %s214 = sphi 0, %s214
      %s216 = sphi 0, %s214
      %s217 = sphi 0, %s216
      %s231 = sphi 0, %s217
      %s239 = sphi 0, %s241
      %s242 = sphi 0, %s239
      %s243 = sphi 0, %s242
      %s259 = sphi 0, %s243
    $region4: #{tpu_custom_call.1} parent=1 // loop_header_branch
      %24 = sbr.rel (%p22) target = $region8
    $region5: #{tpu_custom_call.1} parent=1 // loop_body
      %s26 = ssub.s32 %s21, 1
      %s27 = ssub.s32 %s21, 2
      %s34 = sadd.s32 1, %s29
      %p35 = scmp.ge.s32.totalorder %s34, 1
      %s36 = scalar_select %p35, 0, %s34
      %s37 = sadd.s32 1, %s28
      %s38 = scalar_select %p35, %s37, %s28
      %p39 = scmp.ge.s32.totalorder %s38, 2
      %s40 = scalar_select %p39, 0, %s38
      %s42 = sadd.s32 %s41, 1
      %p45 = scmp.eq.s32.totalorder %s21, 1
      %p46 = scmp.ne.s32.totalorder %s41, %s43
      %p47 = scmp.eq.s32.totalorder %s21, 0
      %p48 = por %p46, %p47
      %p49 = scmp.ne.s32.totalorder %s41, %s43
      %p50 = scmp.eq.s32.totalorder %s26, 1
      %p51 = por %p49, %p50
      %p52 = scmp.ne.s32.totalorder %s43, %s44
      %p53 = scmp.eq.s32.totalorder %s26, 0
      %p54 = por %p52, %p53
      %p55 = scmp.ne.s32.totalorder %s43, %s44
      %p56 = scmp.eq.s32.totalorder %s27, 1
      %p57 = por %p55, %p56
      %p59 = scmp.ne.s32.totalorder %s44, %s58
      %p60 = scmp.eq.s32.totalorder %s27, 0
      %p61 = por %p59, %p60
      %s63 = sadd.s32 %s62, 1
      %p66 = scmp.eq.s32.totalorder %s21, 1
      %p67 = scmp.ne.s32.totalorder %s62, %s64
      %p68 = scmp.eq.s32.totalorder %s21, 0
      %p69 = por %p67, %p68
      %p70 = scmp.ne.s32.totalorder %s62, %s64
      %p71 = scmp.eq.s32.totalorder %s26, 1
      %p72 = por %p70, %p71
      %p73 = scmp.ne.s32.totalorder %s64, %s65
      %p74 = scmp.eq.s32.totalorder %s26, 0
      %p75 = por %p73, %p74
      %p76 = scmp.ne.s32.totalorder %s64, %s65
      %p77 = scmp.eq.s32.totalorder %s27, 1
      %p78 = por %p76, %p77
      %p80 = scmp.ne.s32.totalorder %s65, %s79
      %p81 = scmp.eq.s32.totalorder %s27, 0
      %p82 = por %p80, %p81
      %s83 = ssub.s32 %s29, %s36
      %p84 = scmp.eq.s32.totalorder %s83, 0
      %s86 = sadd.s32 %s85, 1
      %s87 = scalar_select %p84, %s85, %s86
      %p90 = pneg %p84
      %p91 = scmp.eq.s32.totalorder %s21, 1
      %p92 = por %p90, %p91
      %p93 = scmp.ne.s32.totalorder %s85, %s88
      %p94 = scmp.eq.s32.totalorder %s21, 0
      %p95 = por %p93, %p94
      %p96 = scmp.ne.s32.totalorder %s85, %s88
      %p97 = scmp.eq.s32.totalorder %s26, 1
      %p98 = por %p96, %p97
      %p99 = scmp.ne.s32.totalorder %s88, %s89
      %p100 = scmp.eq.s32.totalorder %s26, 0
      %p101 = por %p99, %p100
      %p102 = scmp.ne.s32.totalorder %s88, %s89
      %p103 = scmp.eq.s32.totalorder %s27, 1
      %p104 = por %p102, %p103
      %p106 = scmp.ne.s32.totalorder %s89, %s105
      %p107 = scmp.eq.s32.totalorder %s27, 0
      %p108 = por %p106, %p107
      %s110 = sadd.s32 %s109, 1
      %p113 = scmp.eq.s32.totalorder %s21, 1
      %p114 = scmp.ne.s32.totalorder %s109, %s111
      %p115 = scmp.eq.s32.totalorder %s21, 0
      %p116 = por %p114, %p115
      %p117 = scmp.ne.s32.totalorder %s109, %s111
      %p118 = scmp.eq.s32.totalorder %s26, 1
      %p119 = por %p117, %p118
      %p120 = scmp.ne.s32.totalorder %s111, %s112
      %p121 = scmp.eq.s32.totalorder %s26, 0
      %p122 = por %p120, %p121
      %p123 = scmp.ne.s32.totalorder %s111, %s112
      %p124 = scmp.eq.s32.totalorder %s27, 1
      %p125 = por %p123, %p124
      %p127 = scmp.ne.s32.totalorder %s112, %s126
      %p128 = scmp.eq.s32.totalorder %s27, 0
      %p129 = por %p127, %p128
      %s131 = sadd.s32 %s130, 1
      %p134 = scmp.eq.s32.totalorder %s21, 1
      %p135 = scmp.ne.s32.totalorder %s130, %s132
      %p136 = scmp.eq.s32.totalorder %s21, 0
      %p137 = por %p135, %p136
      %p138 = scmp.ne.s32.totalorder %s130, %s132
      %p139 = scmp.eq.s32.totalorder %s26, 1
      %p140 = por %p138, %p139
      %p141 = scmp.ne.s32.totalorder %s132, %s133
      %p142 = scmp.eq.s32.totalorder %s26, 0
      %p143 = por %p141, %p142
      %p144 = scmp.ne.s32.totalorder %s132, %s133
      %p145 = scmp.eq.s32.totalorder %s27, 1
      %p146 = por %p144, %p145
      %p148 = scmp.ne.s32.totalorder %s133, %s147
      %p149 = scmp.eq.s32.totalorder %s27, 0
      %p150 = por %p148, %p149
      %s152 = sadd.s32 %s151, 1
      %p155 = scmp.eq.s32.totalorder %s21, 1
      %p156 = scmp.ne.s32.totalorder %s151, %s153
      %p157 = scmp.eq.s32.totalorder %s21, 0
      %p158 = por %p156, %p157
      %p159 = scmp.ne.s32.totalorder %s151, %s153
      %p160 = scmp.eq.s32.totalorder %s26, 1
      %p161 = por %p159, %p160
      %p162 = scmp.ne.s32.totalorder %s153, %s154
      %p163 = scmp.eq.s32.totalorder %s26, 0
      %p164 = por %p162, %p163
      %p165 = scmp.ne.s32.totalorder %s153, %s154
      %p166 = scmp.eq.s32.totalorder %s27, 1
      %p167 = por %p165, %p166
      %p169 = scmp.ne.s32.totalorder %s154, %s168
      %p170 = scmp.eq.s32.totalorder %s27, 0
      %p171 = por %p169, %p170
      %s173 = sadd.s32 %s172, 1
      %p176 = scmp.eq.s32.totalorder %s21, 1
      %p177 = scmp.ne.s32.totalorder %s172, %s174
      %p178 = scmp.eq.s32.totalorder %s21, 0
      %p179 = por %p177, %p178
      %p180 = scmp.ne.s32.totalorder %s172, %s174
      %p181 = scmp.eq.s32.totalorder %s26, 1
      %p182 = por %p180, %p181
      %p183 = scmp.ne.s32.totalorder %s174, %s175
      %p184 = scmp.eq.s32.totalorder %s26, 0
      %p185 = por %p183, %p184
      %p186 = scmp.ne.s32.totalorder %s174, %s175
      %p187 = scmp.eq.s32.totalorder %s27, 1
      %p188 = por %p186, %p187
      %p190 = scmp.ne.s32.totalorder %s175, %s189
      %p191 = scmp.eq.s32.totalorder %s27, 0
      %p192 = por %p190, %p191
      %s194 = sadd.s32 %s193, 1
      %p197 = scmp.eq.s32.totalorder %s21, 1
      %p198 = scmp.ne.s32.totalorder %s193, %s195
      %p199 = scmp.eq.s32.totalorder %s21, 0
      %p200 = por %p198, %p199
      %p201 = scmp.ne.s32.totalorder %s193, %s195
      %p202 = scmp.eq.s32.totalorder %s26, 1
      %p203 = por %p201, %p202
      %p204 = scmp.ne.s32.totalorder %s195, %s196
      %p205 = scmp.eq.s32.totalorder %s26, 0
      %p206 = por %p204, %p205
      %p207 = scmp.ne.s32.totalorder %s195, %s196
      %p208 = scmp.eq.s32.totalorder %s27, 1
      %p209 = por %p207, %p208
      %p211 = scmp.ne.s32.totalorder %s196, %s210
      %p212 = scmp.eq.s32.totalorder %s27, 0
      %p213 = por %p211, %p212
      %s215 = sadd.s32 %s214, 1
      %p218 = scmp.eq.s32.totalorder %s21, 1
      %p219 = scmp.ne.s32.totalorder %s214, %s216
      %p220 = scmp.eq.s32.totalorder %s21, 0
      %p221 = por %p219, %p220
      %p222 = scmp.ne.s32.totalorder %s214, %s216
      %p223 = scmp.eq.s32.totalorder %s26, 1
      %p224 = por %p222, %p223
      %p225 = scmp.ne.s32.totalorder %s216, %s217
      %p226 = scmp.eq.s32.totalorder %s26, 0
      %p227 = por %p225, %p226
      %p228 = scmp.ne.s32.totalorder %s216, %s217
      %p229 = scmp.eq.s32.totalorder %s27, 1
      %p230 = por %p228, %p229
      %p232 = scmp.ne.s32.totalorder %s217, %s231
      %p233 = scmp.eq.s32.totalorder %s27, 0
      %p234 = por %p232, %p233
      %s235 = smul.u32 %s28, %s29
      %s236 = smul.u32 %s40, %s36
      %s237 = ssub.s32 %s235, %s236
      %p238 = scmp.eq.s32.totalorder %s237, 0
      %s240 = sadd.s32 %s239, 1
      %s241 = scalar_select %p238, %s239, %s240
      %p244 = pneg %p238
      %p245 = scmp.eq.s32.totalorder %s21, 1
      %p246 = por %p244, %p245
      %p247 = scmp.ne.s32.totalorder %s239, %s242
      %p248 = scmp.eq.s32.totalorder %s21, 0
      %p249 = por %p247, %p248
      %p250 = scmp.ne.s32.totalorder %s239, %s242
      %p251 = scmp.eq.s32.totalorder %s26, 1
      %p252 = por %p250, %p251
      %p253 = scmp.ne.s32.totalorder %s242, %s243
      %p254 = scmp.eq.s32.totalorder %s26, 0
      %p255 = por %p253, %p254
      %p256 = scmp.ne.s32.totalorder %s242, %s243
      %p257 = scmp.eq.s32.totalorder %s27, 1
      %p258 = por %p256, %p257
      %p260 = scmp.ne.s32.totalorder %s243, %s259
      %p261 = scmp.eq.s32.totalorder %s27, 0
      %p262 = por %p260, %p261
      %p263 = scmp.le.s32.totalorder 1, %s21
      %p264 = scmp.lt.s32.totalorder %s21, 3
      %p265 = pnand %p263, %p264
      %p266 = pneg %p265
      // Predicated region
      $region9: #{tpu_custom_call.1} parent=5 // pred_check
        _
      $region10: #{tpu_custom_call.1} parent=5 // pred_check_branch
        %268 = sbr.rel (%p265) target = $region12
      $region11: #{tpu_custom_call.1} parent=5 // pred_region
        %s269 = ssub.s32 %s21, 1
        // Predicated region
        $region13: #{tpu_custom_call.1} parent=11 // pred_check
          %p270 = pneg %p54
        $region14: #{tpu_custom_call.1} parent=11 // pred_check_branch
          %272 = sbr.rel (%p270) target = $region16
        $region15: #{tpu_custom_call.1} parent=11 // pred_region
          %s274 = ssub.s32 512, 512
          %275 = vsyncadd [#allocation4], %s274
          %s276 = sshll.u32 [#allocation3], 4
          %s277 = int_to_ptr.vmem [resolvable:$true] %s276
          %282 = dma.hbm_to_vmem [thread:$0]  %s0, 512, %s277, [#allocation4], 128, 128, 8
        $region16: #{tpu_custom_call.1} parent=11 // pred_fallthru
          _
        // Predicated region
        $region17: #{tpu_custom_call.1} parent=11 // pred_check
          %p283 = pneg %p75
        $region18: #{tpu_custom_call.1} parent=11 // pred_check_branch
          %285 = sbr.rel (%p283) target = $region20
        $region19: #{tpu_custom_call.1} parent=11 // pred_region
          _
        $region20: #{tpu_custom_call.1} parent=11 // pred_fallthru
          _
        // Predicated region
        $region21: #{tpu_custom_call.1} parent=11 // pred_check
          %p286 = pneg %p101
        $region22: #{tpu_custom_call.1} parent=11 // pred_check_branch
          %288 = sbr.rel (%p286) target = $region24
        $region23: #{tpu_custom_call.1} parent=11 // pred_region
          %s289 = smul.u32 16, %s31
          %p290 = scmp.lt.s32.totalorder %s289, 15
          %s291 = scalar_select %p290, %s289, 15
          %s292 = smul.addr %s291, 8
          %s293 = scalar_lea.vmem %s2, %s292
          %s294 = smul.u32 16, %s31
        $region24: #{tpu_custom_call.1} parent=11 // pred_fallthru
          _
        // Predicated region
        $region25: #{tpu_custom_call.1} parent=11 // pred_check
          %p295 = pneg %p122
        $region26: #{tpu_custom_call.1} parent=11 // pred_check_branch
          %297 = sbr.rel (%p295) target = $region28
        $region27: #{tpu_custom_call.1} parent=11 // pred_region
          _
        $region28: #{tpu_custom_call.1} parent=11 // pred_fallthru
          _
        // Predicated region
        $region29: #{tpu_custom_call.1} parent=11 // pred_check
          %p298 = pneg %p143
        $region30: #{tpu_custom_call.1} parent=11 // pred_check_branch
          %300 = sbr.rel (%p298) target = $region32
        $region31: #{tpu_custom_call.1} parent=11 // pred_region
          %s302 = ssub.s32 1024, 1024
          %303 = vsyncadd [#allocation7], %s302
          %s304 = sshll.u32 [#allocation6], 4
          %s305 = int_to_ptr.vmem [resolvable:$true] %s304
          %310 = dma.hbm_to_vmem [thread:$0]  %s4, 1024, %s305, [#allocation7], 64, 64, 4
        $region32: #{tpu_custom_call.1} parent=11 // pred_fallthru
          _
        // Predicated region
        $region33: #{tpu_custom_call.1} parent=11 // pred_check
          %p311 = pneg %p164
        $region34: #{tpu_custom_call.1} parent=11 // pred_check_branch
          %313 = sbr.rel (%p311) target = $region36
        $region35: #{tpu_custom_call.1} parent=11 // pred_region
          _
        $region36: #{tpu_custom_call.1} parent=11 // pred_fallthru
          _
        // Predicated region
        $region37: #{tpu_custom_call.1} parent=11 // pred_check
          %p314 = pneg %p185
        $region38: #{tpu_custom_call.1} parent=11 // pred_check_branch
          %316 = sbr.rel (%p314) target = $region40
        $region39: #{tpu_custom_call.1} parent=11 // pred_region
          %s318 = ssub.s32 1024, 1024
          %319 = vsyncadd [#allocation7], %s318
          %s320 = sshll.u32 [#allocation8], 4
          %s321 = int_to_ptr.vmem [resolvable:$true] %s320
          %326 = dma.hbm_to_vmem [thread:$0]  %s6, 1024, %s321, [#allocation7], 64, 64, 4
        $region40: #{tpu_custom_call.1} parent=11 // pred_fallthru
          _
        // Predicated region
        $region41: #{tpu_custom_call.1} parent=11 // pred_check
          %p327 = pneg %p206
        $region42: #{tpu_custom_call.1} parent=11 // pred_check_branch
          %329 = sbr.rel (%p327) target = $region44
        $region43: #{tpu_custom_call.1} parent=11 // pred_region
          %s331 = ssub.s32 1024, 1024
          %332 = vsyncadd [#allocation10], %s331
          %s333 = sshll.u32 [#allocation9], 4
          %s334 = int_to_ptr.vmem [resolvable:$true] %s333
          %339 = dma.hbm_to_vmem [thread:$0]  %s7, 1024, %s334, [#allocation10], 64, 64, 4
        $region44: #{tpu_custom_call.1} parent=11 // pred_fallthru
          _
        // Predicated region
        $region45: #{tpu_custom_call.1} parent=11 // pred_check
          %p340 = pneg %p227
        $region46: #{tpu_custom_call.1} parent=11 // pred_check_branch
          %342 = sbr.rel (%p340) target = $region48
        $region47: #{tpu_custom_call.1} parent=11 // pred_region
          _
        $region48: #{tpu_custom_call.1} parent=11 // pred_fallthru
          _
      $region12: #{tpu_custom_call.1} parent=5 // pred_fallthru
        _
      %p343 = scmp.lt.s32.totalorder %s21, 2
      // Predicated region
      $region49: #{tpu_custom_call.1} parent=5 // pred_check
        %p344 = pneg %p343
      $region50: #{tpu_custom_call.1} parent=5 // pred_check_branch
        %346 = sbr.rel (%p344) target = $region52
      $region51: #{tpu_custom_call.1} parent=5 // pred_region
        _
      $region52: #{tpu_custom_call.1} parent=5 // pred_fallthru
        _
      %p347 = scmp.le.s32.totalorder 1, %s21
      %p348 = scmp.lt.s32.totalorder %s21, 3
      %p349 = pnand %p347, %p348
      %p350 = pneg %p349
      // Predicated region
      $region53: #{tpu_custom_call.1} parent=5 // pred_check
        _
      $region54: #{tpu_custom_call.1} parent=5 // pred_check_branch
        %352 = sbr.rel (%p349) target = $region56
      $region55: #{tpu_custom_call.1} parent=5 // pred_region
        %s353 = ssub.s32 %s21, 1
        // Predicated region
        $region57: #{tpu_custom_call.1} parent=55 // pred_check
          %p354 = pneg %p54
        $region58: #{tpu_custom_call.1} parent=55 // pred_check_branch
          %356 = sbr.rel (%p354) target = $region60
        $region59: #{tpu_custom_call.1} parent=55 // pred_region
          %357 = dma.done [#allocation4], 512
        $region60: #{tpu_custom_call.1} parent=55 // pred_fallthru
          _
        // Predicated region
        $region61: #{tpu_custom_call.1} parent=55 // pred_check
          %p358 = pneg %p143
        $region62: #{tpu_custom_call.1} parent=55 // pred_check_branch
          %360 = sbr.rel (%p358) target = $region64
        $region63: #{tpu_custom_call.1} parent=55 // pred_region
          %361 = dma.done [#allocation7], 1024
        $region64: #{tpu_custom_call.1} parent=55 // pred_fallthru
          _
        // Predicated region
        $region65: #{tpu_custom_call.1} parent=55 // pred_check
          %p362 = pneg %p185
        $region66: #{tpu_custom_call.1} parent=55 // pred_check_branch
          %364 = sbr.rel (%p362) target = $region68
        $region67: #{tpu_custom_call.1} parent=55 // pred_region
          %365 = dma.done [#allocation7], 1024
        $region68: #{tpu_custom_call.1} parent=55 // pred_fallthru
          _
        // Predicated region
        $region69: #{tpu_custom_call.1} parent=55 // pred_check
          %p366 = pneg %p206
        $region70: #{tpu_custom_call.1} parent=55 // pred_check_branch
          %368 = sbr.rel (%p366) target = $region72
        $region71: #{tpu_custom_call.1} parent=55 // pred_region
          %369 = dma.done [#allocation10], 1024
        $region72: #{tpu_custom_call.1} parent=55 // pred_fallthru
          _
        %p370 = pneg %p54
        %p371 = pneg %p51
        %p372 = pneg %p75
        %p373 = pneg %p72
        %s374 = smul.u32 16, %s31
        %p375 = scmp.lt.s32.totalorder %s374, 15
        %s376 = scalar_select %p375, %s374, 15
        %s377 = smul.addr %s376, 8
        %s378 = scalar_lea.vmem %s2, %s377
        %p379 = pneg %p101
        %p380 = pneg %p98
        %p381 = pneg %p122
        %p382 = pneg %p119
        %p383 = pneg %p143
        %p384 = pneg %p140
        %p385 = pneg %p164
        %p386 = pneg %p161
        %p387 = pneg %p185
        %p388 = pneg %p182
        %p389 = pneg %p206
        %p390 = pneg %p203
        %p391 = pneg %p227
        %p392 = pneg %p224
        %p393 = pneg %p255
        %p394 = pneg %p252
        %s395 = sand.u32 %s242, 1
        %s396 = scalar_lea.sflag [#allocation5], %s395
        %s397 = sand.u32 %s242, 1
        %s398 = smul.addr %s397, 64
        %s399 = scalar_lea.vmem [#allocation11], %s398
        %s400 = smul.u32 16, %s31
        %p401 = scmp.lt.s32.totalorder %s400, 15
        %s402 = scalar_select %p401, %s400, 15
        %s403 = smul.addr %s402, 8
        %s404 = scalar_lea.vmem %s2, %s403
        %s405 = smul.u32 16, %s31
        %s406 = smul.u32 %s30, %s31
        %s407 = smul.u32 16, %s406
        %s409 = smul.u32 %s31, 128
        %v410 = vld [vmem:[%s404] sm:$0xff]
        %v411 = vld [vmem:[%s404 + $0x8] sm:$0xff]
        %v412 = vld [vmem:[%s404 + $0x10] sm:$0xff]
        %v413 = vld [vmem:[%s404 + $0x18] sm:$0xff]
        %v414 = vld [vmem:[%s404 + $0x20] sm:$0xff]
        %v415 = vld [vmem:[%s404 + $0x28] sm:$0xff]
        %v416 = vld [vmem:[%s404 + $0x30] sm:$0xff]
        %v417 = vld [vmem:[%s404 + $0x38] sm:$0xff]
        %v418 = vld [vmem:[%s404 + $0x40] sm:$0xff]
        %v419 = vld [vmem:[%s404 + $0x48] sm:$0xff]
        %v420 = vld [vmem:[%s404 + $0x50] sm:$0xff]
        %v421 = vld [vmem:[%s404 + $0x58] sm:$0xff]
        %v422 = vld [vmem:[%s404 + $0x60] sm:$0xff]
        %v423 = vld [vmem:[%s404 + $0x68] sm:$0xff]
        %v424 = vld [vmem:[%s404 + $0x70] sm:$0xff]
        %v425 = vld [vmem:[%s404 + $0x78] sm:$0xff]
        %p426 = scmp.eq.s32.totalorder %s30, 0
        // Predicated region
        $region73: #{tpu_custom_call.1} parent=55 // pred_check
          %p427 = pneg %p426
        $region74: #{tpu_custom_call.1} parent=55 // pred_check_branch
          %429 = sbr.rel (%p427) target = $region76
        $region75: #{tpu_custom_call.1} parent=55 // pred_region
          %s430 = sshra.s32 %s409, 5
          %s431 = sand.u32 %s409, 31
          %s432 = smul.addr %s430, 8
          %s433 = scalar_lea.vmem [#allocation3], %s432
          %v434 = vld [vmem:[%s433] sm:$0xff]
          %v435 = vld [vmem:[%s433 + $0x8] sm:$0xff]
          %v436 = vld [vmem:[%s433 + $0x10] sm:$0xff]
          %v437 = vld [vmem:[%s433 + $0x18] sm:$0xff]
          %v438 = vunpack.c.l.s8.bf16 %v434
          %v439 = vunpack.c.h.s8.bf16 %v434
          %v440 = vunpack.c.l.s8.bf16 %v435
          %v441 = vunpack.c.h.s8.bf16 %v435
          %v442 = vunpack.c.l.s8.bf16 %v436
          %v443 = vunpack.c.h.s8.bf16 %v436
          %v444 = vunpack.c.l.s8.bf16 %v437
          %v445 = vunpack.c.h.s8.bf16 %v437
          %v446 = vld [vmem:[%s1] sm:$0xf]
          %v447 = vld [vmem:[%s1 + $0x4] sm:$0xf]
          %v448 = vld [vmem:[%s1 + $0x8] sm:$0xf]
          %v449 = vld [vmem:[%s1 + $0xc] sm:$0xf]
          %v450 = vld [vmem:[%s1 + $0x10] sm:$0xf]
          %v451 = vld [vmem:[%s1 + $0x14] sm:$0xf]
          %v452 = vld [vmem:[%s1 + $0x18] sm:$0xf]
          %v453 = vld [vmem:[%s1 + $0x1c] sm:$0xf]
          %v454 = vld [vmem:[%s1 + $0x20] sm:$0xf]
          %v455 = vld [vmem:[%s1 + $0x24] sm:$0xf]
          %v456 = vld [vmem:[%s1 + $0x28] sm:$0xf]
          %v457 = vld [vmem:[%s1 + $0x2c] sm:$0xf]
          %v458 = vld [vmem:[%s1 + $0x30] sm:$0xf]
          %v459 = vld [vmem:[%s1 + $0x34] sm:$0xf]
          %v460 = vld [vmem:[%s1 + $0x38] sm:$0xf]
          %v461 = vld [vmem:[%s1 + $0x3c] sm:$0xf]
          %v478 = vunpack.c.l.b16 %v446
          %v479 = vunpack.c.l.b16 %v447
          %v480 = vunpack.c.l.b16 %v448
          %v481 = vunpack.c.l.b16 %v449
          %v482 = vunpack.c.l.b16 %v450
          %v483 = vunpack.c.l.b16 %v451
          %v484 = vunpack.c.l.b16 %v452
          %v485 = vunpack.c.l.b16 %v453
          %v486 = vunpack.c.l.b16 %v454
          %v487 = vunpack.c.l.b16 %v455
          %v488 = vunpack.c.l.b16 %v456
          %v489 = vunpack.c.l.b16 %v457
          %v490 = vunpack.c.l.b16 %v458
          %v491 = vunpack.c.l.b16 %v459
          %v492 = vunpack.c.l.b16 %v460
          %v493 = vunpack.c.l.b16 %v461
          %v494 = vpack.c.b16 %v479, %v478
          %v495 = vpack.c.b16 %v481, %v480
          %v496 = vpack.c.b16 %v483, %v482
          %v497 = vpack.c.b16 %v485, %v484
          %v498 = vpack.c.b16 %v487, %v486
          %v499 = vpack.c.b16 %v489, %v488
          %v500 = vpack.c.b16 %v491, %v490
          %v501 = vpack.c.b16 %v493, %v492
          %510 = vmatprep.subr.bf16.mxu0 0
          %511 = vmatpush1.bf16.msra.mxu0 %v494
          %512 = vmatprep.subr.bf16.mxu0 0
          %513 = vmatpush1.bf16.msra.mxu0 %v495
          %514 = vmatprep.subr.bf16.mxu0 0
          %515 = vmatpush1.bf16.msra.mxu0 %v496
          %516 = vmatprep.subr.bf16.mxu0 0
          %517 = vmatpush1.bf16.msra.mxu0 %v497
          %518 = vmatprep.subr.bf16.mxu0 0
          %519 = vmatpush1.bf16.msra.mxu0 %v498
          %520 = vmatprep.subr.bf16.mxu0 0
          %521 = vmatpush1.bf16.msra.mxu0 %v499
          %522 = vmatprep.subr.bf16.mxu0 0
          %523 = vmatpush1.bf16.msra.mxu0 %v500
          %524 = vmatprep.subr.bf16.mxu0 0
          %525 = vmatpush1.bf16.msra.mxu0 %v501
          %526 = vmatprep.subr.bf16.mxu0 0
          %527 = vmatpush1.bf16.msra.mxu0 0
          %528 = vmatprep.subr.bf16.mxu0 0
          %529 = vmatpush1.bf16.msra.mxu0 0
          %530 = vmatprep.subr.bf16.mxu0 0
          %531 = vmatpush1.bf16.msra.mxu0 0
          %532 = vmatprep.subr.bf16.mxu0 0
          %533 = vmatpush1.bf16.msra.mxu0 0
          %534 = vmatprep.subr.bf16.mxu0 0
          %535 = vmatpush1.bf16.msra.mxu0 0
          %536 = vmatprep.subr.bf16.mxu0 0
          %537 = vmatpush1.bf16.msra.mxu0 0
          %538 = vmatprep.subr.bf16.mxu0 0
          %539 = vmatpush1.bf16.msra.mxu0 0
          %540 = vmatprep.subr.bf16.mxu0 0
          %541 = vmatpush1.bf16.msra.mxu0 0
          %542 = vmatprep.mubr.bf16.mxu0 0
          %543 = vmatmul.mubr.bf16.gmra.mrb[0].mxu0 %v438
          %v544 = vpop.f32.mrb[0].mxu0
          %v545 = vadd.f32 0.0, %v544
          %v546 = vpop.f32.mrb[0].mxu0
          %v547 = vpop.f32.mrb[0].mxu0
          %v548 = vadd.f32 0.0, %v547
          %v549 = vpop.f32.mrb[0].mxu0
          %550 = vmatprep.mubr.bf16.mxu0 0
          %551 = vmatmul.mubr.bf16.gmra.mrb[0].mxu0 %v439
          %v552 = vpop.f32.mrb[0].mxu0
          %v553 = vadd.f32 0.0, %v552
          %v554 = vpop.f32.mrb[0].mxu0
          %v555 = vpop.f32.mrb[0].mxu0
          %v556 = vadd.f32 0.0, %v555
          %v557 = vpop.f32.mrb[0].mxu0
          %558 = vmatprep.mubr.bf16.mxu0 0
          %559 = vmatmul.mubr.bf16.gmra.mrb[0].mxu0 %v440
          %v560 = vpop.f32.mrb[0].mxu0
          %v561 = vadd.f32 0.0, %v560
          %v562 = vpop.f32.mrb[0].mxu0
          %v563 = vpop.f32.mrb[0].mxu0
          %v564 = vadd.f32 0.0, %v563
          %v565 = vpop.f32.mrb[0].mxu0
          %566 = vmatprep.mubr.bf16.mxu0 0
          %567 = vmatmul.mubr.bf16.gmra.mrb[0].mxu0 %v441
          %v568 = vpop.f32.mrb[0].mxu0
          %v569 = vadd.f32 0.0, %v568
          %v570 = vpop.f32.mrb[0].mxu0
          %v571 = vpop.f32.mrb[0].mxu0
          %v572 = vadd.f32 0.0, %v571
          %v573 = vpop.f32.mrb[0].mxu0
          %574 = vmatprep.mubr.bf16.mxu0 0
          %575 = vmatmul.mubr.bf16.gmra.mrb[0].mxu0 %v442
          %v576 = vpop.f32.mrb[0].mxu0
          %v577 = vadd.f32 0.0, %v576
          %v578 = vpop.f32.mrb[0].mxu0
          %v579 = vpop.f32.mrb[0].mxu0
          %v580 = vadd.f32 0.0, %v579
          %v581 = vpop.f32.mrb[0].mxu0
          %582 = vmatprep.mubr.bf16.mxu0 0
          %583 = vmatmul.mubr.bf16.gmra.mrb[0].mxu0 %v443
          %v584 = vpop.f32.mrb[0].mxu0
          %v585 = vadd.f32 0.0, %v584
          %v586 = vpop.f32.mrb[0].mxu0
          %v587 = vpop.f32.mrb[0].mxu0
          %v588 = vadd.f32 0.0, %v587
          %v589 = vpop.f32.mrb[0].mxu0
          %590 = vmatprep.mubr.bf16.mxu0 0
          %591 = vmatmul.mubr.bf16.gmra.mrb[0].mxu0 %v444
          %v592 = vpop.f32.mrb[0].mxu0
          %v593 = vadd.f32 0.0, %v592
          %v594 = vpop.f32.mrb[0].mxu0
          %v595 = vpop.f32.mrb[0].mxu0
          %v596 = vadd.f32 0.0, %v595
          %v597 = vpop.f32.mrb[0].mxu0
          %598 = vmatprep.mubr.bf16.mxu0 0
          %599 = vmatmul.mubr.bf16.gmra.mrb[0].mxu0 %v445
          %v600 = vpop.f32.mrb[0].mxu0
          %v601 = vadd.f32 0.0, %v600
          %v602 = vpop.f32.mrb[0].mxu0
          %v603 = vpop.f32.mrb[0].mxu0
          %v604 = vadd.f32 0.0, %v603
          %v605 = vpop.f32.mrb[0].mxu0
          %606 = vdwg.mxu0
          %608 = vset.pattern.permute.xlu0 0
          %609 = vperm.xlu0 %608, %v410
          %v610 = vpop.permute.xlu0 %609
          %613 = vset.pattern.permute.xlu0 0
          %614 = vperm.xlu0 %613, %v411
          %v615 = vpop.permute.xlu0 %614
          %618 = vset.pattern.permute.xlu0 0
          %619 = vperm.xlu0 %618, %v412
          %v620 = vpop.permute.xlu0 %619
          %623 = vset.pattern.permute.xlu0 0
          %624 = vperm.xlu0 %623, %v413
          %v625 = vpop.permute.xlu0 %624
          %628 = vset.pattern.permute.xlu0 0
          %629 = vperm.xlu0 %628, %v414
          %v630 = vpop.permute.xlu0 %629
          %633 = vset.pattern.permute.xlu0 0
          %634 = vperm.xlu0 %633, %v415
          %v635 = vpop.permute.xlu0 %634
          %638 = vset.pattern.permute.xlu0 0
          %639 = vperm.xlu0 %638, %v416
          %v640 = vpop.permute.xlu0 %639
          %643 = vset.pattern.permute.xlu0 0
          %644 = vperm.xlu0 %643, %v417
          %v645 = vpop.permute.xlu0 %644
          %648 = vset.pattern.permute.xlu0 0
          %649 = vperm.xlu0 %648, %v418
          %v650 = vpop.permute.xlu0 %649
          %653 = vset.pattern.permute.xlu0 0
          %654 = vperm.xlu0 %653, %v419
          %v655 = vpop.permute.xlu0 %654
          %658 = vset.pattern.permute.xlu0 0
          %659 = vperm.xlu0 %658, %v420
          %v660 = vpop.permute.xlu0 %659
          %663 = vset.pattern.permute.xlu0 0
          %664 = vperm.xlu0 %663, %v421
          %v665 = vpop.permute.xlu0 %664
          %668 = vset.pattern.permute.xlu0 0
          %669 = vperm.xlu0 %668, %v422
          %v670 = vpop.permute.xlu0 %669
          %673 = vset.pattern.permute.xlu0 0
          %674 = vperm.xlu0 %673, %v423
          %v675 = vpop.permute.xlu0 %674
          %678 = vset.pattern.permute.xlu0 0
          %679 = vperm.xlu0 %678, %v424
          %v680 = vpop.permute.xlu0 %679
          %683 = vset.pattern.permute.xlu0 0
          %684 = vperm.xlu0 %683, %v425
          %v685 = vpop.permute.xlu0 %684
          %v687 = vmul.f32 %v545, %v610
          %v688 = vmul.f32 %v548, %v615
          %v689 = vmul.f32 %v553, %v620
          %v690 = vmul.f32 %v556, %v625
          %v691 = vmul.f32 %v561, %v630
          %v692 = vmul.f32 %v564, %v635
          %v693 = vmul.f32 %v569, %v640
          %v694 = vmul.f32 %v572, %v645
          %v695 = vmul.f32 %v577, %v650
          %v696 = vmul.f32 %v580, %v655
          %v697 = vmul.f32 %v585, %v660
          %v698 = vmul.f32 %v588, %v665
          %v699 = vmul.f32 %v593, %v670
          %v700 = vmul.f32 %v596, %v675
          %v701 = vmul.f32 %v601, %v680
          %v702 = vmul.f32 %v604, %v685
          %v703 = vpack.c.bf16 %v688, %v687
          %v704 = vpack.c.bf16 %v690, %v689
          %v705 = vpack.c.bf16 %v692, %v691
          %v706 = vpack.c.bf16 %v694, %v693
          %v707 = vpack.c.bf16 %v696, %v695
          %v708 = vpack.c.bf16 %v698, %v697
          %v709 = vpack.c.bf16 %v700, %v699
          %v710 = vpack.c.bf16 %v702, %v701
          %v711 = vld [vmem:[%s3] sm:$0xf]
          %v712 = vld [vmem:[%s3 + $0x4] sm:$0xf]
          %v713 = vld [vmem:[%s3 + $0x8] sm:$0xf]
          %v714 = vld [vmem:[%s3 + $0xc] sm:$0xf]
          %v715 = vld [vmem:[%s3 + $0x10] sm:$0xf]
          %v716 = vld [vmem:[%s3 + $0x14] sm:$0xf]
          %v717 = vld [vmem:[%s3 + $0x18] sm:$0xf]
          %v718 = vld [vmem:[%s3 + $0x1c] sm:$0xf]
          %v719 = vld [vmem:[%s3 + $0x20] sm:$0xf]
          %v720 = vld [vmem:[%s3 + $0x24] sm:$0xf]
          %v721 = vld [vmem:[%s3 + $0x28] sm:$0xf]
          %v722 = vld [vmem:[%s3 + $0x2c] sm:$0xf]
          %v723 = vld [vmem:[%s3 + $0x30] sm:$0xf]
          %v724 = vld [vmem:[%s3 + $0x34] sm:$0xf]
          %v725 = vld [vmem:[%s3 + $0x38] sm:$0xf]
          %v726 = vld [vmem:[%s3 + $0x3c] sm:$0xf]
          %s727 = sshra.s32 %s409, 3
          %s728 = sand.u32 %s409, 7
          %s729 = smul.addr %s727, 4
          %s730 = scalar_lea.vmem %s1, %s729
          %v731 = vld [vmem:[%s730] sm:$0xf]
          %v732 = vld [vmem:[%s730 + $0x4] sm:$0xf]
          %v733 = vld [vmem:[%s730 + $0x8] sm:$0xf]
          %v734 = vld [vmem:[%s730 + $0xc] sm:$0xf]
          %v735 = vld [vmem:[%s730 + $0x10] sm:$0xf]
          %v736 = vld [vmem:[%s730 + $0x14] sm:$0xf]
          %v737 = vld [vmem:[%s730 + $0x18] sm:$0xf]
          %v738 = vld [vmem:[%s730 + $0x1c] sm:$0xf]
          %v739 = vld [vmem:[%s730 + $0x20] sm:$0xf]
          %v740 = vld [vmem:[%s730 + $0x24] sm:$0xf]
          %v741 = vld [vmem:[%s730 + $0x28] sm:$0xf]
          %v742 = vld [vmem:[%s730 + $0x2c] sm:$0xf]
          %v743 = vld [vmem:[%s730 + $0x30] sm:$0xf]
          %v744 = vld [vmem:[%s730 + $0x34] sm:$0xf]
          %v745 = vld [vmem:[%s730 + $0x38] sm:$0xf]
          %v746 = vld [vmem:[%s730 + $0x3c] sm:$0xf]
          %v747 = vld [vmem:[#allocation6] sm:$0xf]
          %v748 = vld [vmem:[#allocation6 + $0x4] sm:$0xf]
          %v749 = vld [vmem:[#allocation6 + $0x8] sm:$0xf]
          %v750 = vld [vmem:[#allocation6 + $0xc] sm:$0xf]
          %v751 = vld [vmem:[#allocation6 + $0x10] sm:$0xf]
          %v752 = vld [vmem:[#allocation6 + $0x14] sm:$0xf]
          %v753 = vld [vmem:[#allocation6 + $0x18] sm:$0xf]
          %v754 = vld [vmem:[#allocation6 + $0x1c] sm:$0xf]
          %v755 = vld [vmem:[#allocation6 + $0x20] sm:$0xf]
          %v756 = vld [vmem:[#allocation6 + $0x24] sm:$0xf]
          %v757 = vld [vmem:[#allocation6 + $0x28] sm:$0xf]
          %v758 = vld [vmem:[#allocation6 + $0x2c] sm:$0xf]
          %v759 = vld [vmem:[#allocation6 + $0x30] sm:$0xf]
          %v760 = vld [vmem:[#allocation6 + $0x34] sm:$0xf]
          %v761 = vld [vmem:[#allocation6 + $0x38] sm:$0xf]
          %v762 = vld [vmem:[#allocation6 + $0x3c] sm:$0xf]
          %v779 = vunpack.c.l.b16 %v731
          %v780 = vunpack.c.l.b16 %v732
          %v781 = vunpack.c.l.b16 %v733
          %v782 = vunpack.c.l.b16 %v734
          %v783 = vunpack.c.l.b16 %v735
          %v784 = vunpack.c.l.b16 %v736
          %v785 = vunpack.c.l.b16 %v737
          %v786 = vunpack.c.l.b16 %v738
          %v787 = vunpack.c.l.b16 %v739
          %v788 = vunpack.c.l.b16 %v740
          %v789 = vunpack.c.l.b16 %v741
          %v790 = vunpack.c.l.b16 %v742
          %v791 = vunpack.c.l.b16 %v743
          %v792 = vunpack.c.l.b16 %v744
          %v793 = vunpack.c.l.b16 %v745
          %v794 = vunpack.c.l.b16 %v746
          %v795 = vpack.c.b16 %v780, %v779
          %v796 = vpack.c.b16 %v782, %v781
          %v797 = vpack.c.b16 %v784, %v783
          %v798 = vpack.c.b16 %v786, %v785
          %v799 = vpack.c.b16 %v788, %v787
          %v800 = vpack.c.b16 %v790, %v789
          %v801 = vpack.c.b16 %v792, %v791
          %v802 = vpack.c.b16 %v794, %v793
          %v827 = vunpack.c.l.b16 %v747
          %v828 = vunpack.c.l.b16 %v748
          %v829 = vunpack.c.l.b16 %v749
          %v830 = vunpack.c.l.b16 %v750
          %v831 = vunpack.c.l.b16 %v751
          %v832 = vunpack.c.l.b16 %v752
          %v833 = vunpack.c.l.b16 %v753
          %v834 = vunpack.c.l.b16 %v754
          %v835 = vunpack.c.l.b16 %v755
          %v836 = vunpack.c.l.b16 %v756
          %v837 = vunpack.c.l.b16 %v757
          %v838 = vunpack.c.l.b16 %v758
          %v839 = vunpack.c.l.b16 %v759
          %v840 = vunpack.c.l.b16 %v760
          %v841 = vunpack.c.l.b16 %v761
          %v842 = vunpack.c.l.b16 %v762
          %v843 = vpack.c.b16 %v828, %v827
          %v844 = vpack.c.b16 %v830, %v829
          %v845 = vpack.c.b16 %v832, %v831
          %v846 = vpack.c.b16 %v834, %v833
          %v847 = vpack.c.b16 %v836, %v835
          %v848 = vpack.c.b16 %v838, %v837
          %v849 = vpack.c.b16 %v840, %v839
          %v850 = vpack.c.b16 %v842, %v841
          %859 = vmatprep.subr.bf16.mxu0 0
          %860 = vmatpush1.bf16.msra.mxu0 %v843
          %861 = vmatprep.subr.bf16.mxu0 0
          %862 = vmatpush1.bf16.msra.mxu0 %v844
          %863 = vmatprep.subr.bf16.mxu0 0
          %864 = vmatpush1.bf16.msra.mxu0 %v845
          %865 = vmatprep.subr.bf16.mxu0 0
          %866 = vmatpush1.bf16.msra.mxu0 %v846
          %867 = vmatprep.subr.bf16.mxu0 0
          %868 = vmatpush1.bf16.msra.mxu0 %v847
          %869 = vmatprep.subr.bf16.mxu0 0
          %870 = vmatpush1.bf16.msra.mxu0 %v848
          %871 = vmatprep.subr.bf16.mxu0 0
          %872 = vmatpush1.bf16.msra.mxu0 %v849
          %873 = vmatprep.subr.bf16.mxu0 0
          %874 = vmatpush1.bf16.msra.mxu0 %v850
          %875 = vmatprep.subr.bf16.mxu0 0
          %876 = vmatpush1.bf16.msra.mxu0 0
          %877 = vmatprep.subr.bf16.mxu0 0
          %878 = vmatpush1.bf16.msra.mxu0 0
          %879 = vmatprep.subr.bf16.mxu0 0
          %880 = vmatpush1.bf16.msra.mxu0 0
          %881 = vmatprep.subr.bf16.mxu0 0
          %882 = vmatpush1.bf16.msra.mxu0 0
          %883 = vmatprep.subr.bf16.mxu0 0
          %884 = vmatpush1.bf16.msra.mxu0 0
          %885 = vmatprep.subr.bf16.mxu0 0
          %886 = vmatpush1.bf16.msra.mxu0 0
          %887 = vmatprep.subr.bf16.mxu0 0
          %888 = vmatpush1.bf16.msra.mxu0 0
          %889 = vmatprep.subr.bf16.mxu0 0
          %890 = vmatpush1.bf16.msra.mxu0 0
          %891 = vmatprep.mubr.bf16.mxu0 0
          %892 = vmatmul.mubr.bf16.gmra.mrb[0].mxu0 %v795
          %v893 = vpop.f32.mrb[0].mxu0
          %v894 = vadd.f32 0.0, %v893
          %v895 = vpop.f32.mrb[0].mxu0
          %v896 = vpop.f32.mrb[0].mxu0
          %v897 = vadd.f32 0.0, %v896
          %v898 = vpop.f32.mrb[0].mxu0
          %899 = vmatprep.mubr.bf16.mxu0 0
          %900 = vmatmul.mubr.bf16.gmra.mrb[0].mxu0 %v796
          %v901 = vpop.f32.mrb[0].mxu0
          %v902 = vadd.f32 0.0, %v901
          %v903 = vpop.f32.mrb[0].mxu0
          %v904 = vpop.f32.mrb[0].mxu0
          %v905 = vadd.f32 0.0, %v904
          %v906 = vpop.f32.mrb[0].mxu0
          %907 = vmatprep.mubr.bf16.mxu0 0
          %908 = vmatmul.mubr.bf16.gmra.mrb[0].mxu0 %v797
          %v909 = vpop.f32.mrb[0].mxu0
          %v910 = vadd.f32 0.0, %v909
          %v911 = vpop.f32.mrb[0].mxu0
          %v912 = vpop.f32.mrb[0].mxu0
          %v913 = vadd.f32 0.0, %v912
          %v914 = vpop.f32.mrb[0].mxu0
          %915 = vmatprep.mubr.bf16.mxu0 0
          %916 = vmatmul.mubr.bf16.gmra.mrb[0].mxu0 %v798
          %v917 = vpop.f32.mrb[0].mxu0
          %v918 = vadd.f32 0.0, %v917
          %v919 = vpop.f32.mrb[0].mxu0
          %v920 = vpop.f32.mrb[0].mxu0
          %v921 = vadd.f32 0.0, %v920
          %v922 = vpop.f32.mrb[0].mxu0
          %923 = vmatprep.mubr.bf16.mxu0 0
          %924 = vmatmul.mubr.bf16.gmra.mrb[0].mxu0 %v799
          %v925 = vpop.f32.mrb[0].mxu0
          %v926 = vadd.f32 0.0, %v925
          %v927 = vpop.f32.mrb[0].mxu0
          %v928 = vpop.f32.mrb[0].mxu0
          %v929 = vadd.f32 0.0, %v928
          %v930 = vpop.f32.mrb[0].mxu0
          %931 = vmatprep.mubr.bf16.mxu0 0
          %932 = vmatmul.mubr.bf16.gmra.mrb[0].mxu0 %v800
          %v933 = vpop.f32.mrb[0].mxu0
          %v934 = vadd.f32 0.0, %v933
          %v935 = vpop.f32.mrb[0].mxu0
          %v936 = vpop.f32.mrb[0].mxu0
          %v937 = vadd.f32 0.0, %v936
          %v938 = vpop.f32.mrb[0].mxu0
          %939 = vmatprep.mubr.bf16.mxu0 0
          %940 = vmatmul.mubr.bf16.gmra.mrb[0].mxu0 %v801
          %v941 = vpop.f32.mrb[0].mxu0
          %v942 = vadd.f32 0.0, %v941
          %v943 = vpop.f32.mrb[0].mxu0
          %v944 = vpop.f32.mrb[0].mxu0
          %v945 = vadd.f32 0.0, %v944
          %v946 = vpop.f32.mrb[0].mxu0
          %947 = vmatprep.mubr.bf16.mxu0 0
          %948 = vmatmul.mubr.bf16.gmra.mrb[0].mxu0 %v802
          %v949 = vpop.f32.mrb[0].mxu0
          %v950 = vadd.f32 0.0, %v949
          %v951 = vpop.f32.mrb[0].mxu0
          %v952 = vpop.f32.mrb[0].mxu0
          %v953 = vadd.f32 0.0, %v952
          %v954 = vpop.f32.mrb[0].mxu0
          %955 = vdwg.mxu0
          %v972 = vunpack.c.l.b16 %v711
          %v973 = vunpack.c.l.b16 %v712
          %v974 = vunpack.c.l.b16 %v713
          %v975 = vunpack.c.l.b16 %v714
          %v976 = vunpack.c.l.b16 %v715
          %v977 = vunpack.c.l.b16 %v716
          %v978 = vunpack.c.l.b16 %v717
          %v979 = vunpack.c.l.b16 %v718
          %v980 = vunpack.c.l.b16 %v719
          %v981 = vunpack.c.l.b16 %v720
          %v982 = vunpack.c.l.b16 %v721
          %v983 = vunpack.c.l.b16 %v722
          %v984 = vunpack.c.l.b16 %v723
          %v985 = vunpack.c.l.b16 %v724
          %v986 = vunpack.c.l.b16 %v725
          %v987 = vunpack.c.l.b16 %v726
          %v988 = vpack.c.b16 %v973, %v972
          %v989 = vpack.c.b16 %v975, %v974
          %v990 = vpack.c.b16 %v977, %v976
          %v991 = vpack.c.b16 %v979, %v978
          %v992 = vpack.c.b16 %v981, %v980
          %v993 = vpack.c.b16 %v983, %v982
          %v994 = vpack.c.b16 %v985, %v984
          %v995 = vpack.c.b16 %v987, %v986
          %1004 = vmatprep.subr.bf16.mxu0 0
          %1005 = vmatpush1.bf16.msra.mxu0 %v988
          %1006 = vmatprep.subr.bf16.mxu0 0
          %1007 = vmatpush1.bf16.msra.mxu0 %v989
          %1008 = vmatprep.subr.bf16.mxu0 0
          %1009 = vmatpush1.bf16.msra.mxu0 %v990
          %1010 = vmatprep.subr.bf16.mxu0 0
          %1011 = vmatpush1.bf16.msra.mxu0 %v991
          %1012 = vmatprep.subr.bf16.mxu0 0
          %1013 = vmatpush1.bf16.msra.mxu0 %v992
          %1014 = vmatprep.subr.bf16.mxu0 0
          %1015 = vmatpush1.bf16.msra.mxu0 %v993
          %1016 = vmatprep.subr.bf16.mxu0 0
          %1017 = vmatpush1.bf16.msra.mxu0 %v994
          %1018 = vmatprep.subr.bf16.mxu0 0
          %1019 = vmatpush1.bf16.msra.mxu0 %v995
          %1020 = vmatprep.subr.bf16.mxu0 0
          %1021 = vmatpush1.bf16.msra.mxu0 0
          %1022 = vmatprep.subr.bf16.mxu0 0
          %1023 = vmatpush1.bf16.msra.mxu0 0
          %1024 = vmatprep.subr.bf16.mxu0 0
          %1025 = vmatpush1.bf16.msra.mxu0 0
          %1026 = vmatprep.subr.bf16.mxu0 0
          %1027 = vmatpush1.bf16.msra.mxu0 0
          %1028 = vmatprep.subr.bf16.mxu0 0
          %1029 = vmatpush1.bf16.msra.mxu0 0
          %1030 = vmatprep.subr.bf16.mxu0 0
          %1031 = vmatpush1.bf16.msra.mxu0 0
          %1032 = vmatprep.subr.bf16.mxu0 0
          %1033 = vmatpush1.bf16.msra.mxu0 0
          %1034 = vmatprep.subr.bf16.mxu0 0
          %1035 = vmatpush1.bf16.msra.mxu0 0
          %1036 = vmatprep.mubr.bf16.mxu0 0
          %1037 = vmatmul.mubr.bf16.gmra.mrb[0].mxu0 %v703
          %v1038 = vpop.f32.mrb[0].mxu0
          %v1039 = vadd.f32 %v894, %v1038
          %v1040 = vpop.f32.mrb[0].mxu0
          %v1041 = vpop.f32.mrb[0].mxu0
          %v1042 = vadd.f32 %v897, %v1041
          %v1043 = vpop.f32.mrb[0].mxu0
          %1044 = vmatprep.mubr.bf16.mxu0 0
          %1045 = vmatmul.mubr.bf16.gmra.mrb[0].mxu0 %v704
          %v1046 = vpop.f32.mrb[0].mxu0
          %v1047 = vadd.f32 %v902, %v1046
          %v1048 = vpop.f32.mrb[0].mxu0
          %v1049 = vpop.f32.mrb[0].mxu0
          %v1050 = vadd.f32 %v905, %v1049
          %v1051 = vpop.f32.mrb[0].mxu0
          %1052 = vmatprep.mubr.bf16.mxu0 0
          %1053 = vmatmul.mubr.bf16.gmra.mrb[0].mxu0 %v705
          %v1054 = vpop.f32.mrb[0].mxu0
          %v1055 = vadd.f32 %v910, %v1054
          %v1056 = vpop.f32.mrb[0].mxu0
          %v1057 = vpop.f32.mrb[0].mxu0
          %v1058 = vadd.f32 %v913, %v1057
          %v1059 = vpop.f32.mrb[0].mxu0
          %1060 = vmatprep.mubr.bf16.mxu0 0
          %1061 = vmatmul.mubr.bf16.gmra.mrb[0].mxu0 %v706
          %v1062 = vpop.f32.mrb[0].mxu0
          %v1063 = vadd.f32 %v918, %v1062
          %v1064 = vpop.f32.mrb[0].mxu0
          %v1065 = vpop.f32.mrb[0].mxu0
          %v1066 = vadd.f32 %v921, %v1065
          %v1067 = vpop.f32.mrb[0].mxu0
          %1068 = vmatprep.mubr.bf16.mxu0 0
          %1069 = vmatmul.mubr.bf16.gmra.mrb[0].mxu0 %v707
          %v1070 = vpop.f32.mrb[0].mxu0
          %v1071 = vadd.f32 %v926, %v1070
          %v1072 = vpop.f32.mrb[0].mxu0
          %v1073 = vpop.f32.mrb[0].mxu0
          %v1074 = vadd.f32 %v929, %v1073
          %v1075 = vpop.f32.mrb[0].mxu0
          %1076 = vmatprep.mubr.bf16.mxu0 0
          %1077 = vmatmul.mubr.bf16.gmra.mrb[0].mxu0 %v708
          %v1078 = vpop.f32.mrb[0].mxu0
          %v1079 = vadd.f32 %v934, %v1078
          %v1080 = vpop.f32.mrb[0].mxu0
          %v1081 = vpop.f32.mrb[0].mxu0
          %v1082 = vadd.f32 %v937, %v1081
          %v1083 = vpop.f32.mrb[0].mxu0
          %1084 = vmatprep.mubr.bf16.mxu0 0
          %1085 = vmatmul.mubr.bf16.gmra.mrb[0].mxu0 %v709
          %v1086 = vpop.f32.mrb[0].mxu0
          %v1087 = vadd.f32 %v942, %v1086
          %v1088 = vpop.f32.mrb[0].mxu0
          %v1089 = vpop.f32.mrb[0].mxu0
          %v1090 = vadd.f32 %v945, %v1089
          %v1091 = vpop.f32.mrb[0].mxu0
          %1092 = vmatprep.mubr.bf16.mxu0 0
          %1093 = vmatmul.mubr.bf16.gmra.mrb[0].mxu0 %v710
          %v1094 = vpop.f32.mrb[0].mxu0
          %v1095 = vadd.f32 %v950, %v1094
          %v1096 = vpop.f32.mrb[0].mxu0
          %v1097 = vpop.f32.mrb[0].mxu0
          %v1098 = vadd.f32 %v953, %v1097
          %v1099 = vpop.f32.mrb[0].mxu0
          %1100 = vdwg.mxu0
          %v1101 = vld [vmem:[%s5] sm:$0x1]
          %v1103 = vlaneseq
          %v1104 = vshrl.u32 %v1103, 7
          %v1105 = vsub.s32 0, %v1104
          %v1106 = vrot.slane %v1101, %v1105
          %v1108 = vadd.f32 %v1039, %v1106
          %v1109 = vadd.f32 %v1042, %v1106
          %v1110 = vadd.f32 %v1047, %v1106
          %v1111 = vadd.f32 %v1050, %v1106
          %v1112 = vadd.f32 %v1055, %v1106
          %v1113 = vadd.f32 %v1058, %v1106
          %v1114 = vadd.f32 %v1063, %v1106
          %v1115 = vadd.f32 %v1066, %v1106
          %v1116 = vadd.f32 %v1071, %v1106
          %v1117 = vadd.f32 %v1074, %v1106
          %v1118 = vadd.f32 %v1079, %v1106
          %v1119 = vadd.f32 %v1082, %v1106
          %v1120 = vadd.f32 %v1087, %v1106
          %v1121 = vadd.f32 %v1090, %v1106
          %v1122 = vadd.f32 %v1095, %v1106
          %v1123 = vadd.f32 %v1098, %v1106
          %v1124 = vmax.f32 %v1108, 0.0
          %v1125 = vmax.f32 %v1109, 0.0
          %v1126 = vmax.f32 %v1110, 0.0
          %v1127 = vmax.f32 %v1111, 0.0
          %v1128 = vmax.f32 %v1112, 0.0
          %v1129 = vmax.f32 %v1113, 0.0
          %v1130 = vmax.f32 %v1114, 0.0
          %v1131 = vmax.f32 %v1115, 0.0
          %v1132 = vmax.f32 %v1116, 0.0
          %v1133 = vmax.f32 %v1117, 0.0
          %v1134 = vmax.f32 %v1118, 0.0
          %v1135 = vmax.f32 %v1119, 0.0
          %v1136 = vmax.f32 %v1120, 0.0
          %v1137 = vmax.f32 %v1121, 0.0
          %v1138 = vmax.f32 %v1122, 0.0
          %v1139 = vmax.f32 %v1123, 0.0
          %v1140 = vpack.c.bf16 %v1125, %v1124
          %v1141 = vpack.c.bf16 %v1127, %v1126
          %v1142 = vpack.c.bf16 %v1129, %v1128
          %v1143 = vpack.c.bf16 %v1131, %v1130
          %v1144 = vpack.c.bf16 %v1133, %v1132
          %v1145 = vpack.c.bf16 %v1135, %v1134
          %v1146 = vpack.c.bf16 %v1137, %v1136
          %v1147 = vpack.c.bf16 %v1139, %v1138
          %s1148 = sshra.s32 %s409, 4
          %s1149 = sand.u32 %s409, 15
          %s1150 = smul.addr %s1148, 8
          %s1151 = scalar_lea.vmem [#allocation2], %s1150
          %1152 = vst [vmem:[%s1151] sm:$0xff] %v1140
          %1153 = vst [vmem:[%s1151 + $0x8] sm:$0xff] %v1141
          %1154 = vst [vmem:[%s1151 + $0x10] sm:$0xff] %v1142
          %1155 = vst [vmem:[%s1151 + $0x18] sm:$0xff] %v1143
          %1156 = vst [vmem:[%s1151 + $0x20] sm:$0xff] %v1144
          %1157 = vst [vmem:[%s1151 + $0x28] sm:$0xff] %v1145
          %1158 = vst [vmem:[%s1151 + $0x30] sm:$0xff] %v1146
          %1159 = vst [vmem:[%s1151 + $0x38] sm:$0xff] %v1147
        $region76: #{tpu_custom_call.1} parent=55 // pred_fallthru
          _
        %p1160 = scmp.eq.s32.totalorder %s30, 1
        // Predicated region
        $region77: #{tpu_custom_call.1} parent=55 // pred_check
          %p1161 = pneg %p1160
        $region78: #{tpu_custom_call.1} parent=55 // pred_check_branch
          %1163 = sbr.rel (%p1161) target = $region80
        $region79: #{tpu_custom_call.1} parent=55 // pred_region
          %s1164 = sshra.s32 %s409, 5
          %s1165 = sand.u32 %s409, 31
          %s1166 = smul.addr %s1164, 8
          %s1167 = scalar_lea.vmem [#allocation3], %s1166
          %v1168 = vld [vmem:[%s1167] sm:$0xff]
          %v1169 = vld [vmem:[%s1167 + $0x8] sm:$0xff]
          %v1170 = vld [vmem:[%s1167 + $0x10] sm:$0xff]
          %v1171 = vld [vmem:[%s1167 + $0x18] sm:$0xff]
          %v1172 = vunpack.c.l.s8.bf16 %v1168
          %v1173 = vunpack.c.h.s8.bf16 %v1168
          %v1174 = vunpack.c.l.s8.bf16 %v1169
          %v1175 = vunpack.c.h.s8.bf16 %v1169
          %v1176 = vunpack.c.l.s8.bf16 %v1170
          %v1177 = vunpack.c.h.s8.bf16 %v1170
          %v1178 = vunpack.c.l.s8.bf16 %v1171
          %v1179 = vunpack.c.h.s8.bf16 %v1171
          %v1180 = vld [vmem:[#allocation2] sm:$0xff]
          %v1181 = vld [vmem:[#allocation2 + $0x8] sm:$0xff]
          %v1182 = vld [vmem:[#allocation2 + $0x10] sm:$0xff]
          %v1183 = vld [vmem:[#allocation2 + $0x18] sm:$0xff]
          %v1184 = vld [vmem:[#allocation2 + $0x20] sm:$0xff]
          %v1185 = vld [vmem:[#allocation2 + $0x28] sm:$0xff]
          %v1186 = vld [vmem:[#allocation2 + $0x30] sm:$0xff]
          %v1187 = vld [vmem:[#allocation2 + $0x38] sm:$0xff]
          %1188 = vmatprep.subr.bf16.mxu0 0
          %1189 = vmatpush1.bf16.msra.mxu0 %v1180
          %1190 = vmatprep.subr.bf16.mxu0 0
          %1191 = vmatpush1.bf16.msra.mxu0 %v1181
          %1192 = vmatprep.subr.bf16.mxu0 0
          %1193 = vmatpush1.bf16.msra.mxu0 %v1182
          %1194 = vmatprep.subr.bf16.mxu0 0
          %1195 = vmatpush1.bf16.msra.mxu0 %v1183
          %1196 = vmatprep.subr.bf16.mxu0 0
          %1197 = vmatpush1.bf16.msra.mxu0 %v1184
          %1198 = vmatprep.subr.bf16.mxu0 0
          %1199 = vmatpush1.bf16.msra.mxu0 %v1185
          %1200 = vmatprep.subr.bf16.mxu0 0
          %1201 = vmatpush1.bf16.msra.mxu0 %v1186
          %1202 = vmatprep.subr.bf16.mxu0 0
          %1203 = vmatpush1.bf16.msra.mxu0 %v1187
          %1204 = vmatprep.subr.bf16.mxu0 0
          %1205 = vmatpush1.bf16.msra.mxu0 0
          %1206 = vmatprep.subr.bf16.mxu0 0
          %1207 = vmatpush1.bf16.msra.mxu0 0
          %1208 = vmatprep.subr.bf16.mxu0 0
          %1209 = vmatpush1.bf16.msra.mxu0 0
          %1210 = vmatprep.subr.bf16.mxu0 0
          %1211 = vmatpush1.bf16.msra.mxu0 0
          %1212 = vmatprep.subr.bf16.mxu0 0
          %1213 = vmatpush1.bf16.msra.mxu0 0
          %1214 = vmatprep.subr.bf16.mxu0 0
          %1215 = vmatpush1.bf16.msra.mxu0 0
          %1216 = vmatprep.subr.bf16.mxu0 0
          %1217 = vmatpush1.bf16.msra.mxu0 0
          %1218 = vmatprep.subr.bf16.mxu0 0
          %1219 = vmatpush1.bf16.msra.mxu0 0
          %1220 = vmatprep.mubr.bf16.mxu0 0
          %1221 = vmatmul.mubr.bf16.gmra.mrb[0].mxu0 %v1172
          %v1222 = vpop.f32.mrb[0].mxu0
          %v1223 = vadd.f32 0.0, %v1222
          %v1224 = vpop.f32.mrb[0].mxu0
          %v1225 = vpop.f32.mrb[0].mxu0
          %v1226 = vadd.f32 0.0, %v1225
          %v1227 = vpop.f32.mrb[0].mxu0
          %1228 = vmatprep.mubr.bf16.mxu0 0
          %1229 = vmatmul.mubr.bf16.gmra.mrb[0].mxu0 %v1173
          %v1230 = vpop.f32.mrb[0].mxu0
          %v1231 = vadd.f32 0.0, %v1230
          %v1232 = vpop.f32.mrb[0].mxu0
          %v1233 = vpop.f32.mrb[0].mxu0
          %v1234 = vadd.f32 0.0, %v1233
          %v1235 = vpop.f32.mrb[0].mxu0
          %1236 = vmatprep.mubr.bf16.mxu0 0
          %1237 = vmatmul.mubr.bf16.gmra.mrb[0].mxu0 %v1174
          %v1238 = vpop.f32.mrb[0].mxu0
          %v1239 = vadd.f32 0.0, %v1238
          %v1240 = vpop.f32.mrb[0].mxu0
          %v1241 = vpop.f32.mrb[0].mxu0
          %v1242 = vadd.f32 0.0, %v1241
          %v1243 = vpop.f32.mrb[0].mxu0
          %1244 = vmatprep.mubr.bf16.mxu0 0
          %1245 = vmatmul.mubr.bf16.gmra.mrb[0].mxu0 %v1175
          %v1246 = vpop.f32.mrb[0].mxu0
          %v1247 = vadd.f32 0.0, %v1246
          %v1248 = vpop.f32.mrb[0].mxu0
          %v1249 = vpop.f32.mrb[0].mxu0
          %v1250 = vadd.f32 0.0, %v1249
          %v1251 = vpop.f32.mrb[0].mxu0
          %1252 = vmatprep.mubr.bf16.mxu0 0
          %1253 = vmatmul.mubr.bf16.gmra.mrb[0].mxu0 %v1176
          %v1254 = vpop.f32.mrb[0].mxu0
          %v1255 = vadd.f32 0.0, %v1254
          %v1256 = vpop.f32.mrb[0].mxu0
          %v1257 = vpop.f32.mrb[0].mxu0
          %v1258 = vadd.f32 0.0, %v1257
          %v1259 = vpop.f32.mrb[0].mxu0
          %1260 = vmatprep.mubr.bf16.mxu0 0
          %1261 = vmatmul.mubr.bf16.gmra.mrb[0].mxu0 %v1177
          %v1262 = vpop.f32.mrb[0].mxu0
          %v1263 = vadd.f32 0.0, %v1262
          %v1264 = vpop.f32.mrb[0].mxu0
          %v1265 = vpop.f32.mrb[0].mxu0
          %v1266 = vadd.f32 0.0, %v1265
          %v1267 = vpop.f32.mrb[0].mxu0
          %1268 = vmatprep.mubr.bf16.mxu0 0
          %1269 = vmatmul.mubr.bf16.gmra.mrb[0].mxu0 %v1178
          %v1270 = vpop.f32.mrb[0].mxu0
          %v1271 = vadd.f32 0.0, %v1270
          %v1272 = vpop.f32.mrb[0].mxu0
          %v1273 = vpop.f32.mrb[0].mxu0
          %v1274 = vadd.f32 0.0, %v1273
          %v1275 = vpop.f32.mrb[0].mxu0
          %1276 = vmatprep.mubr.bf16.mxu0 0
          %1277 = vmatmul.mubr.bf16.gmra.mrb[0].mxu0 %v1179
          %v1278 = vpop.f32.mrb[0].mxu0
          %v1279 = vadd.f32 0.0, %v1278
          %v1280 = vpop.f32.mrb[0].mxu0
          %v1281 = vpop.f32.mrb[0].mxu0
          %v1282 = vadd.f32 0.0, %v1281
          %v1283 = vpop.f32.mrb[0].mxu0
          %1284 = vdwg.mxu0
          %1286 = vset.pattern.permute.xlu0 0
          %1287 = vperm.xlu0 %1286, %v410
          %v1288 = vpop.permute.xlu0 %1287
          %1291 = vset.pattern.permute.xlu0 0
          %1292 = vperm.xlu0 %1291, %v411
          %v1293 = vpop.permute.xlu0 %1292
          %1296 = vset.pattern.permute.xlu0 0
          %1297 = vperm.xlu0 %1296, %v412
          %v1298 = vpop.permute.xlu0 %1297
          %1301 = vset.pattern.permute.xlu0 0
          %1302 = vperm.xlu0 %1301, %v413
          %v1303 = vpop.permute.xlu0 %1302
          %1306 = vset.pattern.permute.xlu0 0
          %1307 = vperm.xlu0 %1306, %v414
          %v1308 = vpop.permute.xlu0 %1307
          %1311 = vset.pattern.permute.xlu0 0
          %1312 = vperm.xlu0 %1311, %v415
          %v1313 = vpop.permute.xlu0 %1312
          %1316 = vset.pattern.permute.xlu0 0
          %1317 = vperm.xlu0 %1316, %v416
          %v1318 = vpop.permute.xlu0 %1317
          %1321 = vset.pattern.permute.xlu0 0
          %1322 = vperm.xlu0 %1321, %v417
          %v1323 = vpop.permute.xlu0 %1322
          %1326 = vset.pattern.permute.xlu0 0
          %1327 = vperm.xlu0 %1326, %v418
          %v1328 = vpop.permute.xlu0 %1327
          %1331 = vset.pattern.permute.xlu0 0
          %1332 = vperm.xlu0 %1331, %v419
          %v1333 = vpop.permute.xlu0 %1332
          %1336 = vset.pattern.permute.xlu0 0
          %1337 = vperm.xlu0 %1336, %v420
          %v1338 = vpop.permute.xlu0 %1337
          %1341 = vset.pattern.permute.xlu0 0
          %1342 = vperm.xlu0 %1341, %v421
          %v1343 = vpop.permute.xlu0 %1342
          %1346 = vset.pattern.permute.xlu0 0
          %1347 = vperm.xlu0 %1346, %v422
          %v1348 = vpop.permute.xlu0 %1347
          %1351 = vset.pattern.permute.xlu0 0
          %1352 = vperm.xlu0 %1351, %v423
          %v1353 = vpop.permute.xlu0 %1352
          %1356 = vset.pattern.permute.xlu0 0
          %1357 = vperm.xlu0 %1356, %v424
          %v1358 = vpop.permute.xlu0 %1357
          %1361 = vset.pattern.permute.xlu0 0
          %1362 = vperm.xlu0 %1361, %v425
          %v1363 = vpop.permute.xlu0 %1362
          %v1365 = vmul.f32 %v1223, %v1288
          %v1366 = vmul.f32 %v1226, %v1293
          %v1367 = vmul.f32 %v1231, %v1298
          %v1368 = vmul.f32 %v1234, %v1303
          %v1369 = vmul.f32 %v1239, %v1308
          %v1370 = vmul.f32 %v1242, %v1313
          %v1371 = vmul.f32 %v1247, %v1318
          %v1372 = vmul.f32 %v1250, %v1323
          %v1373 = vmul.f32 %v1255, %v1328
          %v1374 = vmul.f32 %v1258, %v1333
          %v1375 = vmul.f32 %v1263, %v1338
          %v1376 = vmul.f32 %v1266, %v1343
          %v1377 = vmul.f32 %v1271, %v1348
          %v1378 = vmul.f32 %v1274, %v1353
          %v1379 = vmul.f32 %v1279, %v1358
          %v1380 = vmul.f32 %v1282, %v1363
          %v1381 = vpack.c.bf16 %v1366, %v1365
          %v1382 = vpack.c.bf16 %v1368, %v1367
          %v1383 = vpack.c.bf16 %v1370, %v1369
          %v1384 = vpack.c.bf16 %v1372, %v1371
          %v1385 = vpack.c.bf16 %v1374, %v1373
          %v1386 = vpack.c.bf16 %v1376, %v1375
          %v1387 = vpack.c.bf16 %v1378, %v1377
          %v1388 = vpack.c.bf16 %v1380, %v1379
          %v1389 = vld [vmem:[#allocation8] sm:$0xf]
          %v1390 = vld [vmem:[#allocation8 + $0x4] sm:$0xf]
          %v1391 = vld [vmem:[#allocation8 + $0x8] sm:$0xf]
          %v1392 = vld [vmem:[#allocation8 + $0xc] sm:$0xf]
          %v1393 = vld [vmem:[#allocation8 + $0x10] sm:$0xf]
          %v1394 = vld [vmem:[#allocation8 + $0x14] sm:$0xf]
          %v1395 = vld [vmem:[#allocation8 + $0x18] sm:$0xf]
          %v1396 = vld [vmem:[#allocation8 + $0x1c] sm:$0xf]
          %v1397 = vld [vmem:[#allocation8 + $0x20] sm:$0xf]
          %v1398 = vld [vmem:[#allocation8 + $0x24] sm:$0xf]
          %v1399 = vld [vmem:[#allocation8 + $0x28] sm:$0xf]
          %v1400 = vld [vmem:[#allocation8 + $0x2c] sm:$0xf]
          %v1401 = vld [vmem:[#allocation8 + $0x30] sm:$0xf]
          %v1402 = vld [vmem:[#allocation8 + $0x34] sm:$0xf]
          %v1403 = vld [vmem:[#allocation8 + $0x38] sm:$0xf]
          %v1404 = vld [vmem:[#allocation8 + $0x3c] sm:$0xf]
          %s1405 = sshra.s32 %s409, 4
          %s1406 = sand.u32 %s409, 15
          %s1407 = smul.addr %s1405, 8
          %s1408 = scalar_lea.vmem [#allocation2], %s1407
          %v1409 = vld [vmem:[%s1408] sm:$0xff]
          %v1410 = vld [vmem:[%s1408 + $0x8] sm:$0xff]
          %v1411 = vld [vmem:[%s1408 + $0x10] sm:$0xff]
          %v1412 = vld [vmem:[%s1408 + $0x18] sm:$0xff]
          %v1413 = vld [vmem:[%s1408 + $0x20] sm:$0xff]
          %v1414 = vld [vmem:[%s1408 + $0x28] sm:$0xff]
          %v1415 = vld [vmem:[%s1408 + $0x30] sm:$0xff]
          %v1416 = vld [vmem:[%s1408 + $0x38] sm:$0xff]
          %v1417 = vld [vmem:[#allocation9] sm:$0xf]
          %v1418 = vld [vmem:[#allocation9 + $0x4] sm:$0xf]
          %v1419 = vld [vmem:[#allocation9 + $0x8] sm:$0xf]
          %v1420 = vld [vmem:[#allocation9 + $0xc] sm:$0xf]
          %v1421 = vld [vmem:[#allocation9 + $0x10] sm:$0xf]
          %v1422 = vld [vmem:[#allocation9 + $0x14] sm:$0xf]
          %v1423 = vld [vmem:[#allocation9 + $0x18] sm:$0xf]
          %v1424 = vld [vmem:[#allocation9 + $0x1c] sm:$0xf]
          %v1425 = vld [vmem:[#allocation9 + $0x20] sm:$0xf]
          %v1426 = vld [vmem:[#allocation9 + $0x24] sm:$0xf]
          %v1427 = vld [vmem:[#allocation9 + $0x28] sm:$0xf]
          %v1428 = vld [vmem:[#allocation9 + $0x2c] sm:$0xf]
          %v1429 = vld [vmem:[#allocation9 + $0x30] sm:$0xf]
          %v1430 = vld [vmem:[#allocation9 + $0x34] sm:$0xf]
          %v1431 = vld [vmem:[#allocation9 + $0x38] sm:$0xf]
          %v1432 = vld [vmem:[#allocation9 + $0x3c] sm:$0xf]
          %v1449 = vunpack.c.l.b16 %v1417
          %v1450 = vunpack.c.l.b16 %v1418
          %v1451 = vunpack.c.l.b16 %v1419
          %v1452 = vunpack.c.l.b16 %v1420
          %v1453 = vunpack.c.l.b16 %v1421
          %v1454 = vunpack.c.l.b16 %v1422
          %v1455 = vunpack.c.l.b16 %v1423
          %v1456 = vunpack.c.l.b16 %v1424
          %v1457 = vunpack.c.l.b16 %v1425
          %v1458 = vunpack.c.l.b16 %v1426
          %v1459 = vunpack.c.l.b16 %v1427
          %v1460 = vunpack.c.l.b16 %v1428
          %v1461 = vunpack.c.l.b16 %v1429
          %v1462 = vunpack.c.l.b16 %v1430
          %v1463 = vunpack.c.l.b16 %v1431
          %v1464 = vunpack.c.l.b16 %v1432
          %v1465 = vpack.c.b16 %v1450, %v1449
          %v1466 = vpack.c.b16 %v1452, %v1451
          %v1467 = vpack.c.b16 %v1454, %v1453
          %v1468 = vpack.c.b16 %v1456, %v1455
          %v1469 = vpack.c.b16 %v1458, %v1457
          %v1470 = vpack.c.b16 %v1460, %v1459
          %v1471 = vpack.c.b16 %v1462, %v1461
          %v1472 = vpack.c.b16 %v1464, %v1463
          %1481 = vmatprep.subr.bf16.mxu0 0
          %1482 = vmatpush1.bf16.msra.mxu0 %v1465
          %1483 = vmatprep.subr.bf16.mxu0 0
          %1484 = vmatpush1.bf16.msra.mxu0 %v1466
          %1485 = vmatprep.subr.bf16.mxu0 0
          %1486 = vmatpush1.bf16.msra.mxu0 %v1467
          %1487 = vmatprep.subr.bf16.mxu0 0
          %1488 = vmatpush1.bf16.msra.mxu0 %v1468
          %1489 = vmatprep.subr.bf16.mxu0 0
          %1490 = vmatpush1.bf16.msra.mxu0 %v1469
          %1491 = vmatprep.subr.bf16.mxu0 0
          %1492 = vmatpush1.bf16.msra.mxu0 %v1470
          %1493 = vmatprep.subr.bf16.mxu0 0
          %1494 = vmatpush1.bf16.msra.mxu0 %v1471
          %1495 = vmatprep.subr.bf16.mxu0 0
          %1496 = vmatpush1.bf16.msra.mxu0 %v1472
          %1497 = vmatprep.subr.bf16.mxu0 0
          %1498 = vmatpush1.bf16.msra.mxu0 0
          %1499 = vmatprep.subr.bf16.mxu0 0
          %1500 = vmatpush1.bf16.msra.mxu0 0
          %1501 = vmatprep.subr.bf16.mxu0 0
          %1502 = vmatpush1.bf16.msra.mxu0 0
          %1503 = vmatprep.subr.bf16.mxu0 0
          %1504 = vmatpush1.bf16.msra.mxu0 0
          %1505 = vmatprep.subr.bf16.mxu0 0
          %1506 = vmatpush1.bf16.msra.mxu0 0
          %1507 = vmatprep.subr.bf16.mxu0 0
          %1508 = vmatpush1.bf16.msra.mxu0 0
          %1509 = vmatprep.subr.bf16.mxu0 0
          %1510 = vmatpush1.bf16.msra.mxu0 0
          %1511 = vmatprep.subr.bf16.mxu0 0
          %1512 = vmatpush1.bf16.msra.mxu0 0
          %1513 = vmatprep.mubr.bf16.mxu0 0
          %1514 = vmatmul.mubr.bf16.gmra.mrb[0].mxu0 %v1409
          %v1515 = vpop.f32.mrb[0].mxu0
          %v1516 = vadd.f32 0.0, %v1515
          %v1517 = vpop.f32.mrb[0].mxu0
          %v1518 = vpop.f32.mrb[0].mxu0
          %v1519 = vadd.f32 0.0, %v1518
          %v1520 = vpop.f32.mrb[0].mxu0
          %1521 = vmatprep.mubr.bf16.mxu0 0
          %1522 = vmatmul.mubr.bf16.gmra.mrb[0].mxu0 %v1410
          %v1523 = vpop.f32.mrb[0].mxu0
          %v1524 = vadd.f32 0.0, %v1523
          %v1525 = vpop.f32.mrb[0].mxu0
          %v1526 = vpop.f32.mrb[0].mxu0
          %v1527 = vadd.f32 0.0, %v1526
          %v1528 = vpop.f32.mrb[0].mxu0
          %1529 = vmatprep.mubr.bf16.mxu0 0
          %1530 = vmatmul.mubr.bf16.gmra.mrb[0].mxu0 %v1411
          %v1531 = vpop.f32.mrb[0].mxu0
          %v1532 = vadd.f32 0.0, %v1531
          %v1533 = vpop.f32.mrb[0].mxu0
          %v1534 = vpop.f32.mrb[0].mxu0
          %v1535 = vadd.f32 0.0, %v1534
          %v1536 = vpop.f32.mrb[0].mxu0
          %1537 = vmatprep.mubr.bf16.mxu0 0
          %1538 = vmatmul.mubr.bf16.gmra.mrb[0].mxu0 %v1412
          %v1539 = vpop.f32.mrb[0].mxu0
          %v1540 = vadd.f32 0.0, %v1539
          %v1541 = vpop.f32.mrb[0].mxu0
          %v1542 = vpop.f32.mrb[0].mxu0
          %v1543 = vadd.f32 0.0, %v1542
          %v1544 = vpop.f32.mrb[0].mxu0
          %1545 = vmatprep.mubr.bf16.mxu0 0
          %1546 = vmatmul.mubr.bf16.gmra.mrb[0].mxu0 %v1413
          %v1547 = vpop.f32.mrb[0].mxu0
          %v1548 = vadd.f32 0.0, %v1547
          %v1549 = vpop.f32.mrb[0].mxu0
          %v1550 = vpop.f32.mrb[0].mxu0
          %v1551 = vadd.f32 0.0, %v1550
          %v1552 = vpop.f32.mrb[0].mxu0
          %1553 = vmatprep.mubr.bf16.mxu0 0
          %1554 = vmatmul.mubr.bf16.gmra.mrb[0].mxu0 %v1414
          %v1555 = vpop.f32.mrb[0].mxu0
          %v1556 = vadd.f32 0.0, %v1555
          %v1557 = vpop.f32.mrb[0].mxu0
          %v1558 = vpop.f32.mrb[0].mxu0
          %v1559 = vadd.f32 0.0, %v1558
          %v1560 = vpop.f32.mrb[0].mxu0
          %1561 = vmatprep.mubr.bf16.mxu0 0
          %1562 = vmatmul.mubr.bf16.gmra.mrb[0].mxu0 %v1415
          %v1563 = vpop.f32.mrb[0].mxu0
          %v1564 = vadd.f32 0.0, %v1563
          %v1565 = vpop.f32.mrb[0].mxu0
          %v1566 = vpop.f32.mrb[0].mxu0
          %v1567 = vadd.f32 0.0, %v1566
          %v1568 = vpop.f32.mrb[0].mxu0
          %1569 = vmatprep.mubr.bf16.mxu0 0
          %1570 = vmatmul.mubr.bf16.gmra.mrb[0].mxu0 %v1416
          %v1571 = vpop.f32.mrb[0].mxu0
          %v1572 = vadd.f32 0.0, %v1571
          %v1573 = vpop.f32.mrb[0].mxu0
          %v1574 = vpop.f32.mrb[0].mxu0
          %v1575 = vadd.f32 0.0, %v1574
          %v1576 = vpop.f32.mrb[0].mxu0
          %1577 = vdwg.mxu0
          %v1594 = vunpack.c.l.b16 %v1389
          %v1595 = vunpack.c.l.b16 %v1390
          %v1596 = vunpack.c.l.b16 %v1391
          %v1597 = vunpack.c.l.b16 %v1392
          %v1598 = vunpack.c.l.b16 %v1393
          %v1599 = vunpack.c.l.b16 %v1394
          %v1600 = vunpack.c.l.b16 %v1395
          %v1601 = vunpack.c.l.b16 %v1396
          %v1602 = vunpack.c.l.b16 %v1397
          %v1603 = vunpack.c.l.b16 %v1398
          %v1604 = vunpack.c.l.b16 %v1399
          %v1605 = vunpack.c.l.b16 %v1400
          %v1606 = vunpack.c.l.b16 %v1401
          %v1607 = vunpack.c.l.b16 %v1402
          %v1608 = vunpack.c.l.b16 %v1403
          %v1609 = vunpack.c.l.b16 %v1404
          %v1610 = vpack.c.b16 %v1595, %v1594
          %v1611 = vpack.c.b16 %v1597, %v1596
          %v1612 = vpack.c.b16 %v1599, %v1598
          %v1613 = vpack.c.b16 %v1601, %v1600
          %v1614 = vpack.c.b16 %v1603, %v1602
          %v1615 = vpack.c.b16 %v1605, %v1604
          %v1616 = vpack.c.b16 %v1607, %v1606
          %v1617 = vpack.c.b16 %v1609, %v1608
          %1626 = vmatprep.subr.bf16.mxu0 0
          %1627 = vmatpush1.bf16.msra.mxu0 %v1610
          %1628 = vmatprep.subr.bf16.mxu0 0
          %1629 = vmatpush1.bf16.msra.mxu0 %v1611
          %1630 = vmatprep.subr.bf16.mxu0 0
          %1631 = vmatpush1.bf16.msra.mxu0 %v1612
          %1632 = vmatprep.subr.bf16.mxu0 0
          %1633 = vmatpush1.bf16.msra.mxu0 %v1613
          %1634 = vmatprep.subr.bf16.mxu0 0
          %1635 = vmatpush1.bf16.msra.mxu0 %v1614
          %1636 = vmatprep.subr.bf16.mxu0 0
          %1637 = vmatpush1.bf16.msra.mxu0 %v1615
          %1638 = vmatprep.subr.bf16.mxu0 0
          %1639 = vmatpush1.bf16.msra.mxu0 %v1616
          %1640 = vmatprep.subr.bf16.mxu0 0
          %1641 = vmatpush1.bf16.msra.mxu0 %v1617
          %1642 = vmatprep.subr.bf16.mxu0 0
          %1643 = vmatpush1.bf16.msra.mxu0 0
          %1644 = vmatprep.subr.bf16.mxu0 0
          %1645 = vmatpush1.bf16.msra.mxu0 0
          %1646 = vmatprep.subr.bf16.mxu0 0
          %1647 = vmatpush1.bf16.msra.mxu0 0
          %1648 = vmatprep.subr.bf16.mxu0 0
          %1649 = vmatpush1.bf16.msra.mxu0 0
          %1650 = vmatprep.subr.bf16.mxu0 0
          %1651 = vmatpush1.bf16.msra.mxu0 0
          %1652 = vmatprep.subr.bf16.mxu0 0
          %1653 = vmatpush1.bf16.msra.mxu0 0
          %1654 = vmatprep.subr.bf16.mxu0 0
          %1655 = vmatpush1.bf16.msra.mxu0 0
          %1656 = vmatprep.subr.bf16.mxu0 0
          %1657 = vmatpush1.bf16.msra.mxu0 0
          %1658 = vmatprep.mubr.bf16.mxu0 0
          %1659 = vmatmul.mubr.bf16.gmra.mrb[0].mxu0 %v1381
          %v1660 = vpop.f32.mrb[0].mxu0
          %v1661 = vadd.f32 %v1516, %v1660
          %v1662 = vpop.f32.mrb[0].mxu0
          %v1663 = vpop.f32.mrb[0].mxu0
          %v1664 = vadd.f32 %v1519, %v1663
          %v1665 = vpop.f32.mrb[0].mxu0
          %1666 = vmatprep.mubr.bf16.mxu0 0
          %1667 = vmatmul.mubr.bf16.gmra.mrb[0].mxu0 %v1382
          %v1668 = vpop.f32.mrb[0].mxu0
          %v1669 = vadd.f32 %v1524, %v1668
          %v1670 = vpop.f32.mrb[0].mxu0
          %v1671 = vpop.f32.mrb[0].mxu0
          %v1672 = vadd.f32 %v1527, %v1671
          %v1673 = vpop.f32.mrb[0].mxu0
          %1674 = vmatprep.mubr.bf16.mxu0 0
          %1675 = vmatmul.mubr.bf16.gmra.mrb[0].mxu0 %v1383
          %v1676 = vpop.f32.mrb[0].mxu0
          %v1677 = vadd.f32 %v1532, %v1676
          %v1678 = vpop.f32.mrb[0].mxu0
          %v1679 = vpop.f32.mrb[0].mxu0
          %v1680 = vadd.f32 %v1535, %v1679
          %v1681 = vpop.f32.mrb[0].mxu0
          %1682 = vmatprep.mubr.bf16.mxu0 0
          %1683 = vmatmul.mubr.bf16.gmra.mrb[0].mxu0 %v1384
          %v1684 = vpop.f32.mrb[0].mxu0
          %v1685 = vadd.f32 %v1540, %v1684
          %v1686 = vpop.f32.mrb[0].mxu0
          %v1687 = vpop.f32.mrb[0].mxu0
          %v1688 = vadd.f32 %v1543, %v1687
          %v1689 = vpop.f32.mrb[0].mxu0
          %1690 = vmatprep.mubr.bf16.mxu0 0
          %1691 = vmatmul.mubr.bf16.gmra.mrb[0].mxu0 %v1385
          %v1692 = vpop.f32.mrb[0].mxu0
          %v1693 = vadd.f32 %v1548, %v1692
          %v1694 = vpop.f32.mrb[0].mxu0
          %v1695 = vpop.f32.mrb[0].mxu0
          %v1696 = vadd.f32 %v1551, %v1695
          %v1697 = vpop.f32.mrb[0].mxu0
          %1698 = vmatprep.mubr.bf16.mxu0 0
          %1699 = vmatmul.mubr.bf16.gmra.mrb[0].mxu0 %v1386
          %v1700 = vpop.f32.mrb[0].mxu0
          %v1701 = vadd.f32 %v1556, %v1700
          %v1702 = vpop.f32.mrb[0].mxu0
          %v1703 = vpop.f32.mrb[0].mxu0
          %v1704 = vadd.f32 %v1559, %v1703
          %v1705 = vpop.f32.mrb[0].mxu0
          %1706 = vmatprep.mubr.bf16.mxu0 0
          %1707 = vmatmul.mubr.bf16.gmra.mrb[0].mxu0 %v1387
          %v1708 = vpop.f32.mrb[0].mxu0
          %v1709 = vadd.f32 %v1564, %v1708
          %v1710 = vpop.f32.mrb[0].mxu0
          %v1711 = vpop.f32.mrb[0].mxu0
          %v1712 = vadd.f32 %v1567, %v1711
          %v1713 = vpop.f32.mrb[0].mxu0
          %1714 = vmatprep.mubr.bf16.mxu0 0
          %1715 = vmatmul.mubr.bf16.gmra.mrb[0].mxu0 %v1388
          %v1716 = vpop.f32.mrb[0].mxu0
          %v1717 = vadd.f32 %v1572, %v1716
          %v1718 = vpop.f32.mrb[0].mxu0
          %v1719 = vpop.f32.mrb[0].mxu0
          %v1720 = vadd.f32 %v1575, %v1719
          %v1721 = vpop.f32.mrb[0].mxu0
          %1722 = vdwg.mxu0
          %v1723 = vld [vmem:[%s8] sm:$0x1]
          %v1725 = vlaneseq
          %v1726 = vshrl.u32 %v1725, 7
          %v1727 = vsub.s32 0, %v1726
          %v1728 = vrot.slane %v1723, %v1727
          %v1730 = vadd.f32 %v1661, %v1728
          %v1731 = vadd.f32 %v1664, %v1728
          %v1732 = vadd.f32 %v1669, %v1728
          %v1733 = vadd.f32 %v1672, %v1728
          %v1734 = vadd.f32 %v1677, %v1728
          %v1735 = vadd.f32 %v1680, %v1728
          %v1736 = vadd.f32 %v1685, %v1728
          %v1737 = vadd.f32 %v1688, %v1728
          %v1738 = vadd.f32 %v1693, %v1728
          %v1739 = vadd.f32 %v1696, %v1728
          %v1740 = vadd.f32 %v1701, %v1728
          %v1741 = vadd.f32 %v1704, %v1728
          %v1742 = vadd.f32 %v1709, %v1728
          %v1743 = vadd.f32 %v1712, %v1728
          %v1744 = vadd.f32 %v1717, %v1728
          %v1745 = vadd.f32 %v1720, %v1728
          %v1746 = vpack.c.bf16 %v1731, %v1730
          %v1747 = vpack.c.bf16 %v1733, %v1732
          %v1748 = vpack.c.bf16 %v1735, %v1734
          %v1749 = vpack.c.bf16 %v1737, %v1736
          %v1750 = vpack.c.bf16 %v1739, %v1738
          %v1751 = vpack.c.bf16 %v1741, %v1740
          %v1752 = vpack.c.bf16 %v1743, %v1742
          %v1753 = vpack.c.bf16 %v1745, %v1744
          %v1762 = vunpack.c.l.b16 %v1746
          %v1763 = vunpack.c.h.b16 %v1746
          %v1764 = vunpack.c.l.b16 %v1747
          %v1765 = vunpack.c.h.b16 %v1747
          %v1766 = vunpack.c.l.b16 %v1748
          %v1767 = vunpack.c.h.b16 %v1748
          %v1768 = vunpack.c.l.b16 %v1749
          %v1769 = vunpack.c.h.b16 %v1749
          %v1770 = vunpack.c.l.b16 %v1750
          %v1771 = vunpack.c.h.b16 %v1750
          %v1772 = vunpack.c.l.b16 %v1751
          %v1773 = vunpack.c.h.b16 %v1751
          %v1774 = vunpack.c.l.b16 %v1752
          %v1775 = vunpack.c.h.b16 %v1752
          %v1776 = vunpack.c.l.b16 %v1753
          %v1777 = vunpack.c.h.b16 %v1753
          %v1778 = vpack.c.b16 %v1762, %v1762
          %v1779 = vpack.c.b16 %v1763, %v1763
          %v1780 = vpack.c.b16 %v1764, %v1764
          %v1781 = vpack.c.b16 %v1765, %v1765
          %v1782 = vpack.c.b16 %v1766, %v1766
          %v1783 = vpack.c.b16 %v1767, %v1767
          %v1784 = vpack.c.b16 %v1768, %v1768
          %v1785 = vpack.c.b16 %v1769, %v1769
          %v1786 = vpack.c.b16 %v1770, %v1770
          %v1787 = vpack.c.b16 %v1771, %v1771
          %v1788 = vpack.c.b16 %v1772, %v1772
          %v1789 = vpack.c.b16 %v1773, %v1773
          %v1790 = vpack.c.b16 %v1774, %v1774
          %v1791 = vpack.c.b16 %v1775, %v1775
          %v1792 = vpack.c.b16 %v1776, %v1776
          %v1793 = vpack.c.b16 %v1777, %v1777
          %1810 = vst [vmem:[%s399] sm:$0xf] %v1778
          %1811 = vst [vmem:[%s399 + $0x4] sm:$0xf] %v1779
          %1812 = vst [vmem:[%s399 + $0x8] sm:$0xf] %v1780
          %1813 = vst [vmem:[%s399 + $0xc] sm:$0xf] %v1781
          %1814 = vst [vmem:[%s399 + $0x10] sm:$0xf] %v1782
          %1815 = vst [vmem:[%s399 + $0x14] sm:$0xf] %v1783
          %1816 = vst [vmem:[%s399 + $0x18] sm:$0xf] %v1784
          %1817 = vst [vmem:[%s399 + $0x1c] sm:$0xf] %v1785
          %1818 = vst [vmem:[%s399 + $0x20] sm:$0xf] %v1786
          %1819 = vst [vmem:[%s399 + $0x24] sm:$0xf] %v1787
          %1820 = vst [vmem:[%s399 + $0x28] sm:$0xf] %v1788
          %1821 = vst [vmem:[%s399 + $0x2c] sm:$0xf] %v1789
          %1822 = vst [vmem:[%s399 + $0x30] sm:$0xf] %v1790
          %1823 = vst [vmem:[%s399 + $0x34] sm:$0xf] %v1791
          %1824 = vst [vmem:[%s399 + $0x38] sm:$0xf] %v1792
          %1825 = vst [vmem:[%s399 + $0x3c] sm:$0xf] %v1793
        $region80: #{tpu_custom_call.1} parent=55 // pred_fallthru
          _
        %s1826 = sand.u32 %s242, 1
        %s1827 = scalar_lea.sflag [#allocation5], %s1826
        %s1828 = sand.u32 %s242, 1
        %s1829 = smul.addr %s1828, 64
        %s1830 = scalar_lea.vmem [#allocation11], %s1829
        // Predicated region
        $region81: #{tpu_custom_call.1} parent=55 // pred_check
          %p1831 = pneg %p252
        $region82: #{tpu_custom_call.1} parent=55 // pred_check_branch
          %1833 = sbr.rel (%p1831) target = $region84
        $region83: #{tpu_custom_call.1} parent=55 // pred_region
          %s1834 = smul.u32 %s30, %s31
          %s1835 = smul.u32 16, %s1834
          %s1837 = ssub.s32 1024, 1024
          %1838 = vsyncadd %s1827, %s1837
          %s1839 = smul.addr %s1835, 64
          %s1840 = scalar_lea.hbm %s9, %s1839
          %s1841 = sshll.u32 %s1830, 4
          %s1842 = int_to_ptr.vmem [resolvable:$true] %s1841
          %1847 = dma.vmem_to_hbm [thread:$0]  %s1842, 1024, %s1840, %s1827, 64, 64, 4
        $region84: #{tpu_custom_call.1} parent=55 // pred_fallthru
          _
      $region56: #{tpu_custom_call.1} parent=5 // pred_fallthru
        _
      %p1848 = scmp.le.s32.totalorder 2, %s21
      // Predicated region
      $region85: #{tpu_custom_call.1} parent=5 // pred_check
        %p1849 = pneg %p1848
      $region86: #{tpu_custom_call.1} parent=5 // pred_check_branch
        %1851 = sbr.rel (%p1849) target = $region88
      $region87: #{tpu_custom_call.1} parent=5 // pred_region
        %s1852 = ssub.s32 %s21, 2
        // Predicated region
        $region89: #{tpu_custom_call.1} parent=87 // pred_check
          %p1853 = pneg %p258
        $region90: #{tpu_custom_call.1} parent=87 // pred_check_branch
          %1855 = sbr.rel (%p1853) target = $region92
        $region91: #{tpu_custom_call.1} parent=87 // pred_region
          %s1856 = sand.u32 %s243, 1
          %s1857 = scalar_lea.sflag [#allocation5], %s1856
          %s1858 = sand.u32 %s243, 1
          %s1859 = smul.addr %s1858, 64
          %s1860 = scalar_lea.vmem [#allocation11], %s1859
          %1861 = dma.done %s1857, 1024
        $region92: #{tpu_custom_call.1} parent=87 // pred_fallthru
          _
      $region88: #{tpu_custom_call.1} parent=5 // pred_fallthru
        _
    $region6: #{tpu_custom_call.1} parent=1 // loop_footer
      %s25 = sadd.s32 1, %s21
    $region7: #{tpu_custom_call.1} parent=1 // loop_footer_branch
      %20 = sbr.rel target = $region3
    $region8: #{tpu_custom_call.1} parent=1 // loop_exit
      _
    %1862 = vsyncpa [#allocation4], 1
    %s1863 = scalar_lea.sflag [#allocation4], 1
    %1864 = vsyncpa %s1863, 1
    %1865 = vsyncpa [#allocation7], 1
    %1866 = vsyncpa [#allocation10], 1
    %1867 = vsyncpa [#allocation5], 1
    %s1868 = scalar_lea.sflag [#allocation5], 1
    %1869 = vsyncpa %s1868, 1

</llo_original>
